<compile_context>
chip_gen: v5e
topology: v5e:2x2
jax: 0.10.0
libtpu: 0.0.40
codegen_flags: <defaults>
</compile_context>

<pallas_src>
import functools
import math

import jax
import jax.numpy as jnp
from jax.experimental import pallas as pl
from jax.experimental.pallas import tpu as pltpu


_VMEM_LIMIT = 48 * 1024 * 1024  # headroom under v7x's 64 MiB physical VMEM


def _pick_tile(dim, target, align):
    """Largest tile <= target that is a multiple of `align` and divides `dim`.
    Falls back to the full dimension (always legal for BlockSpec)."""
    if dim <= target:
        return dim
    t = (target // align) * align
    while t >= align:
        if dim % t == 0:
            return t
        t -= align
    return dim


# ----------------------------------------------------------------------------
# Pallas kernels
# ----------------------------------------------------------------------------
def _linear_kernel(x_ref, w_ref, b_ref, o_ref, acc_ref, *, relu: bool):
    # x: [tm, tk], w: [tk, tn], b: [1, tn] -> o: [tm, tn]; K-accumulation in f32.
    @pl.when(pl.program_id(2) == 0)
    def _():
        acc_ref[...] = jnp.zeros_like(acc_ref)

    acc_ref[...] += jnp.dot(x_ref[...], w_ref[...],
                            preferred_element_type=jnp.float32)

    @pl.when(pl.program_id(2) == pl.num_programs(2) - 1)
    def _():
        y = acc_ref[...] + b_ref[...].astype(jnp.float32)
        if relu:
            y = jnp.maximum(y, 0.0)
        o_ref[...] = y.astype(o_ref.dtype)


def _ffn_kernel(x_ref, w1_ref, b1_ref, w2_ref, b2_ref, o_ref):
    # Fused position-wise feed-forward: ReLU(x@w1 + b1) @ w2 + b2.
    # The [tm, F] intermediate lives only in VMEM/vregs.
    h = jnp.dot(x_ref[...], w1_ref[...], preferred_element_type=jnp.float32)
    h = jnp.maximum(h + b1_ref[...].astype(jnp.float32), 0.0)
    y = jnp.dot(h, w2_ref[...], preferred_element_type=jnp.float32)
    y = y + b2_ref[...].astype(jnp.float32)
    o_ref[...] = y.astype(o_ref.dtype)


def _add_layernorm_kernel(x_ref, y_ref, g_ref, b_ref, o_ref, *, eps: float):
    # LayerNorm(x + y) over the last dim; x/y: [tm, D], g/b: [1, D].
    z = x_ref[...].astype(jnp.float32) + y_ref[...].astype(jnp.float32)
    mean = jnp.mean(z, axis=-1, keepdims=True)
    var = jnp.mean((z - mean) ** 2, axis=-1, keepdims=True)
    n = (z - mean) * jax.lax.rsqrt(var + eps)
    o_ref[...] = (n * g_ref[...] + b_ref[...]).astype(o_ref.dtype)


def _mha_kernel(q_ref, k_ref, v_ref, m_ref, *out_refs, scale, n_heads, dh):
    # Per batch: q [1, Lq, D], k/v [1, Lk, D] (head-interleaved along lanes),
    # mask [1, 1, Mq, Lk] with Mq in {1, Lq}; outputs: o [1, Lq, D] and
    # (optionally) attention probabilities [1, H, Lq, Lk].
    o_ref = out_refs[0]
    a_ref = out_refs[1] if len(out_refs) > 1 else None

    q = q_ref[0].astype(jnp.float32)
    k = k_ref[0].astype(jnp.float32)
    v = v_ref[0].astype(jnp.float32)
    keep = m_ref[0, 0] > 0  # broadcasts over the query dim if Mq == 1

    head_outs = []
    for h in range(n_heads):  # static unroll over heads
        sl = slice(h * dh, (h + 1) * dh)
        s = jnp.dot(q[:, sl], k[:, sl].T,
                    preferred_element_type=jnp.float32) * scale
        # NB: an all-masked row degrades to a uniform distribution, matching
        # the PyTorch -1e10 masked_fill behaviour.
        s = jnp.where(keep, s, -1e10)
        s = s - jnp.max(s, axis=-1, keepdims=True)
        e = jnp.exp(s)
        p = e * pl.reciprocal(jnp.sum(e, axis=-1, keepdims=True), approx=True)
        head_outs.append(jnp.dot(p, v[:, sl],
                                 preferred_element_type=jnp.float32))
        if a_ref is not None:
            a_ref[0, h] = p.astype(a_ref.dtype)

    o_ref[0] = jnp.concatenate(head_outs, axis=-1).astype(o_ref.dtype)


# ----------------------------------------------------------------------------
# Pallas wrappers
# ----------------------------------------------------------------------------
def linear(x2d, w, b, relu=False):
    M, K = x2d.shape
    N = w.shape[1]
    tm = _pick_tile(M, 256, 8)
    tn = _pick_tile(N, 256, 128)
    tk = _pick_tile(K, 512, 128)
    return pl.pallas_call(
        functools.partial(_linear_kernel, relu=relu),
        out_shape=jax.ShapeDtypeStruct((M, N), x2d.dtype),
        grid=(M // tm, N // tn, K // tk),
        in_specs=[
            pl.BlockSpec((tm, tk), lambda i, j, k: (i, k)),
            pl.BlockSpec((tk, tn), lambda i, j, k: (k, j)),
            pl.BlockSpec((1, tn), lambda i, j, k: (0, j)),
        ],
        out_specs=pl.BlockSpec((tm, tn), lambda i, j, k: (i, j)),
        scratch_shapes=[pltpu.VMEM((tm, tn), jnp.float32)],
        compiler_params=pltpu.CompilerParams(
            dimension_semantics=("parallel", "parallel", "arbitrary"),
            vmem_limit_bytes=_VMEM_LIMIT,
        ),
    )(x2d, w, b.reshape(1, N))


def add_layernorm(x2d, y2d, gamma, beta, eps=1e-5):
    M, D = x2d.shape
    tm = _pick_tile(M, 512, 8)
    return pl.pallas_call(
        functools.partial(_add_layernorm_kernel, eps=eps),
        out_shape=jax.ShapeDtypeStruct((M, D), x2d.dtype),
        grid=(M // tm,),
        in_specs=[
            pl.BlockSpec((tm, D), lambda i: (i, 0)),
            pl.BlockSpec((tm, D), lambda i: (i, 0)),
            pl.BlockSpec((1, D), lambda i: (0, 0)),
            pl.BlockSpec((1, D), lambda i: (0, 0)),
        ],
        out_specs=pl.BlockSpec((tm, D), lambda i: (i, 0)),
        compiler_params=pltpu.CompilerParams(
            dimension_semantics=("parallel",),
            vmem_limit_bytes=_VMEM_LIMIT,
        ),
    )(x2d, y2d, gamma.reshape(1, D), beta.reshape(1, D))


def positionwise_ff(x, p):
    B, L, D = x.shape
    F = p["w1"].shape[1]
    M = B * L
    tm = _pick_tile(M, 256, 8)
    out = pl.pallas_call(
        _ffn_kernel,
        out_shape=jax.ShapeDtypeStruct((M, D), x.dtype),
        grid=(M // tm,),
        in_specs=[
            pl.BlockSpec((tm, D), lambda i: (i, 0)),
            pl.BlockSpec((D, F), lambda i: (0, 0)),
            pl.BlockSpec((1, F), lambda i: (0, 0)),
            pl.BlockSpec((F, D), lambda i: (0, 0)),
            pl.BlockSpec((1, D), lambda i: (0, 0)),
        ],
        out_specs=pl.BlockSpec((tm, D), lambda i: (i, 0)),
        compiler_params=pltpu.CompilerParams(
            dimension_semantics=("parallel",),
            vmem_limit_bytes=_VMEM_LIMIT,
        ),
    )(x.reshape(M, D), p["w1"], p["b1"].reshape(1, F),
      p["w2"], p["b2"].reshape(1, D))
    return out.reshape(B, L, D)


def mha_core(q, k, v, mask, scale, n_heads, return_attn):
    # q: [B, Lq, D], k/v: [B, Lk, D] (head-interleaved), mask: [B, 1, Mq, Lk].
    B, Lq, D = q.shape
    Lk = k.shape[1]
    Mq = mask.shape[2]
    dh = D // n_heads

    in_specs = [
        pl.BlockSpec((1, Lq, D), lambda b: (b, 0, 0)),
        pl.BlockSpec((1, Lk, D), lambda b: (b, 0, 0)),
        pl.BlockSpec((1, Lk, D), lambda b: (b, 0, 0)),
        pl.BlockSpec((1, 1, Mq, Lk), lambda b: (b, 0, 0, 0)),
    ]
    out_shape = [jax.ShapeDtypeStruct((B, Lq, D), q.dtype)]
    out_specs = [pl.BlockSpec((1, Lq, D), lambda b: (b, 0, 0))]
    if return_attn:
        out_shape.append(jax.ShapeDtypeStruct((B, n_heads, Lq, Lk), jnp.float32))
        out_specs.append(pl.BlockSpec((1, n_heads, Lq, Lk),
                                      lambda b: (b, 0, 0, 0)))

    results = pl.pallas_call(
        functools.partial(_mha_kernel, scale=scale, n_heads=n_heads, dh=dh),
        out_shape=tuple(out_shape),
        grid=(B,),
        in_specs=in_specs,
        out_specs=tuple(out_specs),
        compiler_params=pltpu.CompilerParams(
            dimension_semantics=("parallel",),
            vmem_limit_bytes=_VMEM_LIMIT,
        ),
    )(q, k, v, mask)

    if return_attn:
        return results[0], results[1]
    return results[0], None


# ----------------------------------------------------------------------------
# Model pieces (glue in plain JAX; hot paths go through the kernels above)
# ----------------------------------------------------------------------------
def multi_head_attention(x_q, x_kv, mask, p, n_heads, *, self_attn, return_attn):
    B, Lq, D = x_q.shape
    Lk = x_kv.shape[1]

    if self_attn:
        qkv = linear(x_q.reshape(B * Lq, D), p["w_qkv"], p["b_qkv"])  # [B*Lq, 3D]
        q = qkv[:, 0 * D:1 * D].reshape(B, Lq, D)
        k = qkv[:, 1 * D:2 * D].reshape(B, Lq, D)
        v = qkv[:, 2 * D:3 * D].reshape(B, Lq, D)
    else:
        q = linear(x_q.reshape(B * Lq, D), p["wq"], p["bq"]).reshape(B, Lq, D)
        kv = linear(x_kv.reshape(B * Lk, D), p["w_kv"], p["b_kv"])  # [B*Lk, 2D]
        k = kv[:, :D].reshape(B, Lk, D)
        v = kv[:, D:].reshape(B, Lk, D)

    scale = 1.0 / math.sqrt(D // n_heads)
    out, attn = mha_core(q, k, v, mask, scale, n_heads, return_attn)

    out = linear(out.reshape(B * Lq, D), p["wo"], p["bo"]).reshape(B, Lq, D)
    return out, attn


def decoder_layer(tgt, src, tgt_mask, src_mask, p, n_heads, want_attn):
    B, Lt, D = tgt.shape
    # self attention + residual + LN (dropout = identity)
    sa_out, _ = multi_head_attention(tgt, tgt, tgt_mask, p["self_attn"], n_heads,
                                     self_attn=True, return_attn=False)
    tgt = add_layernorm(tgt.reshape(B * Lt, D), sa_out.reshape(B * Lt, D),
                        p["self_ln_g"], p["self_ln_b"]).reshape(B, Lt, D)
    # cross attention + residual + (same!) LN, matching the PyTorch code
    ca_out, attention = multi_head_attention(tgt, src, src_mask, p["cross_attn"],
                                             n_heads, self_attn=False,
                                             return_attn=want_attn)
    tgt = add_layernorm(tgt.reshape(B * Lt, D), ca_out.reshape(B * Lt, D),
                        p["self_ln_g"], p["self_ln_b"]).reshape(B, Lt, D)
    # feedforward + residual + LN
    ff_out = positionwise_ff(tgt, p["pff"])
    out = add_layernorm(tgt.reshape(B * Lt, D), ff_out.reshape(B * Lt, D),
                        p["ff_ln_g"], p["ff_ln_b"]).reshape(B, Lt, D)
    return out, attention


def decoder_forward(tgt_tokens, src_enc, tgt_mask, src_mask, params, n_heads):
    B, Lt = tgt_tokens.shape
    D = params["tok_emb"].shape[1]
    # TransformerEmbedding: token emb * sqrt(D) + learned positional emb
    # (gather stays in plain JAX glue).
    tok = jnp.take(params["tok_emb"], tgt_tokens, axis=0) * jnp.float32(math.sqrt(D))
    pos = jnp.take(params["pos_emb"], jnp.arange(Lt), axis=0)[None, :, :]
    x = (tok + pos).astype(jnp.float32)

    attention = None
    n_layers = len(params["layers"])
    for li, lp in enumerate(params["layers"]):
        # only the last layer's cross-attention probabilities are ever
        # returned by the module -> skip the HBM writeback for all others.
        x, attn = decoder_layer(x, src_enc, tgt_mask, src_mask, lp, n_heads,
                                want_attn=(li == n_layers - 1))
        if attn is not None:
            attention = attn

    logits = linear(x.reshape(B * Lt, D), params["w_out"], params["b_out"])
    vocab = params["w_out"].shape[1]
    return logits.reshape(B, Lt, vocab), attention


# ----------------------------------------------------------------------------
# Deterministic parameter init
# ----------------------------------------------------------------------------
def init_params(key, vocab_size, hidden_dim, n_layers, n_heads, ff_dim, max_length):
    def dense(k, fan_in, fan_out):
        w = jax.random.normal(k, (fan_in, fan_out), jnp.float32) * (1.0 / math.sqrt(fan_in))
        b = jnp.zeros((fan_out,), jnp.float32)
        return w, b

    keys = jax.random.split(key, 4 + n_layers)
    params = {
        "tok_emb": jax.random.normal(keys[0], (vocab_size, hidden_dim), jnp.float32) * 0.02,
        "pos_emb": jax.random.normal(keys[1], (max_length, hidden_dim), jnp.float32) * 0.02,
        "layers": [],
    }
    w_out, b_out = dense(keys[2], hidden_dim, vocab_size)
    params["w_out"], params["b_out"] = w_out, b_out

    for li in range(n_layers):
        lk = jax.random.split(keys[4 + li], 12)

        def attn_params(ks, fuse_qkv):
            wq, bq = dense(ks[0], hidden_dim, hidden_dim)
            wk, bk = dense(ks[1], hidden_dim, hidden_dim)
            wv, bv = dense(ks[2], hidden_dim, hidden_dim)
            wo, bo = dense(ks[3], hidden_dim, hidden_dim)
            if fuse_qkv:  # self-attention: q/k/v share the same input
                return dict(
                    w_qkv=jnp.concatenate([wq, wk, wv], axis=1),
                    b_qkv=jnp.concatenate([bq, bk, bv], axis=0),
                    wo=wo, bo=bo)
            return dict(  # cross-attention: fuse only k/v (same input)
                wq=wq, bq=bq,
                w_kv=jnp.concatenate([wk, wv], axis=1),
                b_kv=jnp.concatenate([bk, bv], axis=0),
                wo=wo, bo=bo)

        w1, b1 = dense(lk[8], hidden_dim, ff_dim)
        w2, b2 = dense(lk[9], ff_dim, hidden_dim)
        layer = {
            "self_attn": attn_params(lk[0:4], fuse_qkv=True),
            "cross_attn": attn_params(lk[4:8], fuse_qkv=False),
            "pff": dict(w1=w1, b1=b1, w2=w2, b2=b2),
            "self_ln_g": jnp.ones((hidden_dim,), jnp.float32),
            "self_ln_b": jnp.zeros((hidden_dim,), jnp.float32),
            # enc_attn_layer_norm exists in the PyTorch module but is never used
            "ff_ln_g": jnp.ones((hidden_dim,), jnp.float32),
            "ff_ln_b": jnp.zeros((hidden_dim,), jnp.float32),
        }
        params["layers"].append(layer)
    return params


# ----------------------------------------------------------------------------
if __name__ == "__main__":
    vocab_size = 50
    hidden_dim = 32
    n_layers = 2
    n_heads = 4
    feedforward_dim = 64
    max_length = 16

    B, tgt_len, src_len = 2, 8, 8

    root = jax.random.PRNGKey(0)
    k_params, k_tgt, k_src = jax.random.split(root, 3)

    params = init_params(k_params, vocab_size, hidden_dim, n_layers, n_heads,
                         feedforward_dim, max_length)

    tgt_tokens = jax.random.randint(k_tgt, (B, tgt_len), 0, vocab_size, dtype=jnp.int32)
    src_enc = jax.random.normal(k_src, (B, src_len, hidden_dim), jnp.float32)

    # causal target mask [B, 1, tgt_len, tgt_len]; source mask [B, 1, 1, src_len]
    causal = jnp.tril(jnp.ones((tgt_len, tgt_len), jnp.float32))
    tgt_mask = jnp.broadcast_to(causal, (B, 1, tgt_len, tgt_len))
    src_mask = jnp.ones((B, 1, 1, src_len), jnp.float32)

    fwd = jax.jit(functools.partial(decoder_forward, n_heads=n_heads))
    logits, attention = fwd(tgt_tokens, src_enc, tgt_mask, src_mask, params)
    jax.block_until_ready((logits, attention))

    assert logits.shape == (B, tgt_len, vocab_size)
    assert attention.shape == (B, n_heads, tgt_len, src_len)
    assert bool(jnp.all(jnp.isfinite(logits)))
    assert bool(jnp.all(jnp.isfinite(attention)))
    print("KERNEL_OK")
</pallas_src>

<mosaic_0001>
module attributes {stable_mosaic.version = 11 : i64} {
  func.func @_linear_kernel(%arg0: i32, %arg1: i32, %arg2: i32, %arg3: memref<16x32xf32, #tpu.memory_space<vmem>>, %arg4: memref<32x64xf32, #tpu.memory_space<vmem>>, %arg5: memref<1x64xf32, #tpu.memory_space<vmem>>, %arg6: memref<16x64xf32, #tpu.memory_space<vmem>>, %arg7: memref<16x64xf32, #tpu.memory_space<vmem>>) attributes {dimension_semantics = [#tpu.dimension_semantics<parallel>, #tpu.dimension_semantics<parallel>, #tpu.dimension_semantics<arbitrary>], iteration_bounds = array<i64: 1, 1, 1>, scalar_prefetch = 0 : i64, scratch_operands = 1 : i64, tpu.core_type = #tpu.core_type<tc>, window_params = [{transform_indices = @transform_0, window_bounds = array<i64: 16, 32>}, {transform_indices = @transform_1, window_bounds = array<i64: 32, 64>}, {transform_indices = @transform_2, window_bounds = array<i64: 1, 64>}, {transform_indices = @transform_3, window_bounds = array<i64: 16, 64>}]} {
    %c0_i32 = arith.constant 0 : i32
    %0 = arith.cmpi eq, %arg2, %c0_i32 : i32
    %1 = arith.extui %0 : i1 to i32
    %c0_i32_0 = arith.constant 0 : i32
    %2 = arith.cmpi ne, %1, %c0_i32_0 : i32
    scf.if %2 {
      %cst_10 = arith.constant 0.000000e+00 : f32
      %12 = vector.broadcast %cst_10 : f32 to vector<16x64xf32>
      %c0_11 = arith.constant 0 : index
      %c0_12 = arith.constant 0 : index
      %13 = vector.load %arg7[%c0_11, %c0_12] : memref<16x64xf32, #tpu.memory_space<vmem>>, vector<16x64xf32>
      tpu.vector_store %arg7[%c0_11, %c0_12], %12 {strides = array<i32>} : memref<16x64xf32, #tpu.memory_space<vmem>>, vector<16x64xf32>,
    } else {
    }
    %c0 = arith.constant 0 : index
    %c0_1 = arith.constant 0 : index
    %3 = vector.load %arg7[%c0, %c0_1] : memref<16x64xf32, #tpu.memory_space<vmem>>, vector<16x64xf32>
    %c0_2 = arith.constant 0 : index
    %c0_3 = arith.constant 0 : index
    %4 = vector.load %arg3[%c0_2, %c0_3] : memref<16x32xf32, #tpu.memory_space<vmem>>, vector<16x32xf32>
    %c0_4 = arith.constant 0 : index
    %c0_5 = arith.constant 0 : index
    %5 = vector.load %arg4[%c0_4, %c0_5] : memref<32x64xf32, #tpu.memory_space<vmem>>, vector<32x64xf32>
    %cst = arith.constant dense<0.000000e+00> : vector<16x64xf32>
    %6 = tpu.matmul %4, %5, %cst {dimension_numbers = #tpu.dot_dimension_numbers<[1], [0], [0], [1], [0, 0, 1, 1], [], []>} : vector<16x32xf32>, vector<32x64xf32>, vector<16x64xf32> -> vector<16x64xf32>
    %7 = arith.addf %3, %6 : vector<16x64xf32>
    %c0_6 = arith.constant 0 : index
    %c0_7 = arith.constant 0 : index
    %8 = vector.load %arg7[%c0_6, %c0_7] : memref<16x64xf32, #tpu.memory_space<vmem>>, vector<16x64xf32>
    tpu.vector_store %arg7[%c0_6, %c0_7], %7 {strides = array<i32>} : memref<16x64xf32, #tpu.memory_space<vmem>>, vector<16x64xf32>,
    %c0_i32_8 = arith.constant 0 : i32
    %9 = arith.cmpi eq, %arg2, %c0_i32_8 : i32
    %10 = arith.extui %9 : i1 to i32
    %c0_i32_9 = arith.constant 0 : i32
    %11 = arith.cmpi ne, %10, %c0_i32_9 : i32
    scf.if %11 {
      %c0_10 = arith.constant 0 : index
      %c0_11 = arith.constant 0 : index
      %12 = vector.load %arg7[%c0_10, %c0_11] : memref<16x64xf32, #tpu.memory_space<vmem>>, vector<16x64xf32>
      %c0_12 = arith.constant 0 : index
      %c0_13 = arith.constant 0 : index
      %13 = vector.load %arg5[%c0_12, %c0_13] : memref<1x64xf32, #tpu.memory_space<vmem>>, vector<1x64xf32>
      %14 = vector.broadcast %13 : vector<1x64xf32> to vector<16x64xf32>
      %15 = arith.addf %12, %14 : vector<16x64xf32>
      %c0_14 = arith.constant 0 : index
      %c0_15 = arith.constant 0 : index
      %16 = vector.load %arg6[%c0_14, %c0_15] : memref<16x64xf32, #tpu.memory_space<vmem>>, vector<16x64xf32>
      tpu.vector_store %arg6[%c0_14, %c0_15], %15 {strides = array<i32>} : memref<16x64xf32, #tpu.memory_space<vmem>>, vector<16x64xf32>,
    } else {
    }
    return
  }
  func.func @transform_0(%arg0: i32, %arg1: i32, %arg2: i32) -> (i32, i32) {
    %c0_i32 = arith.constant 0 : i32
    return %arg0, %arg2 : i32, i32
  }
  func.func @transform_1(%arg0: i32, %arg1: i32, %arg2: i32) -> (i32, i32) {
    %c0_i32 = arith.constant 0 : i32
    return %arg2, %arg1 : i32, i32
  }
  func.func @transform_2(%arg0: i32, %arg1: i32, %arg2: i32) -> (i32, i32) {
    %c0_i32 = arith.constant 0 : i32
    %c0_i32_0 = arith.constant 0 : i32
    return %c0_i32, %arg1 : i32, i32
  }
  func.func @transform_3(%arg0: i32, %arg1: i32, %arg2: i32) -> (i32, i32) {
    %c0_i32 = arith.constant 0 : i32
    return %arg0, %arg1 : i32, i32
  }
}

module attributes {stable_mosaic.version = 11 : i64} {
  func.func @_linear_kernel(%arg0: i32, %arg1: i32, %arg2: i32, %arg3: memref<16x32xf32, #tpu.memory_space<vmem>>, %arg4: memref<32x96xf32, #tpu.memory_space<vmem>>, %arg5: memref<1x96xf32, #tpu.memory_space<vmem>>, %arg6: memref<16x96xf32, #tpu.memory_space<vmem>>, %arg7: memref<16x96xf32, #tpu.memory_space<vmem>>) attributes {dimension_semantics = [#tpu.dimension_semantics<parallel>, #tpu.dimension_semantics<parallel>, #tpu.dimension_semantics<arbitrary>], iteration_bounds = array<i64: 1, 1, 1>, scalar_prefetch = 0 : i64, scratch_operands = 1 : i64, tpu.core_type = #tpu.core_type<tc>, window_params = [{transform_indices = @transform_0, window_bounds = array<i64: 16, 32>}, {transform_indices = @transform_1, window_bounds = array<i64: 32, 96>}, {transform_indices = @transform_2, window_bounds = array<i64: 1, 96>}, {transform_indices = @transform_3, window_bounds = array<i64: 16, 96>}]} {
    %c0_i32 = arith.constant 0 : i32
    %0 = arith.cmpi eq, %arg2, %c0_i32 : i32
    %1 = arith.extui %0 : i1 to i32
    %c0_i32_0 = arith.constant 0 : i32
    %2 = arith.cmpi ne, %1, %c0_i32_0 : i32
    scf.if %2 {
      %cst_10 = arith.constant 0.000000e+00 : f32
      %12 = vector.broadcast %cst_10 : f32 to vector<16x96xf32>
      %c0_11 = arith.constant 0 : index
      %c0_12 = arith.constant 0 : index
      %13 = vector.load %arg7[%c0_11, %c0_12] : memref<16x96xf32, #tpu.memory_space<vmem>>, vector<16x96xf32>
      tpu.vector_store %arg7[%c0_11, %c0_12], %12 {strides = array<i32>} : memref<16x96xf32, #tpu.memory_space<vmem>>, vector<16x96xf32>,
    } else {
    }
    %c0 = arith.constant 0 : index
    %c0_1 = arith.constant 0 : index
    %3 = vector.load %arg7[%c0, %c0_1] : memref<16x96xf32, #tpu.memory_space<vmem>>, vector<16x96xf32>
    %c0_2 = arith.constant 0 : index
    %c0_3 = arith.constant 0 : index
    %4 = vector.load %arg3[%c0_2, %c0_3] : memref<16x32xf32, #tpu.memory_space<vmem>>, vector<16x32xf32>
    %c0_4 = arith.constant 0 : index
    %c0_5 = arith.constant 0 : index
    %5 = vector.load %arg4[%c0_4, %c0_5] : memref<32x96xf32, #tpu.memory_space<vmem>>, vector<32x96xf32>
    %cst = arith.constant dense<0.000000e+00> : vector<16x96xf32>
    %6 = tpu.matmul %4, %5, %cst {dimension_numbers = #tpu.dot_dimension_numbers<[1], [0], [0], [1], [0, 0, 1, 1], [], []>} : vector<16x32xf32>, vector<32x96xf32>, vector<16x96xf32> -> vector<16x96xf32>
    %7 = arith.addf %3, %6 : vector<16x96xf32>
    %c0_6 = arith.constant 0 : index
    %c0_7 = arith.constant 0 : index
    %8 = vector.load %arg7[%c0_6, %c0_7] : memref<16x96xf32, #tpu.memory_space<vmem>>, vector<16x96xf32>
    tpu.vector_store %arg7[%c0_6, %c0_7], %7 {strides = array<i32>} : memref<16x96xf32, #tpu.memory_space<vmem>>, vector<16x96xf32>,
    %c0_i32_8 = arith.constant 0 : i32
    %9 = arith.cmpi eq, %arg2, %c0_i32_8 : i32
    %10 = arith.extui %9 : i1 to i32
    %c0_i32_9 = arith.constant 0 : i32
    %11 = arith.cmpi ne, %10, %c0_i32_9 : i32
    scf.if %11 {
      %c0_10 = arith.constant 0 : index
      %c0_11 = arith.constant 0 : index
      %12 = vector.load %arg7[%c0_10, %c0_11] : memref<16x96xf32, #tpu.memory_space<vmem>>, vector<16x96xf32>
      %c0_12 = arith.constant 0 : index
      %c0_13 = arith.constant 0 : index
      %13 = vector.load %arg5[%c0_12, %c0_13] : memref<1x96xf32, #tpu.memory_space<vmem>>, vector<1x96xf32>
      %14 = vector.broadcast %13 : vector<1x96xf32> to vector<16x96xf32>
      %15 = arith.addf %12, %14 : vector<16x96xf32>
      %c0_14 = arith.constant 0 : index
      %c0_15 = arith.constant 0 : index
      %16 = vector.load %arg6[%c0_14, %c0_15] : memref<16x96xf32, #tpu.memory_space<vmem>>, vector<16x96xf32>
      tpu.vector_store %arg6[%c0_14, %c0_15], %15 {strides = array<i32>} : memref<16x96xf32, #tpu.memory_space<vmem>>, vector<16x96xf32>,
    } else {
    }
    return
  }
  func.func @transform_0(%arg0: i32, %arg1: i32, %arg2: i32) -> (i32, i32) {
    %c0_i32 = arith.constant 0 : i32
    return %arg0, %arg2 : i32, i32
  }
  func.func @transform_1(%arg0: i32, %arg1: i32, %arg2: i32) -> (i32, i32) {
    %c0_i32 = arith.constant 0 : i32
    return %arg2, %arg1 : i32, i32
  }
  func.func @transform_2(%arg0: i32, %arg1: i32, %arg2: i32) -> (i32, i32) {
    %c0_i32 = arith.constant 0 : i32
    %c0_i32_0 = arith.constant 0 : i32
    return %c0_i32, %arg1 : i32, i32
  }
  func.func @transform_3(%arg0: i32, %arg1: i32, %arg2: i32) -> (i32, i32) {
    %c0_i32 = arith.constant 0 : i32
    return %arg0, %arg1 : i32, i32
  }
}

module attributes {stable_mosaic.version = 11 : i64} {
  func.func @_linear_kernel(%arg0: i32, %arg1: i32, %arg2: i32, %arg3: memref<16x32xf32, #tpu.memory_space<vmem>>, %arg4: memref<32x32xf32, #tpu.memory_space<vmem>>, %arg5: memref<1x32xf32, #tpu.memory_space<vmem>>, %arg6: memref<16x32xf32, #tpu.memory_space<vmem>>, %arg7: memref<16x32xf32, #tpu.memory_space<vmem>>) attributes {dimension_semantics = [#tpu.dimension_semantics<parallel>, #tpu.dimension_semantics<parallel>, #tpu.dimension_semantics<arbitrary>], iteration_bounds = array<i64: 1, 1, 1>, scalar_prefetch = 0 : i64, scratch_operands = 1 : i64, tpu.core_type = #tpu.core_type<tc>, window_params = [{transform_indices = @transform_0, window_bounds = array<i64: 16, 32>}, {transform_indices = @transform_1, window_bounds = array<i64: 32, 32>}, {transform_indices = @transform_2, window_bounds = array<i64: 1, 32>}, {transform_indices = @transform_3, window_bounds = array<i64: 16, 32>}]} {
    %c0_i32 = arith.constant 0 : i32
    %0 = arith.cmpi eq, %arg2, %c0_i32 : i32
    %1 = arith.extui %0 : i1 to i32
    %c0_i32_0 = arith.constant 0 : i32
    %2 = arith.cmpi ne, %1, %c0_i32_0 : i32
    scf.if %2 {
      %cst_10 = arith.constant 0.000000e+00 : f32
      %12 = vector.broadcast %cst_10 : f32 to vector<16x32xf32>
      %c0_11 = arith.constant 0 : index
      %c0_12 = arith.constant 0 : index
      %13 = vector.load %arg7[%c0_11, %c0_12] : memref<16x32xf32, #tpu.memory_space<vmem>>, vector<16x32xf32>
      tpu.vector_store %arg7[%c0_11, %c0_12], %12 {strides = array<i32>} : memref<16x32xf32, #tpu.memory_space<vmem>>, vector<16x32xf32>,
    } else {
    }
    %c0 = arith.constant 0 : index
    %c0_1 = arith.constant 0 : index
    %3 = vector.load %arg7[%c0, %c0_1] : memref<16x32xf32, #tpu.memory_space<vmem>>, vector<16x32xf32>
    %c0_2 = arith.constant 0 : index
    %c0_3 = arith.constant 0 : index
    %4 = vector.load %arg3[%c0_2, %c0_3] : memref<16x32xf32, #tpu.memory_space<vmem>>, vector<16x32xf32>
    %c0_4 = arith.constant 0 : index
    %c0_5 = arith.constant 0 : index
    %5 = vector.load %arg4[%c0_4, %c0_5] : memref<32x32xf32, #tpu.memory_space<vmem>>, vector<32x32xf32>
    %cst = arith.constant dense<0.000000e+00> : vector<16x32xf32>
    %6 = tpu.matmul %4, %5, %cst {dimension_numbers = #tpu.dot_dimension_numbers<[1], [0], [0], [1], [0, 0, 1, 1], [], []>} : vector<16x32xf32>, vector<32x32xf32>, vector<16x32xf32> -> vector<16x32xf32>
    %7 = arith.addf %3, %6 : vector<16x32xf32>
    %c0_6 = arith.constant 0 : index
    %c0_7 = arith.constant 0 : index
    %8 = vector.load %arg7[%c0_6, %c0_7] : memref<16x32xf32, #tpu.memory_space<vmem>>, vector<16x32xf32>
    tpu.vector_store %arg7[%c0_6, %c0_7], %7 {strides = array<i32>} : memref<16x32xf32, #tpu.memory_space<vmem>>, vector<16x32xf32>,
    %c0_i32_8 = arith.constant 0 : i32
    %9 = arith.cmpi eq, %arg2, %c0_i32_8 : i32
    %10 = arith.extui %9 : i1 to i32
    %c0_i32_9 = arith.constant 0 : i32
    %11 = arith.cmpi ne, %10, %c0_i32_9 : i32
    scf.if %11 {
      %c0_10 = arith.constant 0 : index
      %c0_11 = arith.constant 0 : index
      %12 = vector.load %arg7[%c0_10, %c0_11] : memref<16x32xf32, #tpu.memory_space<vmem>>, vector<16x32xf32>
      %c0_12 = arith.constant 0 : index
      %c0_13 = arith.constant 0 : index
      %13 = vector.load %arg5[%c0_12, %c0_13] : memref<1x32xf32, #tpu.memory_space<vmem>>, vector<1x32xf32>
      %14 = vector.broadcast %13 : vector<1x32xf32> to vector<16x32xf32>
      %15 = arith.addf %12, %14 : vector<16x32xf32>
      %c0_14 = arith.constant 0 : index
      %c0_15 = arith.constant 0 : index
      %16 = vector.load %arg6[%c0_14, %c0_15] : memref<16x32xf32, #tpu.memory_space<vmem>>, vector<16x32xf32>
      tpu.vector_store %arg6[%c0_14, %c0_15], %15 {strides = array<i32>} : memref<16x32xf32, #tpu.memory_space<vmem>>, vector<16x32xf32>,
    } else {
    }
    return
  }
  func.func @transform_0(%arg0: i32, %arg1: i32, %arg2: i32) -> (i32, i32) {
    %c0_i32 = arith.constant 0 : i32
    return %arg0, %arg2 : i32, i32
  }
  func.func @transform_1(%arg0: i32, %arg1: i32, %arg2: i32) -> (i32, i32) {
    %c0_i32 = arith.constant 0 : i32
    return %arg2, %arg1 : i32, i32
  }
  func.func @transform_2(%arg0: i32, %arg1: i32, %arg2: i32) -> (i32, i32) {
    %c0_i32 = arith.constant 0 : i32
    %c0_i32_0 = arith.constant 0 : i32
    return %c0_i32, %arg1 : i32, i32
  }
  func.func @transform_3(%arg0: i32, %arg1: i32, %arg2: i32) -> (i32, i32) {
    %c0_i32 = arith.constant 0 : i32
    return %arg0, %arg1 : i32, i32
  }
}

module attributes {stable_mosaic.version = 11 : i64} {
  func.func @_mha_kernel(%arg0: i32, %arg1: memref<1x8x32xf32, #tpu.memory_space<vmem>>, %arg2: memref<1x8x32xf32, #tpu.memory_space<vmem>>, %arg3: memref<1x8x32xf32, #tpu.memory_space<vmem>>, %arg4: memref<1x1x8x8xf32, #tpu.memory_space<vmem>>, %arg5: memref<1x8x32xf32, #tpu.memory_space<vmem>>) attributes {dimension_semantics = [#tpu.dimension_semantics<parallel>], iteration_bounds = array<i64: 2>, scalar_prefetch = 0 : i64, scratch_operands = 0 : i64, tpu.core_type = #tpu.core_type<tc>, window_params = [{transform_indices = @transform_0, window_bounds = array<i64: 1, 8, 32>}, {transform_indices = @transform_1, window_bounds = array<i64: 1, 8, 32>}, {transform_indices = @transform_2, window_bounds = array<i64: 1, 8, 32>}, {transform_indices = @transform_3, window_bounds = array<i64: 1, 1, 8, 8>}, {transform_indices = @transform_4, window_bounds = array<i64: 1, 8, 32>}]} {
    %c0 = arith.constant 0 : index
    %c0_0 = arith.constant 0 : index
    %c0_1 = arith.constant 0 : index
    %0 = vector.load %arg1[%c0, %c0_0, %c0_1] : memref<1x8x32xf32, #tpu.memory_space<vmem>>, vector<1x8x32xf32>
    %1 = vector.shape_cast %0 : vector<1x8x32xf32> to vector<8x32xf32>
    %c0_2 = arith.constant 0 : index
    %c0_3 = arith.constant 0 : index
    %c0_4 = arith.constant 0 : index
    %2 = vector.load %arg2[%c0_2, %c0_3, %c0_4] : memref<1x8x32xf32, #tpu.memory_space<vmem>>, vector<1x8x32xf32>
    %3 = vector.shape_cast %2 : vector<1x8x32xf32> to vector<8x32xf32>
    %c0_5 = arith.constant 0 : index
    %c0_6 = arith.constant 0 : index
    %c0_7 = arith.constant 0 : index
    %4 = vector.load %arg3[%c0_5, %c0_6, %c0_7] : memref<1x8x32xf32, #tpu.memory_space<vmem>>, vector<1x8x32xf32>
    %5 = vector.shape_cast %4 : vector<1x8x32xf32> to vector<8x32xf32>
    %c0_8 = arith.constant 0 : index
    %c0_9 = arith.constant 0 : index
    %c0_10 = arith.constant 0 : index
    %c0_11 = arith.constant 0 : index
    %6 = vector.load %arg4[%c0_8, %c0_9, %c0_10, %c0_11] : memref<1x1x8x8xf32, #tpu.memory_space<vmem>>, vector<1x1x8x8xf32>
    %7 = vector.shape_cast %6 : vector<1x1x8x8xf32> to vector<8x8xf32>
    %cst = arith.constant 0.000000e+00 : f32
    %8 = vector.broadcast %cst : f32 to vector<8x8xf32>
    %9 = arith.cmpf ogt, %7, %8 : vector<8x8xf32>
    %10 = vector.extract_strided_slice %1 {offsets = [0, 0], sizes = [8, 8], strides = [1, 1]} : vector<8x32xf32> to vector<8x8xf32>
    %11 = vector.extract_strided_slice %3 {offsets = [0, 0], sizes = [8, 8], strides = [1, 1]} : vector<8x32xf32> to vector<8x8xf32>
    %12 = tpu.transpose %11, [1, 0] : vector<8x8xf32> -> vector<8x8xf32>
    %cst_12 = arith.constant dense<0.000000e+00> : vector<8x8xf32>
    %13 = tpu.matmul %10, %12, %cst_12 {dimension_numbers = #tpu.dot_dimension_numbers<[1], [0], [0], [1], [0, 0, 1, 1], [], []>} : vector<8x8xf32>, vector<8x8xf32>, vector<8x8xf32> -> vector<8x8xf32>
    %cst_13 = arith.constant 0.353553385 : f32
    %14 = vector.broadcast %cst_13 : f32 to vector<8x8xf32>
    %15 = arith.mulf %13, %14 : vector<8x8xf32>
    %cst_14 = arith.constant -1.000000e+10 : f32
    %16 = vector.broadcast %cst_14 : f32 to vector<8x8xf32>
    %17 = arith.select %9, %15, %16 : vector<8x8xi1>, vector<8x8xf32>
    %cst_15 = arith.constant dense<0xFF800000> : vector<8xf32>
    %18 = vector.multi_reduction <maximumf>, %17, %cst_15 [1] : vector<8x8xf32> to vector<8xf32>
    %19 = vector.shape_cast %18 : vector<8xf32> to vector<8x1xf32>
    %20 = vector.broadcast %19 : vector<8x1xf32> to vector<8x8xf32>
    %21 = arith.subf %17, %20 : vector<8x8xf32>
    %22 = math.exp %21 : vector<8x8xf32>
    %cst_16 = arith.constant dense<0.000000e+00> : vector<8xf32>
    %23 = vector.multi_reduction <add>, %22, %cst_16 [1] : vector<8x8xf32> to vector<8xf32>
    %24 = vector.shape_cast %23 : vector<8xf32> to vector<8x1xf32>
    %25 = tpu.reciprocal %24 {approx = true} : vector<8x1xf32> -> vector<8x1xf32>
    %26 = vector.broadcast %25 : vector<8x1xf32> to vector<8x8xf32>
    %27 = arith.mulf %22, %26 : vector<8x8xf32>
    %28 = vector.extract_strided_slice %5 {offsets = [0, 0], sizes = [8, 8], strides = [1, 1]} : vector<8x32xf32> to vector<8x8xf32>
    %cst_17 = arith.constant dense<0.000000e+00> : vector<8x8xf32>
    %29 = tpu.matmul %27, %28, %cst_17 {dimension_numbers = #tpu.dot_dimension_numbers<[1], [0], [0], [1], [0, 0, 1, 1], [], []>} : vector<8x8xf32>, vector<8x8xf32>, vector<8x8xf32> -> vector<8x8xf32>
    %30 = vector.extract_strided_slice %1 {offsets = [0, 8], sizes = [8, 8], strides = [1, 1]} : vector<8x32xf32> to vector<8x8xf32>
    %31 = vector.extract_strided_slice %3 {offsets = [0, 8], sizes = [8, 8], strides = [1, 1]} : vector<8x32xf32> to vector<8x8xf32>
    %32 = tpu.transpose %31, [1, 0] : vector<8x8xf32> -> vector<8x8xf32>
    %cst_18 = arith.constant dense<0.000000e+00> : vector<8x8xf32>
    %33 = tpu.matmul %30, %32, %cst_18 {dimension_numbers = #tpu.dot_dimension_numbers<[1], [0], [0], [1], [0, 0, 1, 1], [], []>} : vector<8x8xf32>, vector<8x8xf32>, vector<8x8xf32> -> vector<8x8xf32>
    %cst_19 = arith.constant 0.353553385 : f32
    %34 = vector.broadcast %cst_19 : f32 to vector<8x8xf32>
    %35 = arith.mulf %33, %34 : vector<8x8xf32>
    %cst_20 = arith.constant -1.000000e+10 : f32
    %36 = vector.broadcast %cst_20 : f32 to vector<8x8xf32>
    %37 = arith.select %9, %35, %36 : vector<8x8xi1>, vector<8x8xf32>
    %cst_21 = arith.constant dense<0xFF800000> : vector<8xf32>
    %38 = vector.multi_reduction <maximumf>, %37, %cst_21 [1] : vector<8x8xf32> to vector<8xf32>
    %39 = vector.shape_cast %38 : vector<8xf32> to vector<8x1xf32>
    %40 = vector.broadcast %39 : vector<8x1xf32> to vector<8x8xf32>
    %41 = arith.subf %37, %40 : vector<8x8xf32>
    %42 = math.exp %41 : vector<8x8xf32>
    %cst_22 = arith.constant dense<0.000000e+00> : vector<8xf32>
    %43 = vector.multi_reduction <add>, %42, %cst_22 [1] : vector<8x8xf32> to vector<8xf32>
    %44 = vector.shape_cast %43 : vector<8xf32> to vector<8x1xf32>
    %45 = tpu.reciprocal %44 {approx = true} : vector<8x1xf32> -> vector<8x1xf32>
    %46 = vector.broadcast %45 : vector<8x1xf32> to vector<8x8xf32>
    %47 = arith.mulf %42, %46 : vector<8x8xf32>
    %48 = vector.extract_strided_slice %5 {offsets = [0, 8], sizes = [8, 8], strides = [1, 1]} : vector<8x32xf32> to vector<8x8xf32>
    %cst_23 = arith.constant dense<0.000000e+00> : vector<8x8xf32>
    %49 = tpu.matmul %47, %48, %cst_23 {dimension_numbers = #tpu.dot_dimension_numbers<[1], [0], [0], [1], [0, 0, 1, 1], [], []>} : vector<8x8xf32>, vector<8x8xf32>, vector<8x8xf32> -> vector<8x8xf32>
    %50 = vector.extract_strided_slice %1 {offsets = [0, 16], sizes = [8, 8], strides = [1, 1]} : vector<8x32xf32> to vector<8x8xf32>
    %51 = vector.extract_strided_slice %3 {offsets = [0, 16], sizes = [8, 8], strides = [1, 1]} : vector<8x32xf32> to vector<8x8xf32>
    %52 = tpu.transpose %51, [1, 0] : vector<8x8xf32> -> vector<8x8xf32>
    %cst_24 = arith.constant dense<0.000000e+00> : vector<8x8xf32>
    %53 = tpu.matmul %50, %52, %cst_24 {dimension_numbers = #tpu.dot_dimension_numbers<[1], [0], [0], [1], [0, 0, 1, 1], [], []>} : vector<8x8xf32>, vector<8x8xf32>, vector<8x8xf32> -> vector<8x8xf32>
    %cst_25 = arith.constant 0.353553385 : f32
    %54 = vector.broadcast %cst_25 : f32 to vector<8x8xf32>
    %55 = arith.mulf %53, %54 : vector<8x8xf32>
    %cst_26 = arith.constant -1.000000e+10 : f32
    %56 = vector.broadcast %cst_26 : f32 to vector<8x8xf32>
    %57 = arith.select %9, %55, %56 : vector<8x8xi1>, vector<8x8xf32>
    %cst_27 = arith.constant dense<0xFF800000> : vector<8xf32>
    %58 = vector.multi_reduction <maximumf>, %57, %cst_27 [1] : vector<8x8xf32> to vector<8xf32>
    %59 = vector.shape_cast %58 : vector<8xf32> to vector<8x1xf32>
    %60 = vector.broadcast %59 : vector<8x1xf32> to vector<8x8xf32>
    %61 = arith.subf %57, %60 : vector<8x8xf32>
    %62 = math.exp %61 : vector<8x8xf32>
    %cst_28 = arith.constant dense<0.000000e+00> : vector<8xf32>
    %63 = vector.multi_reduction <add>, %62, %cst_28 [1] : vector<8x8xf32> to vector<8xf32>
    %64 = vector.shape_cast %63 : vector<8xf32> to vector<8x1xf32>
    %65 = tpu.reciprocal %64 {approx = true} : vector<8x1xf32> -> vector<8x1xf32>
    %66 = vector.broadcast %65 : vector<8x1xf32> to vector<8x8xf32>
    %67 = arith.mulf %62, %66 : vector<8x8xf32>
    %68 = vector.extract_strided_slice %5 {offsets = [0, 16], sizes = [8, 8], strides = [1, 1]} : vector<8x32xf32> to vector<8x8xf32>
    %cst_29 = arith.constant dense<0.000000e+00> : vector<8x8xf32>
    %69 = tpu.matmul %67, %68, %cst_29 {dimension_numbers = #tpu.dot_dimension_numbers<[1], [0], [0], [1], [0, 0, 1, 1], [], []>} : vector<8x8xf32>, vector<8x8xf32>, vector<8x8xf32> -> vector<8x8xf32>
    %70 = vector.extract_strided_slice %1 {offsets = [0, 24], sizes = [8, 8], strides = [1, 1]} : vector<8x32xf32> to vector<8x8xf32>
    %71 = vector.extract_strided_slice %3 {offsets = [0, 24], sizes = [8, 8], strides = [1, 1]} : vector<8x32xf32> to vector<8x8xf32>
    %72 = tpu.transpose %71, [1, 0] : vector<8x8xf32> -> vector<8x8xf32>
    %cst_30 = arith.constant dense<0.000000e+00> : vector<8x8xf32>
    %73 = tpu.matmul %70, %72, %cst_30 {dimension_numbers = #tpu.dot_dimension_numbers<[1], [0], [0], [1], [0, 0, 1, 1], [], []>} : vector<8x8xf32>, vector<8x8xf32>, vector<8x8xf32> -> vector<8x8xf32>
    %cst_31 = arith.constant 0.353553385 : f32
    %74 = vector.broadcast %cst_31 : f32 to vector<8x8xf32>
    %75 = arith.mulf %73, %74 : vector<8x8xf32>
    %cst_32 = arith.constant -1.000000e+10 : f32
    %76 = vector.broadcast %cst_32 : f32 to vector<8x8xf32>
    %77 = arith.select %9, %75, %76 : vector<8x8xi1>, vector<8x8xf32>
    %cst_33 = arith.constant dense<0xFF800000> : vector<8xf32>
    %78 = vector.multi_reduction <maximumf>, %77, %cst_33 [1] : vector<8x8xf32> to vector<8xf32>
    %79 = vector.shape_cast %78 : vector<8xf32> to vector<8x1xf32>
    %80 = vector.broadcast %79 : vector<8x1xf32> to vector<8x8xf32>
    %81 = arith.subf %77, %80 : vector<8x8xf32>
    %82 = math.exp %81 : vector<8x8xf32>
    %cst_34 = arith.constant dense<0.000000e+00> : vector<8xf32>
    %83 = vector.multi_reduction <add>, %82, %cst_34 [1] : vector<8x8xf32> to vector<8xf32>
    %84 = vector.shape_cast %83 : vector<8xf32> to vector<8x1xf32>
    %85 = tpu.reciprocal %84 {approx = true} : vector<8x1xf32> -> vector<8x1xf32>
    %86 = vector.broadcast %85 : vector<8x1xf32> to vector<8x8xf32>
    %87 = arith.mulf %82, %86 : vector<8x8xf32>
    %88 = vector.extract_strided_slice %5 {offsets = [0, 24], sizes = [8, 8], strides = [1, 1]} : vector<8x32xf32> to vector<8x8xf32>
    %cst_35 = arith.constant dense<0.000000e+00> : vector<8x8xf32>
    %89 = tpu.matmul %87, %88, %cst_35 {dimension_numbers = #tpu.dot_dimension_numbers<[1], [0], [0], [1], [0, 0, 1, 1], [], []>} : vector<8x8xf32>, vector<8x8xf32>, vector<8x8xf32> -> vector<8x8xf32>
    %90 = tpu.concatenate %29, %49, %69, %89 in 1 : vector<8x8xf32>, vector<8x8xf32>, vector<8x8xf32>, vector<8x8xf32> -> vector<8x32xf32>
    %c0_36 = arith.constant 0 : index
    %c0_37 = arith.constant 0 : index
    %c0_38 = arith.constant 0 : index
    %91 = vector.load %arg5[%c0_36, %c0_37, %c0_38] : memref<1x8x32xf32, #tpu.memory_space<vmem>>, vector<1x8x32xf32>
    %92 = vector.shape_cast %91 : vector<1x8x32xf32> to vector<8x32xf32>
    %93 = vector.shape_cast %90 : vector<8x32xf32> to vector<1x8x32xf32>
    tpu.vector_store %arg5[%c0_36, %c0_37, %c0_38], %93 {strides = array<i32>} : memref<1x8x32xf32, #tpu.memory_space<vmem>>, vector<1x8x32xf32>,
    return
  }
  func.func @transform_0(%arg0: i32) -> (i32, i32, i32) {
    %c0_i32 = arith.constant 0 : i32
    %c0_i32_0 = arith.constant 0 : i32
    %c0_i32_1 = arith.constant 0 : i32
    return %arg0, %c0_i32, %c0_i32_0 : i32, i32, i32
  }
  func.func @transform_1(%arg0: i32) -> (i32, i32, i32) {
    %c0_i32 = arith.constant 0 : i32
    %c0_i32_0 = arith.constant 0 : i32
    %c0_i32_1 = arith.constant 0 : i32
    return %arg0, %c0_i32, %c0_i32_0 : i32, i32, i32
  }
  func.func @transform_2(%arg0: i32) -> (i32, i32, i32) {
    %c0_i32 = arith.constant 0 : i32
    %c0_i32_0 = arith.constant 0 : i32
    %c0_i32_1 = arith.constant 0 : i32
    return %arg0, %c0_i32, %c0_i32_0 : i32, i32, i32
  }
  func.func @transform_3(%arg0: i32) -> (i32, i32, i32, i32) {
    %c0_i32 = arith.constant 0 : i32
    %c0_i32_0 = arith.constant 0 : i32
    %c0_i32_1 = arith.constant 0 : i32
    %c0_i32_2 = arith.constant 0 : i32
    return %arg0, %c0_i32, %c0_i32_0, %c0_i32_1 : i32, i32, i32, i32
  }
  func.func @transform_4(%arg0: i32) -> (i32, i32, i32) {
    %c0_i32 = arith.constant 0 : i32
    %c0_i32_0 = arith.constant 0 : i32
    %c0_i32_1 = arith.constant 0 : i32
    return %arg0, %c0_i32, %c0_i32_0 : i32, i32, i32
  }
}

module attributes {stable_mosaic.version = 11 : i64} {
  func.func @_add_layernorm_kernel(%arg0: i32, %arg1: memref<16x32xf32, #tpu.memory_space<vmem>>, %arg2: memref<16x32xf32, #tpu.memory_space<vmem>>, %arg3: memref<1x32xf32, #tpu.memory_space<vmem>>, %arg4: memref<1x32xf32, #tpu.memory_space<vmem>>, %arg5: memref<16x32xf32, #tpu.memory_space<vmem>>) attributes {dimension_semantics = [#tpu.dimension_semantics<parallel>], iteration_bounds = array<i64: 1>, scalar_prefetch = 0 : i64, scratch_operands = 0 : i64, tpu.core_type = #tpu.core_type<tc>, window_params = [{transform_indices = @transform_0, window_bounds = array<i64: 16, 32>}, {transform_indices = @transform_1, window_bounds = array<i64: 16, 32>}, {pipeline_mode = #tpu.pipeline_mode<synchronous>, transform_indices = @transform_2, window_bounds = array<i64: 1, 32>}, {pipeline_mode = #tpu.pipeline_mode<synchronous>, transform_indices = @transform_3, window_bounds = array<i64: 1, 32>}, {transform_indices = @transform_4, window_bounds = array<i64: 16, 32>}]} {
    %c0 = arith.constant 0 : index
    %c0_0 = arith.constant 0 : index
    %0 = vector.load %arg1[%c0, %c0_0] : memref<16x32xf32, #tpu.memory_space<vmem>>, vector<16x32xf32>
    %c0_1 = arith.constant 0 : index
    %c0_2 = arith.constant 0 : index
    %1 = vector.load %arg2[%c0_1, %c0_2] : memref<16x32xf32, #tpu.memory_space<vmem>>, vector<16x32xf32>
    %2 = arith.addf %0, %1 : vector<16x32xf32>
    %cst = arith.constant dense<0.000000e+00> : vector<16xf32>
    %3 = vector.multi_reduction <add>, %2, %cst [1] : vector<16x32xf32> to vector<16xf32>
    %4 = vector.shape_cast %3 : vector<16xf32> to vector<16x1xf32>
    %cst_3 = arith.constant 3.200000e+01 : f32
    %5 = vector.broadcast %cst_3 : f32 to vector<16x1xf32>
    %6 = arith.divf %4, %5 : vector<16x1xf32>
    %7 = vector.broadcast %6 : vector<16x1xf32> to vector<16x32xf32>
    %8 = arith.subf %2, %7 : vector<16x32xf32>
    %9 = arith.mulf %8, %8 : vector<16x32xf32>
    %cst_4 = arith.constant dense<0.000000e+00> : vector<16xf32>
    %10 = vector.multi_reduction <add>, %9, %cst_4 [1] : vector<16x32xf32> to vector<16xf32>
    %11 = vector.shape_cast %10 : vector<16xf32> to vector<16x1xf32>
    %cst_5 = arith.constant 3.200000e+01 : f32
    %12 = vector.broadcast %cst_5 : f32 to vector<16x1xf32>
    %13 = arith.divf %11, %12 : vector<16x1xf32>
    %14 = vector.broadcast %6 : vector<16x1xf32> to vector<16x32xf32>
    %15 = arith.subf %2, %14 : vector<16x32xf32>
    %cst_6 = arith.constant 9.99999974E-6 : f32
    %16 = vector.broadcast %cst_6 : f32 to vector<16x1xf32>
    %17 = arith.addf %13, %16 : vector<16x1xf32>
    %18 = math.rsqrt %17 : vector<16x1xf32>
    %19 = vector.broadcast %18 : vector<16x1xf32> to vector<16x32xf32>
    %20 = arith.mulf %15, %19 : vector<16x32xf32>
    %c0_7 = arith.constant 0 : index
    %c0_8 = arith.constant 0 : index
    %21 = vector.load %arg3[%c0_7, %c0_8] : memref<1x32xf32, #tpu.memory_space<vmem>>, vector<1x32xf32>
    %22 = vector.broadcast %21 : vector<1x32xf32> to vector<16x32xf32>
    %23 = arith.mulf %20, %22 : vector<16x32xf32>
    %c0_9 = arith.constant 0 : index
    %c0_10 = arith.constant 0 : index
    %24 = vector.load %arg4[%c0_9, %c0_10] : memref<1x32xf32, #tpu.memory_space<vmem>>, vector<1x32xf32>
    %25 = vector.broadcast %24 : vector<1x32xf32> to vector<16x32xf32>
    %26 = arith.addf %23, %25 : vector<16x32xf32>
    %c0_11 = arith.constant 0 : index
    %c0_12 = arith.constant 0 : index
    %27 = vector.load %arg5[%c0_11, %c0_12] : memref<16x32xf32, #tpu.memory_space<vmem>>, vector<16x32xf32>
    tpu.vector_store %arg5[%c0_11, %c0_12], %26 {strides = array<i32>} : memref<16x32xf32, #tpu.memory_space<vmem>>, vector<16x32xf32>,
    return
  }
  func.func @transform_0(%arg0: i32) -> (i32, i32) {
    %c0_i32 = arith.constant 0 : i32
    %c0_i32_0 = arith.constant 0 : i32
    return %arg0, %c0_i32 : i32, i32
  }
  func.func @transform_1(%arg0: i32) -> (i32, i32) {
    %c0_i32 = arith.constant 0 : i32
    %c0_i32_0 = arith.constant 0 : i32
    return %arg0, %c0_i32 : i32, i32
  }
  func.func @transform_2(%arg0: i32) -> (i32, i32) {
    %c0_i32 = arith.constant 0 : i32
    %c0_i32_0 = arith.constant 0 : i32
    %c0_i32_1 = arith.constant 0 : i32
    return %c0_i32, %c0_i32_0 : i32, i32
  }
  func.func @transform_3(%arg0: i32) -> (i32, i32) {
    %c0_i32 = arith.constant 0 : i32
    %c0_i32_0 = arith.constant 0 : i32
    %c0_i32_1 = arith.constant 0 : i32
    return %c0_i32, %c0_i32_0 : i32, i32
  }
  func.func @transform_4(%arg0: i32) -> (i32, i32) {
    %c0_i32 = arith.constant 0 : i32
    %c0_i32_0 = arith.constant 0 : i32
    return %arg0, %c0_i32 : i32, i32
  }
}

module attributes {stable_mosaic.version = 11 : i64} {
  func.func @_mha_kernel(%arg0: i32, %arg1: memref<1x8x32xf32, #tpu.memory_space<vmem>>, %arg2: memref<1x8x32xf32, #tpu.memory_space<vmem>>, %arg3: memref<1x8x32xf32, #tpu.memory_space<vmem>>, %arg4: memref<1x1x1x8xf32, #tpu.memory_space<vmem>>, %arg5: memref<1x8x32xf32, #tpu.memory_space<vmem>>) attributes {dimension_semantics = [#tpu.dimension_semantics<parallel>], iteration_bounds = array<i64: 2>, scalar_prefetch = 0 : i64, scratch_operands = 0 : i64, tpu.core_type = #tpu.core_type<tc>, window_params = [{transform_indices = @transform_0, window_bounds = array<i64: 1, 8, 32>}, {transform_indices = @transform_1, window_bounds = array<i64: 1, 8, 32>}, {transform_indices = @transform_2, window_bounds = array<i64: 1, 8, 32>}, {transform_indices = @transform_3, window_bounds = array<i64: 1, 1, 1, 8>}, {transform_indices = @transform_4, window_bounds = array<i64: 1, 8, 32>}]} {
    %c0 = arith.constant 0 : index
    %c0_0 = arith.constant 0 : index
    %c0_1 = arith.constant 0 : index
    %0 = vector.load %arg1[%c0, %c0_0, %c0_1] : memref<1x8x32xf32, #tpu.memory_space<vmem>>, vector<1x8x32xf32>
    %1 = vector.shape_cast %0 : vector<1x8x32xf32> to vector<8x32xf32>
    %c0_2 = arith.constant 0 : index
    %c0_3 = arith.constant 0 : index
    %c0_4 = arith.constant 0 : index
    %2 = vector.load %arg2[%c0_2, %c0_3, %c0_4] : memref<1x8x32xf32, #tpu.memory_space<vmem>>, vector<1x8x32xf32>
    %3 = vector.shape_cast %2 : vector<1x8x32xf32> to vector<8x32xf32>
    %c0_5 = arith.constant 0 : index
    %c0_6 = arith.constant 0 : index
    %c0_7 = arith.constant 0 : index
    %4 = vector.load %arg3[%c0_5, %c0_6, %c0_7] : memref<1x8x32xf32, #tpu.memory_space<vmem>>, vector<1x8x32xf32>
    %5 = vector.shape_cast %4 : vector<1x8x32xf32> to vector<8x32xf32>
    %c0_8 = arith.constant 0 : index
    %c0_9 = arith.constant 0 : index
    %c0_10 = arith.constant 0 : index
    %c0_11 = arith.constant 0 : index
    %6 = vector.load %arg4[%c0_8, %c0_9, %c0_10, %c0_11] : memref<1x1x1x8xf32, #tpu.memory_space<vmem>>, vector<1x1x1x8xf32>
    %7 = vector.shape_cast %6 : vector<1x1x1x8xf32> to vector<1x8xf32>
    %cst = arith.constant 0.000000e+00 : f32
    %8 = vector.broadcast %cst : f32 to vector<1x8xf32>
    %9 = arith.cmpf ogt, %7, %8 : vector<1x8xf32>
    %10 = vector.extract_strided_slice %1 {offsets = [0, 0], sizes = [8, 8], strides = [1, 1]} : vector<8x32xf32> to vector<8x8xf32>
    %11 = vector.extract_strided_slice %3 {offsets = [0, 0], sizes = [8, 8], strides = [1, 1]} : vector<8x32xf32> to vector<8x8xf32>
    %12 = tpu.transpose %11, [1, 0] : vector<8x8xf32> -> vector<8x8xf32>
    %cst_12 = arith.constant dense<0.000000e+00> : vector<8x8xf32>
    %13 = tpu.matmul %10, %12, %cst_12 {dimension_numbers = #tpu.dot_dimension_numbers<[1], [0], [0], [1], [0, 0, 1, 1], [], []>} : vector<8x8xf32>, vector<8x8xf32>, vector<8x8xf32> -> vector<8x8xf32>
    %cst_13 = arith.constant 0.353553385 : f32
    %14 = vector.broadcast %cst_13 : f32 to vector<8x8xf32>
    %15 = arith.mulf %13, %14 : vector<8x8xf32>
    %cst_14 = arith.constant -1.000000e+10 : f32
    %16 = vector.shape_cast %9 : vector<1x8xi1> to vector<1x8xi1>
    %17 = vector.broadcast %16 : vector<1x8xi1> to vector<8x8xi1>
    %18 = vector.broadcast %cst_14 : f32 to vector<8x8xf32>
    %19 = arith.select %17, %15, %18 : vector<8x8xi1>, vector<8x8xf32>
    %cst_15 = arith.constant dense<0xFF800000> : vector<8xf32>
    %20 = vector.multi_reduction <maximumf>, %19, %cst_15 [1] : vector<8x8xf32> to vector<8xf32>
    %21 = vector.shape_cast %20 : vector<8xf32> to vector<8x1xf32>
    %22 = vector.broadcast %21 : vector<8x1xf32> to vector<8x8xf32>
    %23 = arith.subf %19, %22 : vector<8x8xf32>
    %24 = math.exp %23 : vector<8x8xf32>
    %cst_16 = arith.constant dense<0.000000e+00> : vector<8xf32>
    %25 = vector.multi_reduction <add>, %24, %cst_16 [1] : vector<8x8xf32> to vector<8xf32>
    %26 = vector.shape_cast %25 : vector<8xf32> to vector<8x1xf32>
    %27 = tpu.reciprocal %26 {approx = true} : vector<8x1xf32> -> vector<8x1xf32>
    %28 = vector.broadcast %27 : vector<8x1xf32> to vector<8x8xf32>
    %29 = arith.mulf %24, %28 : vector<8x8xf32>
    %30 = vector.extract_strided_slice %5 {offsets = [0, 0], sizes = [8, 8], strides = [1, 1]} : vector<8x32xf32> to vector<8x8xf32>
    %cst_17 = arith.constant dense<0.000000e+00> : vector<8x8xf32>
    %31 = tpu.matmul %29, %30, %cst_17 {dimension_numbers = #tpu.dot_dimension_numbers<[1], [0], [0], [1], [0, 0, 1, 1], [], []>} : vector<8x8xf32>, vector<8x8xf32>, vector<8x8xf32> -> vector<8x8xf32>
    %32 = vector.extract_strided_slice %1 {offsets = [0, 8], sizes = [8, 8], strides = [1, 1]} : vector<8x32xf32> to vector<8x8xf32>
    %33 = vector.extract_strided_slice %3 {offsets = [0, 8], sizes = [8, 8], strides = [1, 1]} : vector<8x32xf32> to vector<8x8xf32>
    %34 = tpu.transpose %33, [1, 0] : vector<8x8xf32> -> vector<8x8xf32>
    %cst_18 = arith.constant dense<0.000000e+00> : vector<8x8xf32>
    %35 = tpu.matmul %32, %34, %cst_18 {dimension_numbers = #tpu.dot_dimension_numbers<[1], [0], [0], [1], [0, 0, 1, 1], [], []>} : vector<8x8xf32>, vector<8x8xf32>, vector<8x8xf32> -> vector<8x8xf32>
    %cst_19 = arith.constant 0.353553385 : f32
    %36 = vector.broadcast %cst_19 : f32 to vector<8x8xf32>
    %37 = arith.mulf %35, %36 : vector<8x8xf32>
    %cst_20 = arith.constant -1.000000e+10 : f32
    %38 = vector.shape_cast %9 : vector<1x8xi1> to vector<1x8xi1>
    %39 = vector.broadcast %38 : vector<1x8xi1> to vector<8x8xi1>
    %40 = vector.broadcast %cst_20 : f32 to vector<8x8xf32>
    %41 = arith.select %39, %37, %40 : vector<8x8xi1>, vector<8x8xf32>
    %cst_21 = arith.constant dense<0xFF800000> : vector<8xf32>
    %42 = vector.multi_reduction <maximumf>, %41, %cst_21 [1] : vector<8x8xf32> to vector<8xf32>
    %43 = vector.shape_cast %42 : vector<8xf32> to vector<8x1xf32>
    %44 = vector.broadcast %43 : vector<8x1xf32> to vector<8x8xf32>
    %45 = arith.subf %41, %44 : vector<8x8xf32>
    %46 = math.exp %45 : vector<8x8xf32>
    %cst_22 = arith.constant dense<0.000000e+00> : vector<8xf32>
    %47 = vector.multi_reduction <add>, %46, %cst_22 [1] : vector<8x8xf32> to vector<8xf32>
    %48 = vector.shape_cast %47 : vector<8xf32> to vector<8x1xf32>
    %49 = tpu.reciprocal %48 {approx = true} : vector<8x1xf32> -> vector<8x1xf32>
    %50 = vector.broadcast %49 : vector<8x1xf32> to vector<8x8xf32>
    %51 = arith.mulf %46, %50 : vector<8x8xf32>
    %52 = vector.extract_strided_slice %5 {offsets = [0, 8], sizes = [8, 8], strides = [1, 1]} : vector<8x32xf32> to vector<8x8xf32>
    %cst_23 = arith.constant dense<0.000000e+00> : vector<8x8xf32>
    %53 = tpu.matmul %51, %52, %cst_23 {dimension_numbers = #tpu.dot_dimension_numbers<[1], [0], [0], [1], [0, 0, 1, 1], [], []>} : vector<8x8xf32>, vector<8x8xf32>, vector<8x8xf32> -> vector<8x8xf32>
    %54 = vector.extract_strided_slice %1 {offsets = [0, 16], sizes = [8, 8], strides = [1, 1]} : vector<8x32xf32> to vector<8x8xf32>
    %55 = vector.extract_strided_slice %3 {offsets = [0, 16], sizes = [8, 8], strides = [1, 1]} : vector<8x32xf32> to vector<8x8xf32>
    %56 = tpu.transpose %55, [1, 0] : vector<8x8xf32> -> vector<8x8xf32>
    %cst_24 = arith.constant dense<0.000000e+00> : vector<8x8xf32>
    %57 = tpu.matmul %54, %56, %cst_24 {dimension_numbers = #tpu.dot_dimension_numbers<[1], [0], [0], [1], [0, 0, 1, 1], [], []>} : vector<8x8xf32>, vector<8x8xf32>, vector<8x8xf32> -> vector<8x8xf32>
    %cst_25 = arith.constant 0.353553385 : f32
    %58 = vector.broadcast %cst_25 : f32 to vector<8x8xf32>
    %59 = arith.mulf %57, %58 : vector<8x8xf32>
    %cst_26 = arith.constant -1.000000e+10 : f32
    %60 = vector.shape_cast %9 : vector<1x8xi1> to vector<1x8xi1>
    %61 = vector.broadcast %60 : vector<1x8xi1> to vector<8x8xi1>
    %62 = vector.broadcast %cst_26 : f32 to vector<8x8xf32>
    %63 = arith.select %61, %59, %62 : vector<8x8xi1>, vector<8x8xf32>
    %cst_27 = arith.constant dense<0xFF800000> : vector<8xf32>
    %64 = vector.multi_reduction <maximumf>, %63, %cst_27 [1] : vector<8x8xf32> to vector<8xf32>
    %65 = vector.shape_cast %64 : vector<8xf32> to vector<8x1xf32>
    %66 = vector.broadcast %65 : vector<8x1xf32> to vector<8x8xf32>
    %67 = arith.subf %63, %66 : vector<8x8xf32>
    %68 = math.exp %67 : vector<8x8xf32>
    %cst_28 = arith.constant dense<0.000000e+00> : vector<8xf32>
    %69 = vector.multi_reduction <add>, %68, %cst_28 [1] : vector<8x8xf32> to vector<8xf32>
    %70 = vector.shape_cast %69 : vector<8xf32> to vector<8x1xf32>
    %71 = tpu.reciprocal %70 {approx = true} : vector<8x1xf32> -> vector<8x1xf32>
    %72 = vector.broadcast %71 : vector<8x1xf32> to vector<8x8xf32>
    %73 = arith.mulf %68, %72 : vector<8x8xf32>
    %74 = vector.extract_strided_slice %5 {offsets = [0, 16], sizes = [8, 8], strides = [1, 1]} : vector<8x32xf32> to vector<8x8xf32>
    %cst_29 = arith.constant dense<0.000000e+00> : vector<8x8xf32>
    %75 = tpu.matmul %73, %74, %cst_29 {dimension_numbers = #tpu.dot_dimension_numbers<[1], [0], [0], [1], [0, 0, 1, 1], [], []>} : vector<8x8xf32>, vector<8x8xf32>, vector<8x8xf32> -> vector<8x8xf32>
    %76 = vector.extract_strided_slice %1 {offsets = [0, 24], sizes = [8, 8], strides = [1, 1]} : vector<8x32xf32> to vector<8x8xf32>
    %77 = vector.extract_strided_slice %3 {offsets = [0, 24], sizes = [8, 8], strides = [1, 1]} : vector<8x32xf32> to vector<8x8xf32>
    %78 = tpu.transpose %77, [1, 0] : vector<8x8xf32> -> vector<8x8xf32>
    %cst_30 = arith.constant dense<0.000000e+00> : vector<8x8xf32>
    %79 = tpu.matmul %76, %78, %cst_30 {dimension_numbers = #tpu.dot_dimension_numbers<[1], [0], [0], [1], [0, 0, 1, 1], [], []>} : vector<8x8xf32>, vector<8x8xf32>, vector<8x8xf32> -> vector<8x8xf32>
    %cst_31 = arith.constant 0.353553385 : f32
    %80 = vector.broadcast %cst_31 : f32 to vector<8x8xf32>
    %81 = arith.mulf %79, %80 : vector<8x8xf32>
    %cst_32 = arith.constant -1.000000e+10 : f32
    %82 = vector.shape_cast %9 : vector<1x8xi1> to vector<1x8xi1>
    %83 = vector.broadcast %82 : vector<1x8xi1> to vector<8x8xi1>
    %84 = vector.broadcast %cst_32 : f32 to vector<8x8xf32>
    %85 = arith.select %83, %81, %84 : vector<8x8xi1>, vector<8x8xf32>
    %cst_33 = arith.constant dense<0xFF800000> : vector<8xf32>
    %86 = vector.multi_reduction <maximumf>, %85, %cst_33 [1] : vector<8x8xf32> to vector<8xf32>
    %87 = vector.shape_cast %86 : vector<8xf32> to vector<8x1xf32>
    %88 = vector.broadcast %87 : vector<8x1xf32> to vector<8x8xf32>
    %89 = arith.subf %85, %88 : vector<8x8xf32>
    %90 = math.exp %89 : vector<8x8xf32>
    %cst_34 = arith.constant dense<0.000000e+00> : vector<8xf32>
    %91 = vector.multi_reduction <add>, %90, %cst_34 [1] : vector<8x8xf32> to vector<8xf32>
    %92 = vector.shape_cast %91 : vector<8xf32> to vector<8x1xf32>
    %93 = tpu.reciprocal %92 {approx = true} : vector<8x1xf32> -> vector<8x1xf32>
    %94 = vector.broadcast %93 : vector<8x1xf32> to vector<8x8xf32>
    %95 = arith.mulf %90, %94 : vector<8x8xf32>
    %96 = vector.extract_strided_slice %5 {offsets = [0, 24], sizes = [8, 8], strides = [1, 1]} : vector<8x32xf32> to vector<8x8xf32>
    %cst_35 = arith.constant dense<0.000000e+00> : vector<8x8xf32>
    %97 = tpu.matmul %95, %96, %cst_35 {dimension_numbers = #tpu.dot_dimension_numbers<[1], [0], [0], [1], [0, 0, 1, 1], [], []>} : vector<8x8xf32>, vector<8x8xf32>, vector<8x8xf32> -> vector<8x8xf32>
    %98 = tpu.concatenate %31, %53, %75, %97 in 1 : vector<8x8xf32>, vector<8x8xf32>, vector<8x8xf32>, vector<8x8xf32> -> vector<8x32xf32>
    %c0_36 = arith.constant 0 : index
    %c0_37 = arith.constant 0 : index
    %c0_38 = arith.constant 0 : index
    %99 = vector.load %arg5[%c0_36, %c0_37, %c0_38] : memref<1x8x32xf32, #tpu.memory_space<vmem>>, vector<1x8x32xf32>
    %100 = vector.shape_cast %99 : vector<1x8x32xf32> to vector<8x32xf32>
    %101 = vector.shape_cast %98 : vector<8x32xf32> to vector<1x8x32xf32>
    tpu.vector_store %arg5[%c0_36, %c0_37, %c0_38], %101 {strides = array<i32>} : memref<1x8x32xf32, #tpu.memory_space<vmem>>, vector<1x8x32xf32>,
    return
  }
  func.func @transform_0(%arg0: i32) -> (i32, i32, i32) {
    %c0_i32 = arith.constant 0 : i32
    %c0_i32_0 = arith.constant 0 : i32
    %c0_i32_1 = arith.constant 0 : i32
    return %arg0, %c0_i32, %c0_i32_0 : i32, i32, i32
  }
  func.func @transform_1(%arg0: i32) -> (i32, i32, i32) {
    %c0_i32 = arith.constant 0 : i32
    %c0_i32_0 = arith.constant 0 : i32
    %c0_i32_1 = arith.constant 0 : i32
    return %arg0, %c0_i32, %c0_i32_0 : i32, i32, i32
  }
  func.func @transform_2(%arg0: i32) -> (i32, i32, i32) {
    %c0_i32 = arith.constant 0 : i32
    %c0_i32_0 = arith.constant 0 : i32
    %c0_i32_1 = arith.constant 0 : i32
    return %arg0, %c0_i32, %c0_i32_0 : i32, i32, i32
  }
  func.func @transform_3(%arg0: i32) -> (i32, i32, i32, i32) {
    %c0_i32 = arith.constant 0 : i32
    %c0_i32_0 = arith.constant 0 : i32
    %c0_i32_1 = arith.constant 0 : i32
    %c0_i32_2 = arith.constant 0 : i32
    return %arg0, %c0_i32, %c0_i32_0, %c0_i32_1 : i32, i32, i32, i32
  }
  func.func @transform_4(%arg0: i32) -> (i32, i32, i32) {
    %c0_i32 = arith.constant 0 : i32
    %c0_i32_0 = arith.constant 0 : i32
    %c0_i32_1 = arith.constant 0 : i32
    return %arg0, %c0_i32, %c0_i32_0 : i32, i32, i32
  }
}

module attributes {stable_mosaic.version = 11 : i64} {
  func.func @_ffn_kernel(%arg0: i32, %arg1: memref<16x32xf32, #tpu.memory_space<vmem>>, %arg2: memref<32x64xf32, #tpu.memory_space<vmem>>, %arg3: memref<1x64xf32, #tpu.memory_space<vmem>>, %arg4: memref<64x32xf32, #tpu.memory_space<vmem>>, %arg5: memref<1x32xf32, #tpu.memory_space<vmem>>, %arg6: memref<16x32xf32, #tpu.memory_space<vmem>>) attributes {dimension_semantics = [#tpu.dimension_semantics<parallel>], iteration_bounds = array<i64: 1>, scalar_prefetch = 0 : i64, scratch_operands = 0 : i64, tpu.core_type = #tpu.core_type<tc>, window_params = [{transform_indices = @transform_0, window_bounds = array<i64: 16, 32>}, {pipeline_mode = #tpu.pipeline_mode<synchronous>, transform_indices = @transform_1, window_bounds = array<i64: 32, 64>}, {pipeline_mode = #tpu.pipeline_mode<synchronous>, transform_indices = @transform_2, window_bounds = array<i64: 1, 64>}, {pipeline_mode = #tpu.pipeline_mode<synchronous>, transform_indices = @transform_3, window_bounds = array<i64: 64, 32>}, {pipeline_mode = #tpu.pipeline_mode<synchronous>, transform_indices = @transform_4, window_bounds = array<i64: 1, 32>}, {transform_indices = @transform_5, window_bounds = array<i64: 16, 32>}]} {
    %c0 = arith.constant 0 : index
    %c0_0 = arith.constant 0 : index
    %0 = vector.load %arg1[%c0, %c0_0] : memref<16x32xf32, #tpu.memory_space<vmem>>, vector<16x32xf32>
    %c0_1 = arith.constant 0 : index
    %c0_2 = arith.constant 0 : index
    %1 = vector.load %arg2[%c0_1, %c0_2] : memref<32x64xf32, #tpu.memory_space<vmem>>, vector<32x64xf32>
    %cst = arith.constant dense<0.000000e+00> : vector<16x64xf32>
    %2 = tpu.matmul %0, %1, %cst {dimension_numbers = #tpu.dot_dimension_numbers<[1], [0], [0], [1], [0, 0, 1, 1], [], []>} : vector<16x32xf32>, vector<32x64xf32>, vector<16x64xf32> -> vector<16x64xf32>
    %c0_3 = arith.constant 0 : index
    %c0_4 = arith.constant 0 : index
    %3 = vector.load %arg3[%c0_3, %c0_4] : memref<1x64xf32, #tpu.memory_space<vmem>>, vector<1x64xf32>
    %4 = vector.broadcast %3 : vector<1x64xf32> to vector<16x64xf32>
    %5 = arith.addf %2, %4 : vector<16x64xf32>
    %cst_5 = arith.constant 0.000000e+00 : f32
    %6 = vector.broadcast %cst_5 : f32 to vector<16x64xf32>
    %7 = arith.maximumf %5, %6 : vector<16x64xf32>
    %c0_6 = arith.constant 0 : index
    %c0_7 = arith.constant 0 : index
    %8 = vector.load %arg4[%c0_6, %c0_7] : memref<64x32xf32, #tpu.memory_space<vmem>>, vector<64x32xf32>
    %cst_8 = arith.constant dense<0.000000e+00> : vector<16x32xf32>
    %9 = tpu.matmul %7, %8, %cst_8 {dimension_numbers = #tpu.dot_dimension_numbers<[1], [0], [0], [1], [0, 0, 1, 1], [], []>} : vector<16x64xf32>, vector<64x32xf32>, vector<16x32xf32> -> vector<16x32xf32>
    %c0_9 = arith.constant 0 : index
    %c0_10 = arith.constant 0 : index
    %10 = vector.load %arg5[%c0_9, %c0_10] : memref<1x32xf32, #tpu.memory_space<vmem>>, vector<1x32xf32>
    %11 = vector.broadcast %10 : vector<1x32xf32> to vector<16x32xf32>
    %12 = arith.addf %9, %11 : vector<16x32xf32>
    %c0_11 = arith.constant 0 : index
    %c0_12 = arith.constant 0 : index
    %13 = vector.load %arg6[%c0_11, %c0_12] : memref<16x32xf32, #tpu.memory_space<vmem>>, vector<16x32xf32>
    tpu.vector_store %arg6[%c0_11, %c0_12], %12 {strides = array<i32>} : memref<16x32xf32, #tpu.memory_space<vmem>>, vector<16x32xf32>,
    return
  }
  func.func @transform_0(%arg0: i32) -> (i32, i32) {
    %c0_i32 = arith.constant 0 : i32
    %c0_i32_0 = arith.constant 0 : i32
    return %arg0, %c0_i32 : i32, i32
  }
  func.func @transform_1(%arg0: i32) -> (i32, i32) {
    %c0_i32 = arith.constant 0 : i32
    %c0_i32_0 = arith.constant 0 : i32
    %c0_i32_1 = arith.constant 0 : i32
    return %c0_i32, %c0_i32_0 : i32, i32
  }
  func.func @transform_2(%arg0: i32) -> (i32, i32) {
    %c0_i32 = arith.constant 0 : i32
    %c0_i32_0 = arith.constant 0 : i32
    %c0_i32_1 = arith.constant 0 : i32
    return %c0_i32, %c0_i32_0 : i32, i32
  }
  func.func @transform_3(%arg0: i32) -> (i32, i32) {
    %c0_i32 = arith.constant 0 : i32
    %c0_i32_0 = arith.constant 0 : i32
    %c0_i32_1 = arith.constant 0 : i32
    return %c0_i32, %c0_i32_0 : i32, i32
  }
  func.func @transform_4(%arg0: i32) -> (i32, i32) {
    %c0_i32 = arith.constant 0 : i32
    %c0_i32_0 = arith.constant 0 : i32
    %c0_i32_1 = arith.constant 0 : i32
    return %c0_i32, %c0_i32_0 : i32, i32
  }
  func.func @transform_5(%arg0: i32) -> (i32, i32) {
    %c0_i32 = arith.constant 0 : i32
    %c0_i32_0 = arith.constant 0 : i32
    return %arg0, %c0_i32 : i32, i32
  }
}

module attributes {stable_mosaic.version = 11 : i64} {
  func.func @_mha_kernel(%arg0: i32, %arg1: memref<1x8x32xf32, #tpu.memory_space<vmem>>, %arg2: memref<1x8x32xf32, #tpu.memory_space<vmem>>, %arg3: memref<1x8x32xf32, #tpu.memory_space<vmem>>, %arg4: memref<1x1x1x8xf32, #tpu.memory_space<vmem>>, %arg5: memref<1x8x32xf32, #tpu.memory_space<vmem>>, %arg6: memref<1x4x8x8xf32, #tpu.memory_space<vmem>>) attributes {dimension_semantics = [#tpu.dimension_semantics<parallel>], iteration_bounds = array<i64: 2>, scalar_prefetch = 0 : i64, scratch_operands = 0 : i64, tpu.core_type = #tpu.core_type<tc>, window_params = [{transform_indices = @transform_0, window_bounds = array<i64: 1, 8, 32>}, {transform_indices = @transform_1, window_bounds = array<i64: 1, 8, 32>}, {transform_indices = @transform_2, window_bounds = array<i64: 1, 8, 32>}, {transform_indices = @transform_3, window_bounds = array<i64: 1, 1, 1, 8>}, {transform_indices = @transform_4, window_bounds = array<i64: 1, 8, 32>}, {transform_indices = @transform_5, window_bounds = array<i64: 1, 4, 8, 8>}]} {
    %c0 = arith.constant 0 : index
    %c0_0 = arith.constant 0 : index
    %c0_1 = arith.constant 0 : index
    %0 = vector.load %arg1[%c0, %c0_0, %c0_1] : memref<1x8x32xf32, #tpu.memory_space<vmem>>, vector<1x8x32xf32>
    %1 = vector.shape_cast %0 : vector<1x8x32xf32> to vector<8x32xf32>
    %c0_2 = arith.constant 0 : index
    %c0_3 = arith.constant 0 : index
    %c0_4 = arith.constant 0 : index
    %2 = vector.load %arg2[%c0_2, %c0_3, %c0_4] : memref<1x8x32xf32, #tpu.memory_space<vmem>>, vector<1x8x32xf32>
    %3 = vector.shape_cast %2 : vector<1x8x32xf32> to vector<8x32xf32>
    %c0_5 = arith.constant 0 : index
    %c0_6 = arith.constant 0 : index
    %c0_7 = arith.constant 0 : index
    %4 = vector.load %arg3[%c0_5, %c0_6, %c0_7] : memref<1x8x32xf32, #tpu.memory_space<vmem>>, vector<1x8x32xf32>
    %5 = vector.shape_cast %4 : vector<1x8x32xf32> to vector<8x32xf32>
    %c0_8 = arith.constant 0 : index
    %c0_9 = arith.constant 0 : index
    %c0_10 = arith.constant 0 : index
    %c0_11 = arith.constant 0 : index
    %6 = vector.load %arg4[%c0_8, %c0_9, %c0_10, %c0_11] : memref<1x1x1x8xf32, #tpu.memory_space<vmem>>, vector<1x1x1x8xf32>
    %7 = vector.shape_cast %6 : vector<1x1x1x8xf32> to vector<1x8xf32>
    %cst = arith.constant 0.000000e+00 : f32
    %8 = vector.broadcast %cst : f32 to vector<1x8xf32>
    %9 = arith.cmpf ogt, %7, %8 : vector<1x8xf32>
    %10 = vector.extract_strided_slice %1 {offsets = [0, 0], sizes = [8, 8], strides = [1, 1]} : vector<8x32xf32> to vector<8x8xf32>
    %11 = vector.extract_strided_slice %3 {offsets = [0, 0], sizes = [8, 8], strides = [1, 1]} : vector<8x32xf32> to vector<8x8xf32>
    %12 = tpu.transpose %11, [1, 0] : vector<8x8xf32> -> vector<8x8xf32>
    %cst_12 = arith.constant dense<0.000000e+00> : vector<8x8xf32>
    %13 = tpu.matmul %10, %12, %cst_12 {dimension_numbers = #tpu.dot_dimension_numbers<[1], [0], [0], [1], [0, 0, 1, 1], [], []>} : vector<8x8xf32>, vector<8x8xf32>, vector<8x8xf32> -> vector<8x8xf32>
    %cst_13 = arith.constant 0.353553385 : f32
    %14 = vector.broadcast %cst_13 : f32 to vector<8x8xf32>
    %15 = arith.mulf %13, %14 : vector<8x8xf32>
    %cst_14 = arith.constant -1.000000e+10 : f32
    %16 = vector.shape_cast %9 : vector<1x8xi1> to vector<1x8xi1>
    %17 = vector.broadcast %16 : vector<1x8xi1> to vector<8x8xi1>
    %18 = vector.broadcast %cst_14 : f32 to vector<8x8xf32>
    %19 = arith.select %17, %15, %18 : vector<8x8xi1>, vector<8x8xf32>
    %cst_15 = arith.constant dense<0xFF800000> : vector<8xf32>
    %20 = vector.multi_reduction <maximumf>, %19, %cst_15 [1] : vector<8x8xf32> to vector<8xf32>
    %21 = vector.shape_cast %20 : vector<8xf32> to vector<8x1xf32>
    %22 = vector.broadcast %21 : vector<8x1xf32> to vector<8x8xf32>
    %23 = arith.subf %19, %22 : vector<8x8xf32>
    %24 = math.exp %23 : vector<8x8xf32>
    %cst_16 = arith.constant dense<0.000000e+00> : vector<8xf32>
    %25 = vector.multi_reduction <add>, %24, %cst_16 [1] : vector<8x8xf32> to vector<8xf32>
    %26 = vector.shape_cast %25 : vector<8xf32> to vector<8x1xf32>
    %27 = tpu.reciprocal %26 {approx = true} : vector<8x1xf32> -> vector<8x1xf32>
    %28 = vector.broadcast %27 : vector<8x1xf32> to vector<8x8xf32>
    %29 = arith.mulf %24, %28 : vector<8x8xf32>
    %30 = vector.extract_strided_slice %5 {offsets = [0, 0], sizes = [8, 8], strides = [1, 1]} : vector<8x32xf32> to vector<8x8xf32>
    %cst_17 = arith.constant dense<0.000000e+00> : vector<8x8xf32>
    %31 = tpu.matmul %29, %30, %cst_17 {dimension_numbers = #tpu.dot_dimension_numbers<[1], [0], [0], [1], [0, 0, 1, 1], [], []>} : vector<8x8xf32>, vector<8x8xf32>, vector<8x8xf32> -> vector<8x8xf32>
    %c0_18 = arith.constant 0 : index
    %c0_19 = arith.constant 0 : index
    %c0_20 = arith.constant 0 : index
    %c0_21 = arith.constant 0 : index
    %32 = vector.load %arg6[%c0_18, %c0_19, %c0_20, %c0_21] : memref<1x4x8x8xf32, #tpu.memory_space<vmem>>, vector<1x1x8x8xf32>
    %33 = vector.shape_cast %32 : vector<1x1x8x8xf32> to vector<8x8xf32>
    %34 = vector.shape_cast %29 : vector<8x8xf32> to vector<1x1x8x8xf32>
    tpu.vector_store %arg6[%c0_18, %c0_19, %c0_20, %c0_21], %34 {strides = array<i32>} : memref<1x4x8x8xf32, #tpu.memory_space<vmem>>, vector<1x1x8x8xf32>,
    %35 = vector.extract_strided_slice %1 {offsets = [0, 8], sizes = [8, 8], strides = [1, 1]} : vector<8x32xf32> to vector<8x8xf32>
    %36 = vector.extract_strided_slice %3 {offsets = [0, 8], sizes = [8, 8], strides = [1, 1]} : vector<8x32xf32> to vector<8x8xf32>
    %37 = tpu.transpose %36, [1, 0] : vector<8x8xf32> -> vector<8x8xf32>
    %cst_22 = arith.constant dense<0.000000e+00> : vector<8x8xf32>
    %38 = tpu.matmul %35, %37, %cst_22 {dimension_numbers = #tpu.dot_dimension_numbers<[1], [0], [0], [1], [0, 0, 1, 1], [], []>} : vector<8x8xf32>, vector<8x8xf32>, vector<8x8xf32> -> vector<8x8xf32>
    %cst_23 = arith.constant 0.353553385 : f32
    %39 = vector.broadcast %cst_23 : f32 to vector<8x8xf32>
    %40 = arith.mulf %38, %39 : vector<8x8xf32>
    %cst_24 = arith.constant -1.000000e+10 : f32
    %41 = vector.shape_cast %9 : vector<1x8xi1> to vector<1x8xi1>
    %42 = vector.broadcast %41 : vector<1x8xi1> to vector<8x8xi1>
    %43 = vector.broadcast %cst_24 : f32 to vector<8x8xf32>
    %44 = arith.select %42, %40, %43 : vector<8x8xi1>, vector<8x8xf32>
    %cst_25 = arith.constant dense<0xFF800000> : vector<8xf32>
    %45 = vector.multi_reduction <maximumf>, %44, %cst_25 [1] : vector<8x8xf32> to vector<8xf32>
    %46 = vector.shape_cast %45 : vector<8xf32> to vector<8x1xf32>
    %47 = vector.broadcast %46 : vector<8x1xf32> to vector<8x8xf32>
    %48 = arith.subf %44, %47 : vector<8x8xf32>
    %49 = math.exp %48 : vector<8x8xf32>
    %cst_26 = arith.constant dense<0.000000e+00> : vector<8xf32>
    %50 = vector.multi_reduction <add>, %49, %cst_26 [1] : vector<8x8xf32> to vector<8xf32>
    %51 = vector.shape_cast %50 : vector<8xf32> to vector<8x1xf32>
    %52 = tpu.reciprocal %51 {approx = true} : vector<8x1xf32> -> vector<8x1xf32>
    %53 = vector.broadcast %52 : vector<8x1xf32> to vector<8x8xf32>
    %54 = arith.mulf %49, %53 : vector<8x8xf32>
    %55 = vector.extract_strided_slice %5 {offsets = [0, 8], sizes = [8, 8], strides = [1, 1]} : vector<8x32xf32> to vector<8x8xf32>
    %cst_27 = arith.constant dense<0.000000e+00> : vector<8x8xf32>
    %56 = tpu.matmul %54, %55, %cst_27 {dimension_numbers = #tpu.dot_dimension_numbers<[1], [0], [0], [1], [0, 0, 1, 1], [], []>} : vector<8x8xf32>, vector<8x8xf32>, vector<8x8xf32> -> vector<8x8xf32>
    %c0_28 = arith.constant 0 : index
    %c1 = arith.constant 1 : index
    %c0_29 = arith.constant 0 : index
    %c0_30 = arith.constant 0 : index
    %57 = vector.load %arg6[%c0_28, %c1, %c0_29, %c0_30] : memref<1x4x8x8xf32, #tpu.memory_space<vmem>>, vector<1x1x8x8xf32>
    %58 = vector.shape_cast %57 : vector<1x1x8x8xf32> to vector<8x8xf32>
    %59 = vector.shape_cast %54 : vector<8x8xf32> to vector<1x1x8x8xf32>
    tpu.vector_store %arg6[%c0_28, %c1, %c0_29, %c0_30], %59 {strides = array<i32>} : memref<1x4x8x8xf32, #tpu.memory_space<vmem>>, vector<1x1x8x8xf32>,
    %60 = vector.extract_strided_slice %1 {offsets = [0, 16], sizes = [8, 8], strides = [1, 1]} : vector<8x32xf32> to vector<8x8xf32>
    %61 = vector.extract_strided_slice %3 {offsets = [0, 16], sizes = [8, 8], strides = [1, 1]} : vector<8x32xf32> to vector<8x8xf32>
    %62 = tpu.transpose %61, [1, 0] : vector<8x8xf32> -> vector<8x8xf32>
    %cst_31 = arith.constant dense<0.000000e+00> : vector<8x8xf32>
    %63 = tpu.matmul %60, %62, %cst_31 {dimension_numbers = #tpu.dot_dimension_numbers<[1], [0], [0], [1], [0, 0, 1, 1], [], []>} : vector<8x8xf32>, vector<8x8xf32>, vector<8x8xf32> -> vector<8x8xf32>
    %cst_32 = arith.constant 0.353553385 : f32
    %64 = vector.broadcast %cst_32 : f32 to vector<8x8xf32>
    %65 = arith.mulf %63, %64 : vector<8x8xf32>
    %cst_33 = arith.constant -1.000000e+10 : f32
    %66 = vector.shape_cast %9 : vector<1x8xi1> to vector<1x8xi1>
    %67 = vector.broadcast %66 : vector<1x8xi1> to vector<8x8xi1>
    %68 = vector.broadcast %cst_33 : f32 to vector<8x8xf32>
    %69 = arith.select %67, %65, %68 : vector<8x8xi1>, vector<8x8xf32>
    %cst_34 = arith.constant dense<0xFF800000> : vector<8xf32>
    %70 = vector.multi_reduction <maximumf>, %69, %cst_34 [1] : vector<8x8xf32> to vector<8xf32>
    %71 = vector.shape_cast %70 : vector<8xf32> to vector<8x1xf32>
    %72 = vector.broadcast %71 : vector<8x1xf32> to vector<8x8xf32>
    %73 = arith.subf %69, %72 : vector<8x8xf32>
    %74 = math.exp %73 : vector<8x8xf32>
    %cst_35 = arith.constant dense<0.000000e+00> : vector<8xf32>
    %75 = vector.multi_reduction <add>, %74, %cst_35 [1] : vector<8x8xf32> to vector<8xf32>
    %76 = vector.shape_cast %75 : vector<8xf32> to vector<8x1xf32>
    %77 = tpu.reciprocal %76 {approx = true} : vector<8x1xf32> -> vector<8x1xf32>
    %78 = vector.broadcast %77 : vector<8x1xf32> to vector<8x8xf32>
    %79 = arith.mulf %74, %78 : vector<8x8xf32>
    %80 = vector.extract_strided_slice %5 {offsets = [0, 16], sizes = [8, 8], strides = [1, 1]} : vector<8x32xf32> to vector<8x8xf32>
    %cst_36 = arith.constant dense<0.000000e+00> : vector<8x8xf32>
    %81 = tpu.matmul %79, %80, %cst_36 {dimension_numbers = #tpu.dot_dimension_numbers<[1], [0], [0], [1], [0, 0, 1, 1], [], []>} : vector<8x8xf32>, vector<8x8xf32>, vector<8x8xf32> -> vector<8x8xf32>
    %c0_37 = arith.constant 0 : index
    %c2 = arith.constant 2 : index
    %c0_38 = arith.constant 0 : index
    %c0_39 = arith.constant 0 : index
    %82 = vector.load %arg6[%c0_37, %c2, %c0_38, %c0_39] : memref<1x4x8x8xf32, #tpu.memory_space<vmem>>, vector<1x1x8x8xf32>
    %83 = vector.shape_cast %82 : vector<1x1x8x8xf32> to vector<8x8xf32>
    %84 = vector.shape_cast %79 : vector<8x8xf32> to vector<1x1x8x8xf32>
    tpu.vector_store %arg6[%c0_37, %c2, %c0_38, %c0_39], %84 {strides = array<i32>} : memref<1x4x8x8xf32, #tpu.memory_space<vmem>>, vector<1x1x8x8xf32>,
    %85 = vector.extract_strided_slice %1 {offsets = [0, 24], sizes = [8, 8], strides = [1, 1]} : vector<8x32xf32> to vector<8x8xf32>
    %86 = vector.extract_strided_slice %3 {offsets = [0, 24], sizes = [8, 8], strides = [1, 1]} : vector<8x32xf32> to vector<8x8xf32>
    %87 = tpu.transpose %86, [1, 0] : vector<8x8xf32> -> vector<8x8xf32>
    %cst_40 = arith.constant dense<0.000000e+00> : vector<8x8xf32>
    %88 = tpu.matmul %85, %87, %cst_40 {dimension_numbers = #tpu.dot_dimension_numbers<[1], [0], [0], [1], [0, 0, 1, 1], [], []>} : vector<8x8xf32>, vector<8x8xf32>, vector<8x8xf32> -> vector<8x8xf32>
    %cst_41 = arith.constant 0.353553385 : f32
    %89 = vector.broadcast %cst_41 : f32 to vector<8x8xf32>
    %90 = arith.mulf %88, %89 : vector<8x8xf32>
    %cst_42 = arith.constant -1.000000e+10 : f32
    %91 = vector.shape_cast %9 : vector<1x8xi1> to vector<1x8xi1>
    %92 = vector.broadcast %91 : vector<1x8xi1> to vector<8x8xi1>
    %93 = vector.broadcast %cst_42 : f32 to vector<8x8xf32>
    %94 = arith.select %92, %90, %93 : vector<8x8xi1>, vector<8x8xf32>
    %cst_43 = arith.constant dense<0xFF800000> : vector<8xf32>
    %95 = vector.multi_reduction <maximumf>, %94, %cst_43 [1] : vector<8x8xf32> to vector<8xf32>
    %96 = vector.shape_cast %95 : vector<8xf32> to vector<8x1xf32>
    %97 = vector.broadcast %96 : vector<8x1xf32> to vector<8x8xf32>
    %98 = arith.subf %94, %97 : vector<8x8xf32>
    %99 = math.exp %98 : vector<8x8xf32>
    %cst_44 = arith.constant dense<0.000000e+00> : vector<8xf32>
    %100 = vector.multi_reduction <add>, %99, %cst_44 [1] : vector<8x8xf32> to vector<8xf32>
    %101 = vector.shape_cast %100 : vector<8xf32> to vector<8x1xf32>
    %102 = tpu.reciprocal %101 {approx = true} : vector<8x1xf32> -> vector<8x1xf32>
    %103 = vector.broadcast %102 : vector<8x1xf32> to vector<8x8xf32>
    %104 = arith.mulf %99, %103 : vector<8x8xf32>
    %105 = vector.extract_strided_slice %5 {offsets = [0, 24], sizes = [8, 8], strides = [1, 1]} : vector<8x32xf32> to vector<8x8xf32>
    %cst_45 = arith.constant dense<0.000000e+00> : vector<8x8xf32>
    %106 = tpu.matmul %104, %105, %cst_45 {dimension_numbers = #tpu.dot_dimension_numbers<[1], [0], [0], [1], [0, 0, 1, 1], [], []>} : vector<8x8xf32>, vector<8x8xf32>, vector<8x8xf32> -> vector<8x8xf32>
    %c0_46 = arith.constant 0 : index
    %c3 = arith.constant 3 : index
    %c0_47 = arith.constant 0 : index
    %c0_48 = arith.constant 0 : index
    %107 = vector.load %arg6[%c0_46, %c3, %c0_47, %c0_48] : memref<1x4x8x8xf32, #tpu.memory_space<vmem>>, vector<1x1x8x8xf32>
    %108 = vector.shape_cast %107 : vector<1x1x8x8xf32> to vector<8x8xf32>
    %109 = vector.shape_cast %104 : vector<8x8xf32> to vector<1x1x8x8xf32>
    tpu.vector_store %arg6[%c0_46, %c3, %c0_47, %c0_48], %109 {strides = array<i32>} : memref<1x4x8x8xf32, #tpu.memory_space<vmem>>, vector<1x1x8x8xf32>,
    %110 = tpu.concatenate %31, %56, %81, %106 in 1 : vector<8x8xf32>, vector<8x8xf32>, vector<8x8xf32>, vector<8x8xf32> -> vector<8x32xf32>
    %c0_49 = arith.constant 0 : index
    %c0_50 = arith.constant 0 : index
    %c0_51 = arith.constant 0 : index
    %111 = vector.load %arg5[%c0_49, %c0_50, %c0_51] : memref<1x8x32xf32, #tpu.memory_space<vmem>>, vector<1x8x32xf32>
    %112 = vector.shape_cast %111 : vector<1x8x32xf32> to vector<8x32xf32>
    %113 = vector.shape_cast %110 : vector<8x32xf32> to vector<1x8x32xf32>
    tpu.vector_store %arg5[%c0_49, %c0_50, %c0_51], %113 {strides = array<i32>} : memref<1x8x32xf32, #tpu.memory_space<vmem>>, vector<1x8x32xf32>,
    return
  }
  func.func @transform_0(%arg0: i32) -> (i32, i32, i32) {
    %c0_i32 = arith.constant 0 : i32
    %c0_i32_0 = arith.constant 0 : i32
    %c0_i32_1 = arith.constant 0 : i32
    return %arg0, %c0_i32, %c0_i32_0 : i32, i32, i32
  }
  func.func @transform_1(%arg0: i32) -> (i32, i32, i32) {
    %c0_i32 = arith.constant 0 : i32
    %c0_i32_0 = arith.constant 0 : i32
    %c0_i32_1 = arith.constant 0 : i32
    return %arg0, %c0_i32, %c0_i32_0 : i32, i32, i32
  }
  func.func @transform_2(%arg0: i32) -> (i32, i32, i32) {
    %c0_i32 = arith.constant 0 : i32
    %c0_i32_0 = arith.constant 0 : i32
    %c0_i32_1 = arith.constant 0 : i32
    return %arg0, %c0_i32, %c0_i32_0 : i32, i32, i32
  }
  func.func @transform_3(%arg0: i32) -> (i32, i32, i32, i32) {
    %c0_i32 = arith.constant 0 : i32
    %c0_i32_0 = arith.constant 0 : i32
    %c0_i32_1 = arith.constant 0 : i32
    %c0_i32_2 = arith.constant 0 : i32
    return %arg0, %c0_i32, %c0_i32_0, %c0_i32_1 : i32, i32, i32, i32
  }
  func.func @transform_4(%arg0: i32) -> (i32, i32, i32) {
    %c0_i32 = arith.constant 0 : i32
    %c0_i32_0 = arith.constant 0 : i32
    %c0_i32_1 = arith.constant 0 : i32
    return %arg0, %c0_i32, %c0_i32_0 : i32, i32, i32
  }
  func.func @transform_5(%arg0: i32) -> (i32, i32, i32, i32) {
    %c0_i32 = arith.constant 0 : i32
    %c0_i32_0 = arith.constant 0 : i32
    %c0_i32_1 = arith.constant 0 : i32
    %c0_i32_2 = arith.constant 0 : i32
    return %arg0, %c0_i32, %c0_i32_0, %c0_i32_1 : i32, i32, i32, i32
  }
}

module attributes {stable_mosaic.version = 11 : i64} {
  func.func @_linear_kernel(%arg0: i32, %arg1: i32, %arg2: i32, %arg3: memref<16x32xf32, #tpu.memory_space<vmem>>, %arg4: memref<32x50xf32, #tpu.memory_space<vmem>>, %arg5: memref<1x50xf32, #tpu.memory_space<vmem>>, %arg6: memref<16x50xf32, #tpu.memory_space<vmem>>, %arg7: memref<16x50xf32, #tpu.memory_space<vmem>>) attributes {dimension_semantics = [#tpu.dimension_semantics<parallel>, #tpu.dimension_semantics<parallel>, #tpu.dimension_semantics<arbitrary>], iteration_bounds = array<i64: 1, 1, 1>, scalar_prefetch = 0 : i64, scratch_operands = 1 : i64, tpu.core_type = #tpu.core_type<tc>, window_params = [{transform_indices = @transform_0, window_bounds = array<i64: 16, 32>}, {transform_indices = @transform_1, window_bounds = array<i64: 32, 50>}, {transform_indices = @transform_2, window_bounds = array<i64: 1, 50>}, {transform_indices = @transform_3, window_bounds = array<i64: 16, 50>}]} {
    %c0_i32 = arith.constant 0 : i32
    %0 = arith.cmpi eq, %arg2, %c0_i32 : i32
    %1 = arith.extui %0 : i1 to i32
    %c0_i32_0 = arith.constant 0 : i32
    %2 = arith.cmpi ne, %1, %c0_i32_0 : i32
    scf.if %2 {
      %cst_10 = arith.constant 0.000000e+00 : f32
      %12 = vector.broadcast %cst_10 : f32 to vector<16x50xf32>
      %c0_11 = arith.constant 0 : index
      %c0_12 = arith.constant 0 : index
      %13 = vector.load %arg7[%c0_11, %c0_12] : memref<16x50xf32, #tpu.memory_space<vmem>>, vector<16x50xf32>
      tpu.vector_store %arg7[%c0_11, %c0_12], %12 {strides = array<i32>} : memref<16x50xf32, #tpu.memory_space<vmem>>, vector<16x50xf32>,
    } else {
    }
    %c0 = arith.constant 0 : index
    %c0_1 = arith.constant 0 : index
    %3 = vector.load %arg7[%c0, %c0_1] : memref<16x50xf32, #tpu.memory_space<vmem>>, vector<16x50xf32>
    %c0_2 = arith.constant 0 : index
    %c0_3 = arith.constant 0 : index
    %4 = vector.load %arg3[%c0_2, %c0_3] : memref<16x32xf32, #tpu.memory_space<vmem>>, vector<16x32xf32>
    %c0_4 = arith.constant 0 : index
    %c0_5 = arith.constant 0 : index
    %5 = vector.load %arg4[%c0_4, %c0_5] : memref<32x50xf32, #tpu.memory_space<vmem>>, vector<32x50xf32>
    %cst = arith.constant dense<0.000000e+00> : vector<16x50xf32>
    %6 = tpu.matmul %4, %5, %cst {dimension_numbers = #tpu.dot_dimension_numbers<[1], [0], [0], [1], [0, 0, 1, 1], [], []>} : vector<16x32xf32>, vector<32x50xf32>, vector<16x50xf32> -> vector<16x50xf32>
    %7 = arith.addf %3, %6 : vector<16x50xf32>
    %c0_6 = arith.constant 0 : index
    %c0_7 = arith.constant 0 : index
    %8 = vector.load %arg7[%c0_6, %c0_7] : memref<16x50xf32, #tpu.memory_space<vmem>>, vector<16x50xf32>
    tpu.vector_store %arg7[%c0_6, %c0_7], %7 {strides = array<i32>} : memref<16x50xf32, #tpu.memory_space<vmem>>, vector<16x50xf32>,
    %c0_i32_8 = arith.constant 0 : i32
    %9 = arith.cmpi eq, %arg2, %c0_i32_8 : i32
    %10 = arith.extui %9 : i1 to i32
    %c0_i32_9 = arith.constant 0 : i32
    %11 = arith.cmpi ne, %10, %c0_i32_9 : i32
    scf.if %11 {
      %c0_10 = arith.constant 0 : index
      %c0_11 = arith.constant 0 : index
      %12 = vector.load %arg7[%c0_10, %c0_11] : memref<16x50xf32, #tpu.memory_space<vmem>>, vector<16x50xf32>
      %c0_12 = arith.constant 0 : index
      %c0_13 = arith.constant 0 : index
      %13 = vector.load %arg5[%c0_12, %c0_13] : memref<1x50xf32, #tpu.memory_space<vmem>>, vector<1x50xf32>
      %14 = vector.broadcast %13 : vector<1x50xf32> to vector<16x50xf32>
      %15 = arith.addf %12, %14 : vector<16x50xf32>
      %c0_14 = arith.constant 0 : index
      %c0_15 = arith.constant 0 : index
      %16 = vector.load %arg6[%c0_14, %c0_15] : memref<16x50xf32, #tpu.memory_space<vmem>>, vector<16x50xf32>
      tpu.vector_store %arg6[%c0_14, %c0_15], %15 {strides = array<i32>} : memref<16x50xf32, #tpu.memory_space<vmem>>, vector<16x50xf32>,
    } else {
    }
    return
  }
  func.func @transform_0(%arg0: i32, %arg1: i32, %arg2: i32) -> (i32, i32) {
    %c0_i32 = arith.constant 0 : i32
    return %arg0, %arg2 : i32, i32
  }
  func.func @transform_1(%arg0: i32, %arg1: i32, %arg2: i32) -> (i32, i32) {
    %c0_i32 = arith.constant 0 : i32
    return %arg2, %arg1 : i32, i32
  }
  func.func @transform_2(%arg0: i32, %arg1: i32, %arg2: i32) -> (i32, i32) {
    %c0_i32 = arith.constant 0 : i32
    %c0_i32_0 = arith.constant 0 : i32
    return %c0_i32, %arg1 : i32, i32
  }
  func.func @transform_3(%arg0: i32, %arg1: i32, %arg2: i32) -> (i32, i32) {
    %c0_i32 = arith.constant 0 : i32
    return %arg0, %arg1 : i32, i32
  }
}

</mosaic_0001>

<llo_original>
// kernel: decoder_forward.25
$region0: #{decoder_forward.25}
  #allocation0 [shape = 'u32[]', space=smem, size = 0x4, offset = 0x4, fixed_abs, tag = 'smem constant byte address 0x4 - core index']
  #allocation1 [shape = 'u32[72,128]{1,0:T(1,128)}', space=vmem, size = 0x9000, scoped, tag = 'internal scratch']
  #allocation2 [shape = 'f32[16,32]{1,0:T(8,128)}', space=vmem, size = 0x2000, scoped, tag = 'scratch operand']
  %s0 = inlined_call_operand.vmem [shape: f32[16,32], index: 0, kind: input, shape index: {}]
  %s1 = inlined_call_operand.vmem [shape: f32[32,32], index: 1, kind: input, shape index: {}]
  %s2 = inlined_call_operand.vmem [shape: f32[1,32], index: 2, kind: input, shape index: {}]
  %s3 = inlined_call_operand.vmem [shape: f32[16,32], index: 3, kind: output, shape index: {}]
  %s4 = sld [smem:[#allocation0]]
  $region30: #{decoder_forward.25} parent=0
    _
  %s6 = ssub.s32 1, %s4
  %s7 = scalar_select 0, %s6, %s4
  // Predicated region
  $region2: #{decoder_forward.25} parent=0 // pred_check
    _
  $region3: #{decoder_forward.25} parent=0 // pred_check_branch
    %9 = sbr.rel (0) target = $region5
  $region4: #{decoder_forward.25} parent=0 // pred_region
    _
  $region5: #{decoder_forward.25} parent=0 // pred_fallthru
    _
  // Predicated region
  $region6: #{decoder_forward.25} parent=0 // pred_check
    _
  $region7: #{decoder_forward.25} parent=0 // pred_check_branch
    %11 = sbr.rel (0) target = $region9
  $region8: #{decoder_forward.25} parent=0 // pred_region
    _
  $region9: #{decoder_forward.25} parent=0 // pred_fallthru
    _
  // Predicated region
  $region10: #{decoder_forward.25} parent=0 // pred_check
    _
  $region11: #{decoder_forward.25} parent=0 // pred_check_branch
    %13 = sbr.rel (0) target = $region13
  $region12: #{decoder_forward.25} parent=0 // pred_region
    _
  $region13: #{decoder_forward.25} parent=0 // pred_fallthru
    _
  %p14 = scmp.eq.s32.totalorder 0, 0
  // Predicated region
  $region14: #{decoder_forward.25} parent=0 // pred_check
    %p15 = pneg %p14
  $region15: #{decoder_forward.25} parent=0 // pred_check_branch
    %17 = sbr.rel (%p15) target = $region17
  $region16: #{decoder_forward.25} parent=0 // pred_region
    %vm18 = vcmask 261120
    %19 = vst.msk [vmem:[#allocation2] sm:$0xff] %vm18, 0.0
    %20 = vst.msk [vmem:[#allocation2 + $0x8] sm:$0xff] %vm18, 0.0
  $region17: #{decoder_forward.25} parent=0 // pred_fallthru
    _
  %v21 = vld [vmem:[#allocation2] sm:$0xff]
  %v22 = vld [vmem:[#allocation2 + $0x8] sm:$0xff]
  %v23 = vld [vmem:[%s0] sm:$0xff]
  %v24 = vld [vmem:[%s0 + $0x8] sm:$0xff]
  %v25 = vld [vmem:[%s1] sm:$0xff]
  %v26 = vld [vmem:[%s1 + $0x8] sm:$0xff]
  %v27 = vld [vmem:[%s1 + $0x10] sm:$0xff]
  %v28 = vld [vmem:[%s1 + $0x18] sm:$0xff]
  %vm29 = vcmask 261120
  %v31 = vsel %vm29, %v23, 0
  %v34 = vsel %vm29, %v24, 0
  %36 = vmatpush.msra.mxu0 0.0
  %37 = vmatpush.msra.mxu0 0.0
  %38 = vmatpush.msra.mxu0 0.0
  %39 = vmatpush.msra.mxu0 0.0
  %40 = vmatpush.msra.mxu0 0.0
  %41 = vmatpush.msra.mxu0 0.0
  %42 = vmatpush.msra.mxu0 0.0
  %43 = vmatpush.msra.mxu0 0.0
  %44 = vmatpush.msra.mxu0 0.0
  %45 = vmatpush.msra.mxu0 0.0
  %46 = vmatpush.msra.mxu0 0.0
  %47 = vmatpush.msra.mxu0 0.0
  %48 = vmatpush.msra.mxu0 %v28
  %49 = vmatpush.msra.mxu0 %v27
  %50 = vmatpush.msra.mxu0 %v26
  %51 = vmatpush.msra.mxu0 %v25
  %52 = vmatmul.f32.gmra.mxu0 %v31
  %v53 = vpop.f32.mrf.mxu0
  %v54 = vadd.f32 0.0, %v53
  %55 = vmatmul.f32.gmra.mxu0 %v34
  %v56 = vpop.f32.mrf.mxu0
  %v57 = vadd.f32 0.0, %v56
  %58 = vdwg.mxu0
  %v59 = vadd.f32 %v21, %v54
  %v60 = vadd.f32 %v22, %v57
  %61 = vst.msk [vmem:[#allocation2] sm:$0xff] %vm29, %v59
  %62 = vst.msk [vmem:[#allocation2 + $0x8] sm:$0xff] %vm29, %v60
  // Predicated region
  $region18: #{decoder_forward.25} parent=0 // pred_check
    %p63 = pneg %p14
  $region19: #{decoder_forward.25} parent=0 // pred_check_branch
    %65 = sbr.rel (%p63) target = $region21
  $region20: #{decoder_forward.25} parent=0 // pred_region
    %v66 = vld [vmem:[#allocation2] sm:$0xff]
    %v67 = vld [vmem:[#allocation2 + $0x8] sm:$0xff]
    %v68 = vld [vmem:[%s2] sm:$0x1]
    %v70 = vperm.slane %v68, 0
    %v72 = vadd.f32 %v66, %v70
    %v73 = vadd.f32 %v67, %v70
    %74 = vst.msk [vmem:[%s3] sm:$0xff] %vm29, %v72
    %75 = vst.msk [vmem:[%s3 + $0x8] sm:$0xff] %vm29, %v73
  $region21: #{decoder_forward.25} parent=0 // pred_fallthru
    _
  // Predicated region
  $region22: #{decoder_forward.25} parent=0 // pred_check
    _
  $region23: #{decoder_forward.25} parent=0 // pred_check_branch
    %77 = sbr.rel (0) target = $region25
  $region24: #{decoder_forward.25} parent=0 // pred_region
    _
  $region25: #{decoder_forward.25} parent=0 // pred_fallthru
    _
  // Predicated region
  $region26: #{decoder_forward.25} parent=0 // pred_check
    _
  $region27: #{decoder_forward.25} parent=0 // pred_check_branch
    %79 = sbr.rel (0) target = $region29
  $region28: #{decoder_forward.25} parent=0 // pred_region
    _
  $region29: #{decoder_forward.25} parent=0 // pred_fallthru
    _

// kernel: decoder_forward.39
$region0: #{decoder_forward.39}
  #allocation0 [shape = 'u32[]', space=smem, size = 0x4, offset = 0x4, fixed_abs, tag = 'smem constant byte address 0x4 - core index']
  #allocation1 [shape = 'u32[72,128]{1,0:T(1,128)}', space=vmem, size = 0x9000, scoped, tag = 'internal scratch']
  #allocation2 [shape = 'f32[16,64]{1,0:T(8,128)}', space=vmem, size = 0x2000, scoped, tag = 'scratch operand']
  %s0 = inlined_call_operand.vmem [shape: f32[16,32], index: 0, kind: input, shape index: {}]
  %s1 = inlined_call_operand.vmem [shape: f32[32,64], index: 1, kind: input, shape index: {}]
  %s2 = inlined_call_operand.vmem [shape: f32[1,64], index: 2, kind: input, shape index: {}]
  %s3 = inlined_call_operand.vmem [shape: f32[16,64], index: 3, kind: output, shape index: {}]
  %s4 = sld [smem:[#allocation0]]
  $region30: #{decoder_forward.39} parent=0
    _
  %s6 = ssub.s32 1, %s4
  %s7 = scalar_select 0, %s6, %s4
  // Predicated region
  $region2: #{decoder_forward.39} parent=0 // pred_check
    _
  $region3: #{decoder_forward.39} parent=0 // pred_check_branch
    %9 = sbr.rel (0) target = $region5
  $region4: #{decoder_forward.39} parent=0 // pred_region
    _
  $region5: #{decoder_forward.39} parent=0 // pred_fallthru
    _
  // Predicated region
  $region6: #{decoder_forward.39} parent=0 // pred_check
    _
  $region7: #{decoder_forward.39} parent=0 // pred_check_branch
    %11 = sbr.rel (0) target = $region9
  $region8: #{decoder_forward.39} parent=0 // pred_region
    _
  $region9: #{decoder_forward.39} parent=0 // pred_fallthru
    _
  // Predicated region
  $region10: #{decoder_forward.39} parent=0 // pred_check
    _
  $region11: #{decoder_forward.39} parent=0 // pred_check_branch
    %13 = sbr.rel (0) target = $region13
  $region12: #{decoder_forward.39} parent=0 // pred_region
    _
  $region13: #{decoder_forward.39} parent=0 // pred_fallthru
    _
  %p14 = scmp.eq.s32.totalorder 0, 0
  // Predicated region
  $region14: #{decoder_forward.39} parent=0 // pred_check
    %p15 = pneg %p14
  $region15: #{decoder_forward.39} parent=0 // pred_check_branch
    %17 = sbr.rel (%p15) target = $region17
  $region16: #{decoder_forward.39} parent=0 // pred_region
    %vm18 = vcmask 523264
    %19 = vst.msk [vmem:[#allocation2] sm:$0xff] %vm18, 0.0
    %20 = vst.msk [vmem:[#allocation2 + $0x8] sm:$0xff] %vm18, 0.0
  $region17: #{decoder_forward.39} parent=0 // pred_fallthru
    _
  %v21 = vld [vmem:[#allocation2] sm:$0xff]
  %v22 = vld [vmem:[#allocation2 + $0x8] sm:$0xff]
  %v23 = vld [vmem:[%s0] sm:$0xff]
  %v24 = vld [vmem:[%s0 + $0x8] sm:$0xff]
  %v25 = vld [vmem:[%s1] sm:$0xff]
  %v26 = vld [vmem:[%s1 + $0x8] sm:$0xff]
  %v27 = vld [vmem:[%s1 + $0x10] sm:$0xff]
  %v28 = vld [vmem:[%s1 + $0x18] sm:$0xff]
  %vm29 = vcmask 261120
  %v31 = vsel %vm29, %v23, 0
  %v34 = vsel %vm29, %v24, 0
  %36 = vmatpush.msra.mxu0 0.0
  %37 = vmatpush.msra.mxu0 0.0
  %38 = vmatpush.msra.mxu0 0.0
  %39 = vmatpush.msra.mxu0 0.0
  %40 = vmatpush.msra.mxu0 0.0
  %41 = vmatpush.msra.mxu0 0.0
  %42 = vmatpush.msra.mxu0 0.0
  %43 = vmatpush.msra.mxu0 0.0
  %44 = vmatpush.msra.mxu0 0.0
  %45 = vmatpush.msra.mxu0 0.0
  %46 = vmatpush.msra.mxu0 0.0
  %47 = vmatpush.msra.mxu0 0.0
  %48 = vmatpush.msra.mxu0 %v28
  %49 = vmatpush.msra.mxu0 %v27
  %50 = vmatpush.msra.mxu0 %v26
  %51 = vmatpush.msra.mxu0 %v25
  %52 = vmatmul.f32.gmra.mxu0 %v31
  %v53 = vpop.f32.mrf.mxu0
  %v54 = vadd.f32 0.0, %v53
  %55 = vmatmul.f32.gmra.mxu0 %v34
  %v56 = vpop.f32.mrf.mxu0
  %v57 = vadd.f32 0.0, %v56
  %58 = vdwg.mxu0
  %v59 = vadd.f32 %v21, %v54
  %v60 = vadd.f32 %v22, %v57
  %vm61 = vcmask 523264
  %62 = vst.msk [vmem:[#allocation2] sm:$0xff] %vm61, %v59
  %63 = vst.msk [vmem:[#allocation2 + $0x8] sm:$0xff] %vm61, %v60
  // Predicated region
  $region18: #{decoder_forward.39} parent=0 // pred_check
    %p64 = pneg %p14
  $region19: #{decoder_forward.39} parent=0 // pred_check_branch
    %66 = sbr.rel (%p64) target = $region21
  $region20: #{decoder_forward.39} parent=0 // pred_region
    %v67 = vld [vmem:[#allocation2] sm:$0xff]
    %v68 = vld [vmem:[#allocation2 + $0x8] sm:$0xff]
    %v69 = vld [vmem:[%s2] sm:$0x1]
    %v71 = vperm.slane %v69, 0
    %v73 = vadd.f32 %v67, %v71
    %v74 = vadd.f32 %v68, %v71
    %75 = vst.msk [vmem:[%s3] sm:$0xff] %vm61, %v73
    %76 = vst.msk [vmem:[%s3 + $0x8] sm:$0xff] %vm61, %v74
  $region21: #{decoder_forward.39} parent=0 // pred_fallthru
    _
  // Predicated region
  $region22: #{decoder_forward.39} parent=0 // pred_check
    _
  $region23: #{decoder_forward.39} parent=0 // pred_check_branch
    %78 = sbr.rel (0) target = $region25
  $region24: #{decoder_forward.39} parent=0 // pred_region
    _
  $region25: #{decoder_forward.39} parent=0 // pred_fallthru
    _
  // Predicated region
  $region26: #{decoder_forward.39} parent=0 // pred_check
    _
  $region27: #{decoder_forward.39} parent=0 // pred_check_branch
    %80 = sbr.rel (0) target = $region29
  $region28: #{decoder_forward.39} parent=0 // pred_region
    _
  $region29: #{decoder_forward.39} parent=0 // pred_fallthru
    _

// kernel: decoder_forward.23
$region0: #{decoder_forward.23}
  #allocation0 [shape = 'u32[]', space=smem, size = 0x4, offset = 0x4, fixed_abs, tag = 'smem constant byte address 0x4 - core index']
  #allocation1 [shape = 'u32[72,128]{1,0:T(1,128)}', space=vmem, size = 0x9000, scoped, tag = 'internal scratch']
  #allocation2 [shape = 'f32[16,96]{1,0:T(8,128)}', space=vmem, size = 0x2000, scoped, tag = 'scratch operand']
  %s0 = inlined_call_operand.vmem [shape: f32[16,32], index: 0, kind: input, shape index: {}]
  %s1 = inlined_call_operand.vmem [shape: f32[32,96], index: 1, kind: input, shape index: {}]
  %s2 = inlined_call_operand.vmem [shape: f32[1,96], index: 2, kind: input, shape index: {}]
  %s3 = inlined_call_operand.vmem [shape: f32[16,96], index: 3, kind: output, shape index: {}]
  %s4 = sld [smem:[#allocation0]]
  $region30: #{decoder_forward.23} parent=0
    _
  %s6 = ssub.s32 1, %s4
  %s7 = scalar_select 0, %s6, %s4
  // Predicated region
  $region2: #{decoder_forward.23} parent=0 // pred_check
    _
  $region3: #{decoder_forward.23} parent=0 // pred_check_branch
    %9 = sbr.rel (0) target = $region5
  $region4: #{decoder_forward.23} parent=0 // pred_region
    _
  $region5: #{decoder_forward.23} parent=0 // pred_fallthru
    _
  // Predicated region
  $region6: #{decoder_forward.23} parent=0 // pred_check
    _
  $region7: #{decoder_forward.23} parent=0 // pred_check_branch
    %11 = sbr.rel (0) target = $region9
  $region8: #{decoder_forward.23} parent=0 // pred_region
    _
  $region9: #{decoder_forward.23} parent=0 // pred_fallthru
    _
  // Predicated region
  $region10: #{decoder_forward.23} parent=0 // pred_check
    _
  $region11: #{decoder_forward.23} parent=0 // pred_check_branch
    %13 = sbr.rel (0) target = $region13
  $region12: #{decoder_forward.23} parent=0 // pred_region
    _
  $region13: #{decoder_forward.23} parent=0 // pred_fallthru
    _
  %p14 = scmp.eq.s32.totalorder 0, 0
  // Predicated region
  $region14: #{decoder_forward.23} parent=0 // pred_check
    %p15 = pneg %p14
  $region15: #{decoder_forward.23} parent=0 // pred_check_branch
    %17 = sbr.rel (%p15) target = $region17
  $region16: #{decoder_forward.23} parent=0 // pred_region
    %vm18 = vcmask 785408
    %19 = vst.msk [vmem:[#allocation2] sm:$0xff] %vm18, 0.0
    %20 = vst.msk [vmem:[#allocation2 + $0x8] sm:$0xff] %vm18, 0.0
  $region17: #{decoder_forward.23} parent=0 // pred_fallthru
    _
  %v21 = vld [vmem:[#allocation2] sm:$0xff]
  %v22 = vld [vmem:[#allocation2 + $0x8] sm:$0xff]
  %v23 = vld [vmem:[%s0] sm:$0xff]
  %v24 = vld [vmem:[%s0 + $0x8] sm:$0xff]
  %v25 = vld [vmem:[%s1] sm:$0xff]
  %v26 = vld [vmem:[%s1 + $0x8] sm:$0xff]
  %v27 = vld [vmem:[%s1 + $0x10] sm:$0xff]
  %v28 = vld [vmem:[%s1 + $0x18] sm:$0xff]
  %vm29 = vcmask 261120
  %v31 = vsel %vm29, %v23, 0
  %v34 = vsel %vm29, %v24, 0
  %36 = vmatpush.msra.mxu0 0.0
  %37 = vmatpush.msra.mxu0 0.0
  %38 = vmatpush.msra.mxu0 0.0
  %39 = vmatpush.msra.mxu0 0.0
  %40 = vmatpush.msra.mxu0 0.0
  %41 = vmatpush.msra.mxu0 0.0
  %42 = vmatpush.msra.mxu0 0.0
  %43 = vmatpush.msra.mxu0 0.0
  %44 = vmatpush.msra.mxu0 0.0
  %45 = vmatpush.msra.mxu0 0.0
  %46 = vmatpush.msra.mxu0 0.0
  %47 = vmatpush.msra.mxu0 0.0
  %48 = vmatpush.msra.mxu0 %v28
  %49 = vmatpush.msra.mxu0 %v27
  %50 = vmatpush.msra.mxu0 %v26
  %51 = vmatpush.msra.mxu0 %v25
  %52 = vmatmul.f32.gmra.mxu0 %v31
  %v53 = vpop.f32.mrf.mxu0
  %v54 = vadd.f32 0.0, %v53
  %55 = vmatmul.f32.gmra.mxu0 %v34
  %v56 = vpop.f32.mrf.mxu0
  %v57 = vadd.f32 0.0, %v56
  %58 = vdwg.mxu0
  %v59 = vadd.f32 %v21, %v54
  %v60 = vadd.f32 %v22, %v57
  %vm61 = vcmask 785408
  %62 = vst.msk [vmem:[#allocation2] sm:$0xff] %vm61, %v59
  %63 = vst.msk [vmem:[#allocation2 + $0x8] sm:$0xff] %vm61, %v60
  // Predicated region
  $region18: #{decoder_forward.23} parent=0 // pred_check
    %p64 = pneg %p14
  $region19: #{decoder_forward.23} parent=0 // pred_check_branch
    %66 = sbr.rel (%p64) target = $region21
  $region20: #{decoder_forward.23} parent=0 // pred_region
    %v67 = vld [vmem:[#allocation2] sm:$0xff]
    %v68 = vld [vmem:[#allocation2 + $0x8] sm:$0xff]
    %v69 = vld [vmem:[%s2] sm:$0x1]
    %v71 = vperm.slane %v69, 0
    %v73 = vadd.f32 %v67, %v71
    %v74 = vadd.f32 %v68, %v71
    %75 = vst.msk [vmem:[%s3] sm:$0xff] %vm61, %v73
    %76 = vst.msk [vmem:[%s3 + $0x8] sm:$0xff] %vm61, %v74
  $region21: #{decoder_forward.23} parent=0 // pred_fallthru
    _
  // Predicated region
  $region22: #{decoder_forward.23} parent=0 // pred_check
    _
  $region23: #{decoder_forward.23} parent=0 // pred_check_branch
    %78 = sbr.rel (0) target = $region25
  $region24: #{decoder_forward.23} parent=0 // pred_region
    _
  $region25: #{decoder_forward.23} parent=0 // pred_fallthru
    _
  // Predicated region
  $region26: #{decoder_forward.23} parent=0 // pred_check
    _
  $region27: #{decoder_forward.23} parent=0 // pred_check_branch
    %80 = sbr.rel (0) target = $region29
  $region28: #{decoder_forward.23} parent=0 // pred_region
    _
  $region29: #{decoder_forward.23} parent=0 // pred_fallthru
    _

// kernel: decoder_forward.24
$region0: #{decoder_forward.24}
  #allocation0 [shape = 'u32[]', space=smem, size = 0x4, offset = 0x4, fixed_abs, tag = 'smem constant byte address 0x4 - core index']
  #allocation1 [shape = 'u32[72,128]{1,0:T(1,128)}', space=vmem, size = 0x9000, scoped, tag = 'internal scratch']
  %s0 = inlined_call_operand.vmem [shape: f32[2,8,32], index: 0, kind: input, shape index: {}]
  %s1 = inlined_call_operand.vmem [shape: f32[2,8,32], index: 1, kind: input, shape index: {}]
  %s2 = inlined_call_operand.vmem [shape: f32[2,8,32], index: 2, kind: input, shape index: {}]
  %s3 = inlined_call_operand.vmem [shape: f32[2,1,8,8], index: 3, kind: input, shape index: {}]
  %s4 = inlined_call_operand.vmem [shape: f32[2,8,32], index: 4, kind: output, shape index: {}]
  %s5 = sld [smem:[#allocation0]]
  $region49: #{decoder_forward.24} parent=0
    _
  %s7 = ssub.s32 1, %s5
  %s8 = scalar_select 0, %s7, %s5
  loop: start=0, step=1, limit=4
  $region2: #{decoder_forward.24} parent=0 // loop_pre_header
    _
  $region3: #{decoder_forward.24} parent=0 // loop_header
    %s10 = sphi 0, %s14
    %p11 = scmp.ge.s32.totalorder %s10, 4
    %s20 = sphi 0, %s22
    %s23 = sphi 0, %s20
    %s24 = sphi 0, %s23
    %s40 = sphi 0, %s24
    %s46 = sphi 0, %s48
    %s49 = sphi 0, %s46
    %s50 = sphi 0, %s49
    %s66 = sphi 0, %s50
    %s72 = sphi 0, %s74
    %s75 = sphi 0, %s72
    %s76 = sphi 0, %s75
    %s92 = sphi 0, %s76
    %s98 = sphi 0, %s100
    %s101 = sphi 0, %s98
    %s102 = sphi 0, %s101
    %s118 = sphi 0, %s102
    %s124 = sphi 0, %s126
    %s127 = sphi 0, %s124
    %s128 = sphi 0, %s127
    %s144 = sphi 0, %s128
  $region4: #{decoder_forward.24} parent=0 // loop_header_branch
    %13 = sbr.rel (%p11) target = $region8
  $region5: #{decoder_forward.24} parent=0 // loop_body
    %s15 = ssub.s32 %s10, 1
    %s16 = ssub.s32 %s10, 2
    %s17 = sadd.s32 %s10, 1
    %s18 = ssub.s32 %s10, %s17
    %p19 = scmp.eq.s32.totalorder %s18, 0
    %s21 = sadd.s32 %s20, 1
    %s22 = scalar_select %p19, %s20, %s21
    %p25 = pneg %p19
    %p26 = scmp.eq.s32.totalorder %s10, 1
    %p27 = por %p25, %p26
    %p28 = scmp.ne.s32.totalorder %s20, %s23
    %p29 = scmp.eq.s32.totalorder %s10, 0
    %p30 = por %p28, %p29
    %p31 = scmp.ne.s32.totalorder %s20, %s23
    %p32 = scmp.eq.s32.totalorder %s15, 1
    %p33 = por %p31, %p32
    %p34 = scmp.ne.s32.totalorder %s23, %s24
    %p35 = scmp.eq.s32.totalorder %s15, 0
    %p36 = por %p34, %p35
    %p37 = scmp.ne.s32.totalorder %s23, %s24
    %p38 = scmp.eq.s32.totalorder %s16, 1
    %p39 = por %p37, %p38
    %p41 = scmp.ne.s32.totalorder %s24, %s40
    %p42 = scmp.eq.s32.totalorder %s16, 0
    %p43 = por %p41, %p42
    %s44 = ssub.s32 %s10, %s17
    %p45 = scmp.eq.s32.totalorder %s44, 0
    %s47 = sadd.s32 %s46, 1
    %s48 = scalar_select %p45, %s46, %s47
    %p51 = pneg %p45
    %p52 = scmp.eq.s32.totalorder %s10, 1
    %p53 = por %p51, %p52
    %p54 = scmp.ne.s32.totalorder %s46, %s49
    %p55 = scmp.eq.s32.totalorder %s10, 0
    %p56 = por %p54, %p55
    %p57 = scmp.ne.s32.totalorder %s46, %s49
    %p58 = scmp.eq.s32.totalorder %s15, 1
    %p59 = por %p57, %p58
    %p60 = scmp.ne.s32.totalorder %s49, %s50
    %p61 = scmp.eq.s32.totalorder %s15, 0
    %p62 = por %p60, %p61
    %p63 = scmp.ne.s32.totalorder %s49, %s50
    %p64 = scmp.eq.s32.totalorder %s16, 1
    %p65 = por %p63, %p64
    %p67 = scmp.ne.s32.totalorder %s50, %s66
    %p68 = scmp.eq.s32.totalorder %s16, 0
    %p69 = por %p67, %p68
    %s70 = ssub.s32 %s10, %s17
    %p71 = scmp.eq.s32.totalorder %s70, 0
    %s73 = sadd.s32 %s72, 1
    %s74 = scalar_select %p71, %s72, %s73
    %p77 = pneg %p71
    %p78 = scmp.eq.s32.totalorder %s10, 1
    %p79 = por %p77, %p78
    %p80 = scmp.ne.s32.totalorder %s72, %s75
    %p81 = scmp.eq.s32.totalorder %s10, 0
    %p82 = por %p80, %p81
    %p83 = scmp.ne.s32.totalorder %s72, %s75
    %p84 = scmp.eq.s32.totalorder %s15, 1
    %p85 = por %p83, %p84
    %p86 = scmp.ne.s32.totalorder %s75, %s76
    %p87 = scmp.eq.s32.totalorder %s15, 0
    %p88 = por %p86, %p87
    %p89 = scmp.ne.s32.totalorder %s75, %s76
    %p90 = scmp.eq.s32.totalorder %s16, 1
    %p91 = por %p89, %p90
    %p93 = scmp.ne.s32.totalorder %s76, %s92
    %p94 = scmp.eq.s32.totalorder %s16, 0
    %p95 = por %p93, %p94
    %s96 = ssub.s32 %s10, %s17
    %p97 = scmp.eq.s32.totalorder %s96, 0
    %s99 = sadd.s32 %s98, 1
    %s100 = scalar_select %p97, %s98, %s99
    %p103 = pneg %p97
    %p104 = scmp.eq.s32.totalorder %s10, 1
    %p105 = por %p103, %p104
    %p106 = scmp.ne.s32.totalorder %s98, %s101
    %p107 = scmp.eq.s32.totalorder %s10, 0
    %p108 = por %p106, %p107
    %p109 = scmp.ne.s32.totalorder %s98, %s101
    %p110 = scmp.eq.s32.totalorder %s15, 1
    %p111 = por %p109, %p110
    %p112 = scmp.ne.s32.totalorder %s101, %s102
    %p113 = scmp.eq.s32.totalorder %s15, 0
    %p114 = por %p112, %p113
    %p115 = scmp.ne.s32.totalorder %s101, %s102
    %p116 = scmp.eq.s32.totalorder %s16, 1
    %p117 = por %p115, %p116
    %p119 = scmp.ne.s32.totalorder %s102, %s118
    %p120 = scmp.eq.s32.totalorder %s16, 0
    %p121 = por %p119, %p120
    %s122 = ssub.s32 %s10, %s17
    %p123 = scmp.eq.s32.totalorder %s122, 0
    %s125 = sadd.s32 %s124, 1
    %s126 = scalar_select %p123, %s124, %s125
    %p129 = pneg %p123
    %p130 = scmp.eq.s32.totalorder %s10, 1
    %p131 = por %p129, %p130
    %p132 = scmp.ne.s32.totalorder %s124, %s127
    %p133 = scmp.eq.s32.totalorder %s10, 0
    %p134 = por %p132, %p133
    %p135 = scmp.ne.s32.totalorder %s124, %s127
    %p136 = scmp.eq.s32.totalorder %s15, 1
    %p137 = por %p135, %p136
    %p138 = scmp.ne.s32.totalorder %s127, %s128
    %p139 = scmp.eq.s32.totalorder %s15, 0
    %p140 = por %p138, %p139
    %p141 = scmp.ne.s32.totalorder %s127, %s128
    %p142 = scmp.eq.s32.totalorder %s16, 1
    %p143 = por %p141, %p142
    %p145 = scmp.ne.s32.totalorder %s128, %s144
    %p146 = scmp.eq.s32.totalorder %s16, 0
    %p147 = por %p145, %p146
    %p148 = scmp.le.s32.totalorder 1, %s10
    %p149 = scmp.lt.s32.totalorder %s10, 3
    %p150 = pnand %p148, %p149
    %p151 = pneg %p150
    // Predicated region
    $region9: #{decoder_forward.24} parent=5 // pred_check
      _
    $region10: #{decoder_forward.24} parent=5 // pred_check_branch
      %153 = sbr.rel (%p150) target = $region12
    $region11: #{decoder_forward.24} parent=5 // pred_region
      %s154 = ssub.s32 %s10, 1
    $region12: #{decoder_forward.24} parent=5 // pred_fallthru
      _
    %p155 = scmp.lt.s32.totalorder %s10, 2
    // Predicated region
    $region13: #{decoder_forward.24} parent=5 // pred_check
      %p156 = pneg %p155
    $region14: #{decoder_forward.24} parent=5 // pred_check_branch
      %158 = sbr.rel (%p156) target = $region16
    $region15: #{decoder_forward.24} parent=5 // pred_region
      // Predicated region
      $region17: #{decoder_forward.24} parent=15 // pred_check
        %p159 = pneg %p30
      $region18: #{decoder_forward.24} parent=15 // pred_check_branch
        %161 = sbr.rel (%p159) target = $region20
      $region19: #{decoder_forward.24} parent=15 // pred_region
        %p162 = scmp.lt.s32.totalorder %s10, 1
        %s163 = scalar_select %p162, %s10, 1
        %s164 = smul.addr %s163, 8
        %s165 = scalar_lea.vmem %s0, %s164
      $region20: #{decoder_forward.24} parent=15 // pred_fallthru
        _
      // Predicated region
      $region21: #{decoder_forward.24} parent=15 // pred_check
        %p166 = pneg %p56
      $region22: #{decoder_forward.24} parent=15 // pred_check_branch
        %168 = sbr.rel (%p166) target = $region24
      $region23: #{decoder_forward.24} parent=15 // pred_region
        %p169 = scmp.lt.s32.totalorder %s10, 1
        %s170 = scalar_select %p169, %s10, 1
        %s171 = smul.addr %s170, 8
        %s172 = scalar_lea.vmem %s1, %s171
      $region24: #{decoder_forward.24} parent=15 // pred_fallthru
        _
      // Predicated region
      $region25: #{decoder_forward.24} parent=15 // pred_check
        %p173 = pneg %p82
      $region26: #{decoder_forward.24} parent=15 // pred_check_branch
        %175 = sbr.rel (%p173) target = $region28
      $region27: #{decoder_forward.24} parent=15 // pred_region
        %p176 = scmp.lt.s32.totalorder %s10, 1
        %s177 = scalar_select %p176, %s10, 1
        %s178 = smul.addr %s177, 8
        %s179 = scalar_lea.vmem %s2, %s178
      $region28: #{decoder_forward.24} parent=15 // pred_fallthru
        _
      // Predicated region
      $region29: #{decoder_forward.24} parent=15 // pred_check
        %p180 = pneg %p108
      $region30: #{decoder_forward.24} parent=15 // pred_check_branch
        %182 = sbr.rel (%p180) target = $region32
      $region31: #{decoder_forward.24} parent=15 // pred_region
        %p183 = scmp.lt.s32.totalorder %s10, 1
        %s184 = scalar_select %p183, %s10, 1
        %s185 = smul.addr %s184, 8
        %s186 = scalar_lea.vmem %s3, %s185
      $region32: #{decoder_forward.24} parent=15 // pred_fallthru
        _
    $region16: #{decoder_forward.24} parent=5 // pred_fallthru
      _
    %p187 = scmp.le.s32.totalorder 1, %s10
    %p188 = scmp.lt.s32.totalorder %s10, 3
    %p189 = pnand %p187, %p188
    %p190 = pneg %p189
    // Predicated region
    $region33: #{decoder_forward.24} parent=5 // pred_check
      _
    $region34: #{decoder_forward.24} parent=5 // pred_check_branch
      %192 = sbr.rel (%p189) target = $region36
    $region35: #{decoder_forward.24} parent=5 // pred_region
      %s193 = ssub.s32 %s10, 1
      %p194 = scmp.lt.s32.totalorder %s15, 1
      %s195 = scalar_select %p194, %s15, 1
      %s196 = smul.addr %s195, 8
      %s197 = scalar_lea.vmem %s0, %s196
      %p198 = pneg %p36
      %p199 = pneg %p33
      %p200 = scmp.lt.s32.totalorder %s15, 1
      %s201 = scalar_select %p200, %s15, 1
      %s202 = smul.addr %s201, 8
      %s203 = scalar_lea.vmem %s1, %s202
      %p204 = pneg %p62
      %p205 = pneg %p59
      %p206 = scmp.lt.s32.totalorder %s15, 1
      %s207 = scalar_select %p206, %s15, 1
      %s208 = smul.addr %s207, 8
      %s209 = scalar_lea.vmem %s2, %s208
      %p210 = pneg %p88
      %p211 = pneg %p85
      %p212 = scmp.lt.s32.totalorder %s15, 1
      %s213 = scalar_select %p212, %s15, 1
      %s214 = smul.addr %s213, 8
      %s215 = scalar_lea.vmem %s3, %s214
      %p216 = pneg %p114
      %p217 = pneg %p111
      %p218 = pneg %p140
      %p219 = pneg %p137
      %p220 = scmp.lt.s32.totalorder %s15, 1
      %s221 = scalar_select %p220, %s15, 1
      %s222 = smul.addr %s221, 8
      %s223 = scalar_lea.vmem %s4, %s222
      %p224 = scmp.lt.s32.totalorder %s15, 1
      %s225 = scalar_select %p224, %s15, 1
      %s226 = smul.addr %s225, 8
      %s227 = scalar_lea.vmem %s0, %s226
      %p228 = scmp.lt.s32.totalorder %s15, 1
      %s229 = scalar_select %p228, %s15, 1
      %s230 = smul.addr %s229, 8
      %s231 = scalar_lea.vmem %s1, %s230
      %p232 = scmp.lt.s32.totalorder %s15, 1
      %s233 = scalar_select %p232, %s15, 1
      %s234 = smul.addr %s233, 8
      %s235 = scalar_lea.vmem %s2, %s234
      %p236 = scmp.lt.s32.totalorder %s15, 1
      %s237 = scalar_select %p236, %s15, 1
      %s238 = smul.addr %s237, 8
      %s239 = scalar_lea.vmem %s3, %s238
      %p240 = scmp.lt.s32.totalorder %s15, 1
      %s241 = scalar_select %p240, %s15, 1
      %s242 = smul.addr %s241, 8
      %s243 = scalar_lea.vmem %s4, %s242
      %v244 = vld [vmem:[%s227] sm:$0xff]
      %v245 = vld [vmem:[%s231] sm:$0xff]
      %v246 = vld [vmem:[%s235] sm:$0xff]
      %v247 = vld [vmem:[%s239] sm:$0xff]
      %vm248 = vcmp.gt.f32.partialorder %v247, 0.0
      %vm249 = vcmask 64512
      %v251 = vsel %vm249, %v244, 0
      %v254 = vsel %vm249, %v245, 0
      %256 = vmatpush.xpose.msra.mxu0 0.0
      %257 = vmatpush.xpose.msra.mxu0 0.0
      %258 = vmatpush.xpose.msra.mxu0 0.0
      %259 = vmatpush.xpose.msra.mxu0 0.0
      %260 = vmatpush.xpose.msra.mxu0 0.0
      %261 = vmatpush.xpose.msra.mxu0 0.0
      %262 = vmatpush.xpose.msra.mxu0 0.0
      %263 = vmatpush.xpose.msra.mxu0 0.0
      %264 = vmatpush.xpose.msra.mxu0 0.0
      %265 = vmatpush.xpose.msra.mxu0 0.0
      %266 = vmatpush.xpose.msra.mxu0 0.0
      %267 = vmatpush.xpose.msra.mxu0 0.0
      %268 = vmatpush.xpose.msra.mxu0 0.0
      %269 = vmatpush.xpose.msra.mxu0 0.0
      %270 = vmatpush.xpose.msra.mxu0 0.0
      %271 = vmatpush.xpose.msra.mxu0 %v254
      %272 = vmatmul.f32.gmra.mxu0 %v251
      %v273 = vpop.f32.mrf.mxu0
      %v274 = vadd.f32 0.0, %v273
      %275 = vdwg.mxu0
      %v276 = vmul.f32 %v274, 0.35355338
      %v277 = vsel %vm248, %v276, -1e+10
      %v278 = vsel %vm249, %v277, -inf
      %279 = vmax.xlane.f32.xlu0 %v278
      %v280 = vpop.xlane.xlu0 %279
      %v281 = vsub.f32 %v277, %v280
      %v282 = vmul.f32 %v281, 1.442695
      %v283 = vpow.pop %v282
      %v284 = vsel %vm249, %v283, 0.0
      %285 = vadd.xlane.f32.xlu0 %v284
      %v286 = vpop.xlane.xlu0 %285
      %v287 = vrcp.pop %v286
      %v288 = vmul.f32 %v283, %v287
      %v290 = vsel %vm249, %v288, 0
      %292 = vmatpush.msra.mxu0 0.0
      %293 = vmatpush.msra.mxu0 0.0
      %294 = vmatpush.msra.mxu0 0.0
      %295 = vmatpush.msra.mxu0 0.0
      %296 = vmatpush.msra.mxu0 0.0
      %297 = vmatpush.msra.mxu0 0.0
      %298 = vmatpush.msra.mxu0 0.0
      %299 = vmatpush.msra.mxu0 0.0
      %300 = vmatpush.msra.mxu0 0.0
      %301 = vmatpush.msra.mxu0 0.0
      %302 = vmatpush.msra.mxu0 0.0
      %303 = vmatpush.msra.mxu0 0.0
      %304 = vmatpush.msra.mxu0 0.0
      %305 = vmatpush.msra.mxu0 0.0
      %306 = vmatpush.msra.mxu0 0.0
      %307 = vmatpush.msra.mxu0 %v246
      %308 = vmatmul.f32.gmra.mxu0 %v290
      %v309 = vpop.f32.mrf.mxu0
      %v310 = vadd.f32 0.0, %v309
      %311 = vdwg.mxu0
      %312 = vrot.lane.b32.xlu0 %v244, 120
      %v313 = vpop.permute.xlu0 %312
      %314 = vrot.lane.b32.xlu0 %v245, 120
      %v315 = vpop.permute.xlu0 %314
      %v316 = vsel %vm249, %v313, 0
      %v318 = vsel %vm249, %v315, 0
      %320 = vmatpush.xpose.msra.mxu0 0.0
      %321 = vmatpush.xpose.msra.mxu0 0.0
      %322 = vmatpush.xpose.msra.mxu0 0.0
      %323 = vmatpush.xpose.msra.mxu0 0.0
      %324 = vmatpush.xpose.msra.mxu0 0.0
      %325 = vmatpush.xpose.msra.mxu0 0.0
      %326 = vmatpush.xpose.msra.mxu0 0.0
      %327 = vmatpush.xpose.msra.mxu0 0.0
      %328 = vmatpush.xpose.msra.mxu0 0.0
      %329 = vmatpush.xpose.msra.mxu0 0.0
      %330 = vmatpush.xpose.msra.mxu0 0.0
      %331 = vmatpush.xpose.msra.mxu0 0.0
      %332 = vmatpush.xpose.msra.mxu0 0.0
      %333 = vmatpush.xpose.msra.mxu0 0.0
      %334 = vmatpush.xpose.msra.mxu0 0.0
      %335 = vmatpush.xpose.msra.mxu0 %v318
      %336 = vmatmul.f32.gmra.mxu0 %v316
      %v337 = vpop.f32.mrf.mxu0
      %v338 = vadd.f32 0.0, %v337
      %339 = vdwg.mxu0
      %v340 = vmul.f32 %v338, 0.35355338
      %v341 = vsel %vm248, %v340, -1e+10
      %v342 = vsel %vm249, %v341, -inf
      %343 = vmax.xlane.f32.xlu0 %v342
      %v344 = vpop.xlane.xlu0 %343
      %v345 = vsub.f32 %v341, %v344
      %v346 = vmul.f32 %v345, 1.442695
      %v347 = vpow.pop %v346
      %v348 = vsel %vm249, %v347, 0.0
      %349 = vadd.xlane.f32.xlu0 %v348
      %v350 = vpop.xlane.xlu0 %349
      %v351 = vrcp.pop %v350
      %v352 = vmul.f32 %v347, %v351
      %354 = vrot.lane.b32.xlu0 %v246, 120
      %v355 = vpop.permute.xlu0 %354
      %v358 = vsel %vm249, %v352, 0
      %360 = vmatpush.msra.mxu0 0.0
      %361 = vmatpush.msra.mxu0 0.0
      %362 = vmatpush.msra.mxu0 0.0
      %363 = vmatpush.msra.mxu0 0.0
      %364 = vmatpush.msra.mxu0 0.0
      %365 = vmatpush.msra.mxu0 0.0
      %366 = vmatpush.msra.mxu0 0.0
      %367 = vmatpush.msra.mxu0 0.0
      %368 = vmatpush.msra.mxu0 0.0
      %369 = vmatpush.msra.mxu0 0.0
      %370 = vmatpush.msra.mxu0 0.0
      %371 = vmatpush.msra.mxu0 0.0
      %372 = vmatpush.msra.mxu0 0.0
      %373 = vmatpush.msra.mxu0 0.0
      %374 = vmatpush.msra.mxu0 0.0
      %375 = vmatpush.msra.mxu0 %v355
      %376 = vmatmul.f32.gmra.mxu0 %v358
      %v377 = vpop.f32.mrf.mxu0
      %v378 = vadd.f32 0.0, %v377
      %379 = vdwg.mxu0
      %380 = vrot.lane.b32.xlu0 %v244, 112
      %v381 = vpop.permute.xlu0 %380
      %382 = vrot.lane.b32.xlu0 %v245, 112
      %v383 = vpop.permute.xlu0 %382
      %v384 = vsel %vm249, %v381, 0
      %v386 = vsel %vm249, %v383, 0
      %388 = vmatpush.xpose.msra.mxu0 0.0
      %389 = vmatpush.xpose.msra.mxu0 0.0
      %390 = vmatpush.xpose.msra.mxu0 0.0
      %391 = vmatpush.xpose.msra.mxu0 0.0
      %392 = vmatpush.xpose.msra.mxu0 0.0
      %393 = vmatpush.xpose.msra.mxu0 0.0
      %394 = vmatpush.xpose.msra.mxu0 0.0
      %395 = vmatpush.xpose.msra.mxu0 0.0
      %396 = vmatpush.xpose.msra.mxu0 0.0
      %397 = vmatpush.xpose.msra.mxu0 0.0
      %398 = vmatpush.xpose.msra.mxu0 0.0
      %399 = vmatpush.xpose.msra.mxu0 0.0
      %400 = vmatpush.xpose.msra.mxu0 0.0
      %401 = vmatpush.xpose.msra.mxu0 0.0
      %402 = vmatpush.xpose.msra.mxu0 0.0
      %403 = vmatpush.xpose.msra.mxu0 %v386
      %404 = vmatmul.f32.gmra.mxu0 %v384
      %v405 = vpop.f32.mrf.mxu0
      %v406 = vadd.f32 0.0, %v405
      %407 = vdwg.mxu0
      %v408 = vmul.f32 %v406, 0.35355338
      %v409 = vsel %vm248, %v408, -1e+10
      %v410 = vsel %vm249, %v409, -inf
      %411 = vmax.xlane.f32.xlu0 %v410
      %v412 = vpop.xlane.xlu0 %411
      %v413 = vsub.f32 %v409, %v412
      %v414 = vmul.f32 %v413, 1.442695
      %v415 = vpow.pop %v414
      %v416 = vsel %vm249, %v415, 0.0
      %417 = vadd.xlane.f32.xlu0 %v416
      %v418 = vpop.xlane.xlu0 %417
      %v419 = vrcp.pop %v418
      %v420 = vmul.f32 %v415, %v419
      %421 = vrot.lane.b32.xlu0 %v246, 112
      %v422 = vpop.permute.xlu0 %421
      %v425 = vsel %vm249, %v420, 0
      %427 = vmatpush.msra.mxu0 0.0
      %428 = vmatpush.msra.mxu0 0.0
      %429 = vmatpush.msra.mxu0 0.0
      %430 = vmatpush.msra.mxu0 0.0
      %431 = vmatpush.msra.mxu0 0.0
      %432 = vmatpush.msra.mxu0 0.0
      %433 = vmatpush.msra.mxu0 0.0
      %434 = vmatpush.msra.mxu0 0.0
      %435 = vmatpush.msra.mxu0 0.0
      %436 = vmatpush.msra.mxu0 0.0
      %437 = vmatpush.msra.mxu0 0.0
      %438 = vmatpush.msra.mxu0 0.0
      %439 = vmatpush.msra.mxu0 0.0
      %440 = vmatpush.msra.mxu0 0.0
      %441 = vmatpush.msra.mxu0 0.0
      %442 = vmatpush.msra.mxu0 %v422
      %443 = vmatmul.f32.gmra.mxu0 %v425
      %v444 = vpop.f32.mrf.mxu0
      %v445 = vadd.f32 0.0, %v444
      %446 = vdwg.mxu0
      %447 = vrot.lane.b32.xlu0 %v244, 104
      %v448 = vpop.permute.xlu0 %447
      %449 = vrot.lane.b32.xlu0 %v245, 104
      %v450 = vpop.permute.xlu0 %449
      %v451 = vsel %vm249, %v448, 0
      %v453 = vsel %vm249, %v450, 0
      %455 = vmatpush.xpose.msra.mxu0 0.0
      %456 = vmatpush.xpose.msra.mxu0 0.0
      %457 = vmatpush.xpose.msra.mxu0 0.0
      %458 = vmatpush.xpose.msra.mxu0 0.0
      %459 = vmatpush.xpose.msra.mxu0 0.0
      %460 = vmatpush.xpose.msra.mxu0 0.0
      %461 = vmatpush.xpose.msra.mxu0 0.0
      %462 = vmatpush.xpose.msra.mxu0 0.0
      %463 = vmatpush.xpose.msra.mxu0 0.0
      %464 = vmatpush.xpose.msra.mxu0 0.0
      %465 = vmatpush.xpose.msra.mxu0 0.0
      %466 = vmatpush.xpose.msra.mxu0 0.0
      %467 = vmatpush.xpose.msra.mxu0 0.0
      %468 = vmatpush.xpose.msra.mxu0 0.0
      %469 = vmatpush.xpose.msra.mxu0 0.0
      %470 = vmatpush.xpose.msra.mxu0 %v453
      %471 = vmatmul.f32.gmra.mxu0 %v451
      %v472 = vpop.f32.mrf.mxu0
      %v473 = vadd.f32 0.0, %v472
      %474 = vdwg.mxu0
      %v475 = vmul.f32 %v473, 0.35355338
      %v476 = vsel %vm248, %v475, -1e+10
      %v477 = vsel %vm249, %v476, -inf
      %478 = vmax.xlane.f32.xlu0 %v477
      %v479 = vpop.xlane.xlu0 %478
      %v480 = vsub.f32 %v476, %v479
      %v481 = vmul.f32 %v480, 1.442695
      %v482 = vpow.pop %v481
      %v483 = vsel %vm249, %v482, 0.0
      %484 = vadd.xlane.f32.xlu0 %v483
      %v485 = vpop.xlane.xlu0 %484
      %v486 = vrcp.pop %v485
      %v487 = vmul.f32 %v482, %v486
      %488 = vrot.lane.b32.xlu0 %v246, 104
      %v489 = vpop.permute.xlu0 %488
      %v492 = vsel %vm249, %v487, 0
      %494 = vmatpush.msra.mxu0 0.0
      %495 = vmatpush.msra.mxu0 0.0
      %496 = vmatpush.msra.mxu0 0.0
      %497 = vmatpush.msra.mxu0 0.0
      %498 = vmatpush.msra.mxu0 0.0
      %499 = vmatpush.msra.mxu0 0.0
      %500 = vmatpush.msra.mxu0 0.0
      %501 = vmatpush.msra.mxu0 0.0
      %502 = vmatpush.msra.mxu0 0.0
      %503 = vmatpush.msra.mxu0 0.0
      %504 = vmatpush.msra.mxu0 0.0
      %505 = vmatpush.msra.mxu0 0.0
      %506 = vmatpush.msra.mxu0 0.0
      %507 = vmatpush.msra.mxu0 0.0
      %508 = vmatpush.msra.mxu0 0.0
      %509 = vmatpush.msra.mxu0 %v489
      %510 = vmatmul.f32.gmra.mxu0 %v492
      %v511 = vpop.f32.mrf.mxu0
      %v512 = vadd.f32 0.0, %v511
      %513 = vdwg.mxu0
      %515 = vrot.lane.b32.xlu0 %v378, 8
      %v516 = vpop.permute.xlu0 %515
      %519 = vrot.lane.b32.xlu0 %v445, 16
      %v520 = vpop.permute.xlu0 %519
      %523 = vrot.lane.b32.xlu0 %v512, 24
      %v524 = vpop.permute.xlu0 %523
      %v526 = vsel %vm249, %v310, %v516
      %vm527 = vcmask 130048
      %v528 = vsel %vm527, %v526, %v520
      %vm529 = vcmask 195584
      %v530 = vsel %vm529, %v528, %v524
      %vm531 = vcmask 261120
      %532 = vst.msk [vmem:[%s243] sm:$0xff] %vm531, %v530
      %p533 = scmp.lt.s32.totalorder %s15, 1
      %s534 = scalar_select %p533, %s15, 1
      %s535 = smul.addr %s534, 8
      %s536 = scalar_lea.vmem %s4, %s535
      // Predicated region
      $region37: #{decoder_forward.24} parent=35 // pred_check
        %p537 = pneg %p137
      $region38: #{decoder_forward.24} parent=35 // pred_check_branch
        %539 = sbr.rel (%p537) target = $region40
      $region39: #{decoder_forward.24} parent=35 // pred_region
        _
      $region40: #{decoder_forward.24} parent=35 // pred_fallthru
        _
    $region36: #{decoder_forward.24} parent=5 // pred_fallthru
      _
    %p540 = scmp.le.s32.totalorder 2, %s10
    // Predicated region
    $region41: #{decoder_forward.24} parent=5 // pred_check
      %p541 = pneg %p540
    $region42: #{decoder_forward.24} parent=5 // pred_check_branch
      %543 = sbr.rel (%p541) target = $region44
    $region43: #{decoder_forward.24} parent=5 // pred_region
      %s544 = ssub.s32 %s10, 2
      // Predicated region
      $region45: #{decoder_forward.24} parent=43 // pred_check
        %p545 = pneg %p143
      $region46: #{decoder_forward.24} parent=43 // pred_check_branch
        %547 = sbr.rel (%p545) target = $region48
      $region47: #{decoder_forward.24} parent=43 // pred_region
        %p548 = scmp.lt.s32.totalorder %s16, 1
        %s549 = scalar_select %p548, %s16, 1
        %s550 = smul.addr %s549, 8
        %s551 = scalar_lea.vmem %s4, %s550
      $region48: #{decoder_forward.24} parent=43 // pred_fallthru
        _
    $region44: #{decoder_forward.24} parent=5 // pred_fallthru
      _
  $region6: #{decoder_forward.24} parent=0 // loop_footer
    %s14 = sadd.s32 1, %s10
  $region7: #{decoder_forward.24} parent=0 // loop_footer_branch
    %9 = sbr.rel target = $region3
  $region8: #{decoder_forward.24} parent=0 // loop_exit
    _

// kernel: decoder_forward.26
$region0: #{decoder_forward.26}
  #allocation0 [shape = 'u32[]', space=smem, size = 0x4, offset = 0x4, fixed_abs, tag = 'smem constant byte address 0x4 - core index']
  #allocation1 [shape = 'u32[72,128]{1,0:T(1,128)}', space=vmem, size = 0x9000, scoped, tag = 'internal scratch']
  %s0 = inlined_call_operand.vmem [shape: f32[16,32], index: 0, kind: input, shape index: {}]
  %s1 = inlined_call_operand.vmem [shape: f32[16,32], index: 1, kind: input, shape index: {}]
  %s2 = inlined_call_operand.vmem [shape: f32[1,32], index: 2, kind: input, shape index: {}]
  %s3 = inlined_call_operand.vmem [shape: f32[1,32], index: 3, kind: input, shape index: {}]
  %s4 = inlined_call_operand.vmem [shape: f32[16,32], index: 4, kind: output, shape index: {}]
  %s5 = sld [smem:[#allocation0]]
  $region26: #{decoder_forward.26} parent=0
    _
  %s7 = ssub.s32 1, %s5
  %s8 = scalar_select 0, %s7, %s5
  // Predicated region
  $region2: #{decoder_forward.26} parent=0 // pred_check
    _
  $region3: #{decoder_forward.26} parent=0 // pred_check_branch
    %10 = sbr.rel (0) target = $region5
  $region4: #{decoder_forward.26} parent=0 // pred_region
    _
  $region5: #{decoder_forward.26} parent=0 // pred_fallthru
    _
  // Predicated region
  $region6: #{decoder_forward.26} parent=0 // pred_check
    _
  $region7: #{decoder_forward.26} parent=0 // pred_check_branch
    %12 = sbr.rel (0) target = $region9
  $region8: #{decoder_forward.26} parent=0 // pred_region
    _
  $region9: #{decoder_forward.26} parent=0 // pred_fallthru
    _
  // Predicated region
  $region10: #{decoder_forward.26} parent=0 // pred_check
    _
  $region11: #{decoder_forward.26} parent=0 // pred_check_branch
    %14 = sbr.rel (0) target = $region13
  $region12: #{decoder_forward.26} parent=0 // pred_region
    _
  $region13: #{decoder_forward.26} parent=0 // pred_fallthru
    _
  // Predicated region
  $region14: #{decoder_forward.26} parent=0 // pred_check
    _
  $region15: #{decoder_forward.26} parent=0 // pred_check_branch
    %16 = sbr.rel (0) target = $region17
  $region16: #{decoder_forward.26} parent=0 // pred_region
    _
  $region17: #{decoder_forward.26} parent=0 // pred_fallthru
    _
  %v17 = vld [vmem:[%s0] sm:$0xff]
  %v18 = vld [vmem:[%s0 + $0x8] sm:$0xff]
  %v19 = vld [vmem:[%s1] sm:$0xff]
  %v20 = vld [vmem:[%s1 + $0x8] sm:$0xff]
  %v21 = vadd.f32 %v17, %v19
  %v22 = vadd.f32 %v18, %v20
  %vm23 = vcmask 261120
  %v24 = vsel %vm23, %v21, 0.0
  %25 = vadd.xlane.f32.xlu0 %v24
  %v26 = vpop.xlane.xlu0 %25
  %v27 = vsel %vm23, %v22, 0.0
  %28 = vadd.xlane.f32.xlu0 %v27
  %v29 = vpop.xlane.xlu0 %28
  %v30 = vrcp.pop 32.0
  %v31 = vmul.f32 32.0, %v30
  %v32 = vsub.f32 1.0, %v31
  %v33 = vmul.f32 %v30, %v32
  %v34 = vadd.f32 %v30, %v33
  %vm35 = vweird.f32 %v30
  %v36 = vsel %vm35, %v30, %v34
  %v37 = vmul.f32 %v26, %v36
  %v38 = vmul.f32 %v29, %v36
  %v39 = vsub.f32 %v21, %v37
  %v40 = vsub.f32 %v22, %v38
  %v41 = vmul.f32 %v39, %v39
  %v42 = vmul.f32 %v40, %v40
  %v43 = vsel %vm23, %v41, 0.0
  %44 = vadd.xlane.f32.xlu0 %v43
  %v45 = vpop.xlane.xlu0 %44
  %v46 = vsel %vm23, %v42, 0.0
  %47 = vadd.xlane.f32.xlu0 %v46
  %v48 = vpop.xlane.xlu0 %47
  %v49 = vmul.f32 %v45, %v36
  %v50 = vmul.f32 %v48, %v36
  %v51 = vadd.f32 %v49, 1e-05
  %v52 = vadd.f32 %v50, 1e-05
  %v53 = vrsqrt.pop %v51
  %v54 = vmul.f32 %v53, %v51
  %v55 = vmul.f32 %v54, %v53
  %v56 = vmul.f32 0.5, %v55
  %v57 = vsub.f32 1.5, %v56
  %v58 = vmul.f32 %v53, %v57
  %vm59 = vweird.f32 %v51
  %vm60 = vweird.f32 %v53
  %vm61 = vmor %vm59, %vm60
  %v62 = vsel %vm61, %v53, %v58
  %v63 = vrsqrt.pop %v52
  %v64 = vmul.f32 %v63, %v52
  %v65 = vmul.f32 %v64, %v63
  %v66 = vmul.f32 0.5, %v65
  %v67 = vsub.f32 1.5, %v66
  %v68 = vmul.f32 %v63, %v67
  %vm69 = vweird.f32 %v52
  %vm70 = vweird.f32 %v63
  %vm71 = vmor %vm69, %vm70
  %v72 = vsel %vm71, %v63, %v68
  %v73 = vmul.f32 %v39, %v62
  %v74 = vmul.f32 %v40, %v72
  %v75 = vld [vmem:[%s2] sm:$0x1]
  %v77 = vperm.slane %v75, 0
  %v79 = vmul.f32 %v73, %v77
  %v80 = vmul.f32 %v74, %v77
  %v81 = vld [vmem:[%s3] sm:$0x1]
  %v83 = vperm.slane %v81, 0
  %v85 = vadd.f32 %v79, %v83
  %v86 = vadd.f32 %v80, %v83
  %87 = vst.msk [vmem:[%s4] sm:$0xff] %vm23, %v85
  %88 = vst.msk [vmem:[%s4 + $0x8] sm:$0xff] %vm23, %v86
  // Predicated region
  $region18: #{decoder_forward.26} parent=0 // pred_check
    _
  $region19: #{decoder_forward.26} parent=0 // pred_check_branch
    %90 = sbr.rel (0) target = $region21
  $region20: #{decoder_forward.26} parent=0 // pred_region
    _
  $region21: #{decoder_forward.26} parent=0 // pred_fallthru
    _
  // Predicated region
  $region22: #{decoder_forward.26} parent=0 // pred_check
    _
  $region23: #{decoder_forward.26} parent=0 // pred_check_branch
    %92 = sbr.rel (0) target = $region25
  $region24: #{decoder_forward.26} parent=0 // pred_region
    _
  $region25: #{decoder_forward.26} parent=0 // pred_fallthru
    _

// kernel: decoder_forward.32
$region0: #{decoder_forward.32}
  #allocation0 [shape = 'u32[]', space=smem, size = 0x4, offset = 0x4, fixed_abs, tag = 'smem constant byte address 0x4 - core index']
  #allocation1 [shape = 'u32[72,128]{1,0:T(1,128)}', space=vmem, size = 0x9000, scoped, tag = 'internal scratch']
  %s0 = inlined_call_operand.vmem [shape: f32[16,32], index: 0, kind: input, shape index: {}]
  %s1 = inlined_call_operand.vmem [shape: f32[32,64], index: 1, kind: input, shape index: {}]
  %s2 = inlined_call_operand.vmem [shape: f32[1,64], index: 2, kind: input, shape index: {}]
  %s3 = inlined_call_operand.vmem [shape: f32[64,32], index: 3, kind: input, shape index: {}]
  %s4 = inlined_call_operand.vmem [shape: f32[1,32], index: 4, kind: input, shape index: {}]
  %s5 = inlined_call_operand.vmem [shape: f32[16,32], index: 5, kind: output, shape index: {}]
  %s6 = sld [smem:[#allocation0]]
  $region30: #{decoder_forward.32} parent=0
    _
  %s8 = ssub.s32 1, %s6
  %s9 = scalar_select 0, %s8, %s6
  // Predicated region
  $region2: #{decoder_forward.32} parent=0 // pred_check
    _
  $region3: #{decoder_forward.32} parent=0 // pred_check_branch
    %11 = sbr.rel (0) target = $region5
  $region4: #{decoder_forward.32} parent=0 // pred_region
    _
  $region5: #{decoder_forward.32} parent=0 // pred_fallthru
    _
  // Predicated region
  $region6: #{decoder_forward.32} parent=0 // pred_check
    _
  $region7: #{decoder_forward.32} parent=0 // pred_check_branch
    %13 = sbr.rel (0) target = $region9
  $region8: #{decoder_forward.32} parent=0 // pred_region
    _
  $region9: #{decoder_forward.32} parent=0 // pred_fallthru
    _
  // Predicated region
  $region10: #{decoder_forward.32} parent=0 // pred_check
    _
  $region11: #{decoder_forward.32} parent=0 // pred_check_branch
    %15 = sbr.rel (0) target = $region13
  $region12: #{decoder_forward.32} parent=0 // pred_region
    _
  $region13: #{decoder_forward.32} parent=0 // pred_fallthru
    _
  // Predicated region
  $region14: #{decoder_forward.32} parent=0 // pred_check
    _
  $region15: #{decoder_forward.32} parent=0 // pred_check_branch
    %17 = sbr.rel (0) target = $region17
  $region16: #{decoder_forward.32} parent=0 // pred_region
    _
  $region17: #{decoder_forward.32} parent=0 // pred_fallthru
    _
  // Predicated region
  $region18: #{decoder_forward.32} parent=0 // pred_check
    _
  $region19: #{decoder_forward.32} parent=0 // pred_check_branch
    %19 = sbr.rel (0) target = $region21
  $region20: #{decoder_forward.32} parent=0 // pred_region
    _
  $region21: #{decoder_forward.32} parent=0 // pred_fallthru
    _
  %v20 = vld [vmem:[%s0] sm:$0xff]
  %v21 = vld [vmem:[%s0 + $0x8] sm:$0xff]
  %v22 = vld [vmem:[%s1] sm:$0xff]
  %v23 = vld [vmem:[%s1 + $0x8] sm:$0xff]
  %v24 = vld [vmem:[%s1 + $0x10] sm:$0xff]
  %v25 = vld [vmem:[%s1 + $0x18] sm:$0xff]
  %v26 = vld [vmem:[%s2] sm:$0x1]
  %v28 = vperm.slane %v26, 0
  %vm30 = vcmask 261120
  %v32 = vsel %vm30, %v20, 0
  %v35 = vsel %vm30, %v21, 0
  %37 = vmatpush.msra.mxu0 0.0
  %38 = vmatpush.msra.mxu0 0.0
  %39 = vmatpush.msra.mxu0 0.0
  %40 = vmatpush.msra.mxu0 0.0
  %41 = vmatpush.msra.mxu0 0.0
  %42 = vmatpush.msra.mxu0 0.0
  %43 = vmatpush.msra.mxu0 0.0
  %44 = vmatpush.msra.mxu0 0.0
  %45 = vmatpush.msra.mxu0 0.0
  %46 = vmatpush.msra.mxu0 0.0
  %47 = vmatpush.msra.mxu0 0.0
  %48 = vmatpush.msra.mxu0 0.0
  %49 = vmatpush.msra.mxu0 %v25
  %50 = vmatpush.msra.mxu0 %v24
  %51 = vmatpush.msra.mxu0 %v23
  %52 = vmatpush.msra.mxu0 %v22
  %53 = vmatmul.f32.gmra.mxu0 %v32
  %v54 = vpop.f32.mrf.mxu0
  %v55 = vadd.f32 %v28, %v54
  %56 = vmatmul.f32.gmra.mxu0 %v35
  %v57 = vpop.f32.mrf.mxu0
  %v58 = vadd.f32 %v28, %v57
  %59 = vdwg.mxu0
  %v60 = vmax.f32 %v55, 0.0
  %v61 = vmax.f32 %v58, 0.0
  %v62 = vld [vmem:[%s3] sm:$0xff]
  %v63 = vld [vmem:[%s3 + $0x8] sm:$0xff]
  %v64 = vld [vmem:[%s3 + $0x10] sm:$0xff]
  %v65 = vld [vmem:[%s3 + $0x18] sm:$0xff]
  %v66 = vld [vmem:[%s3 + $0x20] sm:$0xff]
  %v67 = vld [vmem:[%s3 + $0x28] sm:$0xff]
  %v68 = vld [vmem:[%s3 + $0x30] sm:$0xff]
  %v69 = vld [vmem:[%s3 + $0x38] sm:$0xff]
  %v70 = vld [vmem:[%s4] sm:$0x1]
  %v72 = vperm.slane %v70, 0
  %vm74 = vcmask 523264
  %v76 = vsel %vm74, %v60, 0
  %v79 = vsel %vm74, %v61, 0
  %81 = vmatpush.msra.mxu0 0.0
  %82 = vmatpush.msra.mxu0 0.0
  %83 = vmatpush.msra.mxu0 0.0
  %84 = vmatpush.msra.mxu0 0.0
  %85 = vmatpush.msra.mxu0 0.0
  %86 = vmatpush.msra.mxu0 0.0
  %87 = vmatpush.msra.mxu0 0.0
  %88 = vmatpush.msra.mxu0 0.0
  %89 = vmatpush.msra.mxu0 %v69
  %90 = vmatpush.msra.mxu0 %v68
  %91 = vmatpush.msra.mxu0 %v67
  %92 = vmatpush.msra.mxu0 %v66
  %93 = vmatpush.msra.mxu0 %v65
  %94 = vmatpush.msra.mxu0 %v64
  %95 = vmatpush.msra.mxu0 %v63
  %96 = vmatpush.msra.mxu0 %v62
  %97 = vmatmul.f32.gmra.mxu0 %v76
  %v98 = vpop.f32.mrf.mxu0
  %v99 = vadd.f32 %v72, %v98
  %100 = vmatmul.f32.gmra.mxu0 %v79
  %v101 = vpop.f32.mrf.mxu0
  %v102 = vadd.f32 %v72, %v101
  %103 = vdwg.mxu0
  %104 = vst.msk [vmem:[%s5] sm:$0xff] %vm30, %v99
  %105 = vst.msk [vmem:[%s5 + $0x8] sm:$0xff] %vm30, %v102
  // Predicated region
  $region22: #{decoder_forward.32} parent=0 // pred_check
    _
  $region23: #{decoder_forward.32} parent=0 // pred_check_branch
    %107 = sbr.rel (0) target = $region25
  $region24: #{decoder_forward.32} parent=0 // pred_region
    _
  $region25: #{decoder_forward.32} parent=0 // pred_fallthru
    _
  // Predicated region
  $region26: #{decoder_forward.32} parent=0 // pred_check
    _
  $region27: #{decoder_forward.32} parent=0 // pred_check_branch
    %109 = sbr.rel (0) target = $region29
  $region28: #{decoder_forward.32} parent=0 // pred_region
    _
  $region29: #{decoder_forward.32} parent=0 // pred_fallthru
    _

// kernel: decoder_forward.29
$region0: #{decoder_forward.29}
  #allocation0 [shape = 'u32[]', space=smem, size = 0x4, offset = 0x4, fixed_abs, tag = 'smem constant byte address 0x4 - core index']
  #allocation1 [shape = 'u32[72,128]{1,0:T(1,128)}', space=vmem, size = 0x9000, scoped, tag = 'internal scratch']
  %s0 = inlined_call_operand.vmem [shape: f32[2,8,32], index: 0, kind: input, shape index: {}]
  %s1 = inlined_call_operand.vmem [shape: f32[2,8,32], index: 1, kind: input, shape index: {}]
  %s2 = inlined_call_operand.vmem [shape: f32[2,8,32], index: 2, kind: input, shape index: {}]
  %s3 = inlined_call_operand.vmem [shape: f32[2,1,1,8], index: 3, kind: input, shape index: {}]
  %s4 = inlined_call_operand.vmem [shape: f32[2,8,32], index: 4, kind: output, shape index: {}]
  %s5 = sld [smem:[#allocation0]]
  $region49: #{decoder_forward.29} parent=0
    _
  %s7 = ssub.s32 1, %s5
  %s8 = scalar_select 0, %s7, %s5
  loop: start=0, step=1, limit=4
  $region2: #{decoder_forward.29} parent=0 // loop_pre_header
    _
  $region3: #{decoder_forward.29} parent=0 // loop_header
    %s10 = sphi 0, %s14
    %p11 = scmp.ge.s32.totalorder %s10, 4
    %s20 = sphi 0, %s22
    %s23 = sphi 0, %s20
    %s24 = sphi 0, %s23
    %s40 = sphi 0, %s24
    %s46 = sphi 0, %s48
    %s49 = sphi 0, %s46
    %s50 = sphi 0, %s49
    %s66 = sphi 0, %s50
    %s72 = sphi 0, %s74
    %s75 = sphi 0, %s72
    %s76 = sphi 0, %s75
    %s92 = sphi 0, %s76
    %s98 = sphi 0, %s100
    %s101 = sphi 0, %s98
    %s102 = sphi 0, %s101
    %s118 = sphi 0, %s102
    %s124 = sphi 0, %s126
    %s127 = sphi 0, %s124
    %s128 = sphi 0, %s127
    %s144 = sphi 0, %s128
  $region4: #{decoder_forward.29} parent=0 // loop_header_branch
    %13 = sbr.rel (%p11) target = $region8
  $region5: #{decoder_forward.29} parent=0 // loop_body
    %s15 = ssub.s32 %s10, 1
    %s16 = ssub.s32 %s10, 2
    %s17 = sadd.s32 %s10, 1
    %s18 = ssub.s32 %s10, %s17
    %p19 = scmp.eq.s32.totalorder %s18, 0
    %s21 = sadd.s32 %s20, 1
    %s22 = scalar_select %p19, %s20, %s21
    %p25 = pneg %p19
    %p26 = scmp.eq.s32.totalorder %s10, 1
    %p27 = por %p25, %p26
    %p28 = scmp.ne.s32.totalorder %s20, %s23
    %p29 = scmp.eq.s32.totalorder %s10, 0
    %p30 = por %p28, %p29
    %p31 = scmp.ne.s32.totalorder %s20, %s23
    %p32 = scmp.eq.s32.totalorder %s15, 1
    %p33 = por %p31, %p32
    %p34 = scmp.ne.s32.totalorder %s23, %s24
    %p35 = scmp.eq.s32.totalorder %s15, 0
    %p36 = por %p34, %p35
    %p37 = scmp.ne.s32.totalorder %s23, %s24
    %p38 = scmp.eq.s32.totalorder %s16, 1
    %p39 = por %p37, %p38
    %p41 = scmp.ne.s32.totalorder %s24, %s40
    %p42 = scmp.eq.s32.totalorder %s16, 0
    %p43 = por %p41, %p42
    %s44 = ssub.s32 %s10, %s17
    %p45 = scmp.eq.s32.totalorder %s44, 0
    %s47 = sadd.s32 %s46, 1
    %s48 = scalar_select %p45, %s46, %s47
    %p51 = pneg %p45
    %p52 = scmp.eq.s32.totalorder %s10, 1
    %p53 = por %p51, %p52
    %p54 = scmp.ne.s32.totalorder %s46, %s49
    %p55 = scmp.eq.s32.totalorder %s10, 0
    %p56 = por %p54, %p55
    %p57 = scmp.ne.s32.totalorder %s46, %s49
    %p58 = scmp.eq.s32.totalorder %s15, 1
    %p59 = por %p57, %p58
    %p60 = scmp.ne.s32.totalorder %s49, %s50
    %p61 = scmp.eq.s32.totalorder %s15, 0
    %p62 = por %p60, %p61
    %p63 = scmp.ne.s32.totalorder %s49, %s50
    %p64 = scmp.eq.s32.totalorder %s16, 1
    %p65 = por %p63, %p64
    %p67 = scmp.ne.s32.totalorder %s50, %s66
    %p68 = scmp.eq.s32.totalorder %s16, 0
    %p69 = por %p67, %p68
    %s70 = ssub.s32 %s10, %s17
    %p71 = scmp.eq.s32.totalorder %s70, 0
    %s73 = sadd.s32 %s72, 1
    %s74 = scalar_select %p71, %s72, %s73
    %p77 = pneg %p71
    %p78 = scmp.eq.s32.totalorder %s10, 1
    %p79 = por %p77, %p78
    %p80 = scmp.ne.s32.totalorder %s72, %s75
    %p81 = scmp.eq.s32.totalorder %s10, 0
    %p82 = por %p80, %p81
    %p83 = scmp.ne.s32.totalorder %s72, %s75
    %p84 = scmp.eq.s32.totalorder %s15, 1
    %p85 = por %p83, %p84
    %p86 = scmp.ne.s32.totalorder %s75, %s76
    %p87 = scmp.eq.s32.totalorder %s15, 0
    %p88 = por %p86, %p87
    %p89 = scmp.ne.s32.totalorder %s75, %s76
    %p90 = scmp.eq.s32.totalorder %s16, 1
    %p91 = por %p89, %p90
    %p93 = scmp.ne.s32.totalorder %s76, %s92
    %p94 = scmp.eq.s32.totalorder %s16, 0
    %p95 = por %p93, %p94
    %s96 = ssub.s32 %s10, %s17
    %p97 = scmp.eq.s32.totalorder %s96, 0
    %s99 = sadd.s32 %s98, 1
    %s100 = scalar_select %p97, %s98, %s99
    %p103 = pneg %p97
    %p104 = scmp.eq.s32.totalorder %s10, 1
    %p105 = por %p103, %p104
    %p106 = scmp.ne.s32.totalorder %s98, %s101
    %p107 = scmp.eq.s32.totalorder %s10, 0
    %p108 = por %p106, %p107
    %p109 = scmp.ne.s32.totalorder %s98, %s101
    %p110 = scmp.eq.s32.totalorder %s15, 1
    %p111 = por %p109, %p110
    %p112 = scmp.ne.s32.totalorder %s101, %s102
    %p113 = scmp.eq.s32.totalorder %s15, 0
    %p114 = por %p112, %p113
    %p115 = scmp.ne.s32.totalorder %s101, %s102
    %p116 = scmp.eq.s32.totalorder %s16, 1
    %p117 = por %p115, %p116
    %p119 = scmp.ne.s32.totalorder %s102, %s118
    %p120 = scmp.eq.s32.totalorder %s16, 0
    %p121 = por %p119, %p120
    %s122 = ssub.s32 %s10, %s17
    %p123 = scmp.eq.s32.totalorder %s122, 0
    %s125 = sadd.s32 %s124, 1
    %s126 = scalar_select %p123, %s124, %s125
    %p129 = pneg %p123
    %p130 = scmp.eq.s32.totalorder %s10, 1
    %p131 = por %p129, %p130
    %p132 = scmp.ne.s32.totalorder %s124, %s127
    %p133 = scmp.eq.s32.totalorder %s10, 0
    %p134 = por %p132, %p133
    %p135 = scmp.ne.s32.totalorder %s124, %s127
    %p136 = scmp.eq.s32.totalorder %s15, 1
    %p137 = por %p135, %p136
    %p138 = scmp.ne.s32.totalorder %s127, %s128
    %p139 = scmp.eq.s32.totalorder %s15, 0
    %p140 = por %p138, %p139
    %p141 = scmp.ne.s32.totalorder %s127, %s128
    %p142 = scmp.eq.s32.totalorder %s16, 1
    %p143 = por %p141, %p142
    %p145 = scmp.ne.s32.totalorder %s128, %s144
    %p146 = scmp.eq.s32.totalorder %s16, 0
    %p147 = por %p145, %p146
    %p148 = scmp.le.s32.totalorder 1, %s10
    %p149 = scmp.lt.s32.totalorder %s10, 3
    %p150 = pnand %p148, %p149
    %p151 = pneg %p150
    // Predicated region
    $region9: #{decoder_forward.29} parent=5 // pred_check
      _
    $region10: #{decoder_forward.29} parent=5 // pred_check_branch
      %153 = sbr.rel (%p150) target = $region12
    $region11: #{decoder_forward.29} parent=5 // pred_region
      %s154 = ssub.s32 %s10, 1
    $region12: #{decoder_forward.29} parent=5 // pred_fallthru
      _
    %p155 = scmp.lt.s32.totalorder %s10, 2
    // Predicated region
    $region13: #{decoder_forward.29} parent=5 // pred_check
      %p156 = pneg %p155
    $region14: #{decoder_forward.29} parent=5 // pred_check_branch
      %158 = sbr.rel (%p156) target = $region16
    $region15: #{decoder_forward.29} parent=5 // pred_region
      // Predicated region
      $region17: #{decoder_forward.29} parent=15 // pred_check
        %p159 = pneg %p30
      $region18: #{decoder_forward.29} parent=15 // pred_check_branch
        %161 = sbr.rel (%p159) target = $region20
      $region19: #{decoder_forward.29} parent=15 // pred_region
        %p162 = scmp.lt.s32.totalorder %s10, 1
        %s163 = scalar_select %p162, %s10, 1
        %s164 = smul.addr %s163, 8
        %s165 = scalar_lea.vmem %s0, %s164
      $region20: #{decoder_forward.29} parent=15 // pred_fallthru
        _
      // Predicated region
      $region21: #{decoder_forward.29} parent=15 // pred_check
        %p166 = pneg %p56
      $region22: #{decoder_forward.29} parent=15 // pred_check_branch
        %168 = sbr.rel (%p166) target = $region24
      $region23: #{decoder_forward.29} parent=15 // pred_region
        %p169 = scmp.lt.s32.totalorder %s10, 1
        %s170 = scalar_select %p169, %s10, 1
        %s171 = smul.addr %s170, 8
        %s172 = scalar_lea.vmem %s1, %s171
      $region24: #{decoder_forward.29} parent=15 // pred_fallthru
        _
      // Predicated region
      $region25: #{decoder_forward.29} parent=15 // pred_check
        %p173 = pneg %p82
      $region26: #{decoder_forward.29} parent=15 // pred_check_branch
        %175 = sbr.rel (%p173) target = $region28
      $region27: #{decoder_forward.29} parent=15 // pred_region
        %p176 = scmp.lt.s32.totalorder %s10, 1
        %s177 = scalar_select %p176, %s10, 1
        %s178 = smul.addr %s177, 8
        %s179 = scalar_lea.vmem %s2, %s178
      $region28: #{decoder_forward.29} parent=15 // pred_fallthru
        _
      // Predicated region
      $region29: #{decoder_forward.29} parent=15 // pred_check
        %p180 = pneg %p108
      $region30: #{decoder_forward.29} parent=15 // pred_check_branch
        %182 = sbr.rel (%p180) target = $region32
      $region31: #{decoder_forward.29} parent=15 // pred_region
        %p183 = scmp.lt.s32.totalorder %s10, 1
        %s184 = scalar_select %p183, %s10, 1
        %s185 = scalar_lea.vmem %s3, %s184
      $region32: #{decoder_forward.29} parent=15 // pred_fallthru
        _
    $region16: #{decoder_forward.29} parent=5 // pred_fallthru
      _
    %p186 = scmp.le.s32.totalorder 1, %s10
    %p187 = scmp.lt.s32.totalorder %s10, 3
    %p188 = pnand %p186, %p187
    %p189 = pneg %p188
    // Predicated region
    $region33: #{decoder_forward.29} parent=5 // pred_check
      _
    $region34: #{decoder_forward.29} parent=5 // pred_check_branch
      %191 = sbr.rel (%p188) target = $region36
    $region35: #{decoder_forward.29} parent=5 // pred_region
      %s192 = ssub.s32 %s10, 1
      %p193 = scmp.lt.s32.totalorder %s15, 1
      %s194 = scalar_select %p193, %s15, 1
      %s195 = smul.addr %s194, 8
      %s196 = scalar_lea.vmem %s0, %s195
      %p197 = pneg %p36
      %p198 = pneg %p33
      %p199 = scmp.lt.s32.totalorder %s15, 1
      %s200 = scalar_select %p199, %s15, 1
      %s201 = smul.addr %s200, 8
      %s202 = scalar_lea.vmem %s1, %s201
      %p203 = pneg %p62
      %p204 = pneg %p59
      %p205 = scmp.lt.s32.totalorder %s15, 1
      %s206 = scalar_select %p205, %s15, 1
      %s207 = smul.addr %s206, 8
      %s208 = scalar_lea.vmem %s2, %s207
      %p209 = pneg %p88
      %p210 = pneg %p85
      %p211 = scmp.lt.s32.totalorder %s15, 1
      %s212 = scalar_select %p211, %s15, 1
      %s213 = scalar_lea.vmem %s3, %s212
      %p214 = pneg %p114
      %p215 = pneg %p111
      %p216 = pneg %p140
      %p217 = pneg %p137
      %p218 = scmp.lt.s32.totalorder %s15, 1
      %s219 = scalar_select %p218, %s15, 1
      %s220 = smul.addr %s219, 8
      %s221 = scalar_lea.vmem %s4, %s220
      %p222 = scmp.lt.s32.totalorder %s15, 1
      %s223 = scalar_select %p222, %s15, 1
      %s224 = smul.addr %s223, 8
      %s225 = scalar_lea.vmem %s0, %s224
      %p226 = scmp.lt.s32.totalorder %s15, 1
      %s227 = scalar_select %p226, %s15, 1
      %s228 = smul.addr %s227, 8
      %s229 = scalar_lea.vmem %s1, %s228
      %p230 = scmp.lt.s32.totalorder %s15, 1
      %s231 = scalar_select %p230, %s15, 1
      %s232 = smul.addr %s231, 8
      %s233 = scalar_lea.vmem %s2, %s232
      %p234 = scmp.lt.s32.totalorder %s15, 1
      %s235 = scalar_select %p234, %s15, 1
      %s236 = scalar_lea.vmem %s3, %s235
      %p237 = scmp.lt.s32.totalorder %s15, 1
      %s238 = scalar_select %p237, %s15, 1
      %s239 = smul.addr %s238, 8
      %s240 = scalar_lea.vmem %s4, %s239
      %v241 = vld [vmem:[%s225] sm:$0xff]
      %v242 = vld [vmem:[%s229] sm:$0xff]
      %v243 = vld [vmem:[%s233] sm:$0xff]
      %v244 = vld [vmem:[%s236] sm:$0x1]
      %vm245 = vcmp.gt.f32.partialorder %v244, 0.0
      %vm246 = vcmask 64512
      %v248 = vsel %vm246, %v241, 0
      %v251 = vsel %vm246, %v242, 0
      %253 = vmatpush.xpose.msra.mxu0 0.0
      %254 = vmatpush.xpose.msra.mxu0 0.0
      %255 = vmatpush.xpose.msra.mxu0 0.0
      %256 = vmatpush.xpose.msra.mxu0 0.0
      %257 = vmatpush.xpose.msra.mxu0 0.0
      %258 = vmatpush.xpose.msra.mxu0 0.0
      %259 = vmatpush.xpose.msra.mxu0 0.0
      %260 = vmatpush.xpose.msra.mxu0 0.0
      %261 = vmatpush.xpose.msra.mxu0 0.0
      %262 = vmatpush.xpose.msra.mxu0 0.0
      %263 = vmatpush.xpose.msra.mxu0 0.0
      %264 = vmatpush.xpose.msra.mxu0 0.0
      %265 = vmatpush.xpose.msra.mxu0 0.0
      %266 = vmatpush.xpose.msra.mxu0 0.0
      %267 = vmatpush.xpose.msra.mxu0 0.0
      %268 = vmatpush.xpose.msra.mxu0 %v251
      %269 = vmatmul.f32.gmra.mxu0 %v248
      %v270 = vpop.f32.mrf.mxu0
      %v271 = vadd.f32 0.0, %v270
      %272 = vdwg.mxu0
      %v273 = vmul.f32 %v271, 0.35355338
      %v274 = vsel %vm245, 1, 0
      %v275 = vperm.slane %v274, 0
      %vm276 = vcmp.eq.s32.totalorder %v275, 1
      %v277 = vsel %vm276, %v273, -1e+10
      %v278 = vsel %vm246, %v277, -inf
      %279 = vmax.xlane.f32.xlu0 %v278
      %v280 = vpop.xlane.xlu0 %279
      %v281 = vsub.f32 %v277, %v280
      %v282 = vmul.f32 %v281, 1.442695
      %v283 = vpow.pop %v282
      %v284 = vsel %vm246, %v283, 0.0
      %285 = vadd.xlane.f32.xlu0 %v284
      %v286 = vpop.xlane.xlu0 %285
      %v287 = vrcp.pop %v286
      %v288 = vmul.f32 %v283, %v287
      %v290 = vsel %vm246, %v288, 0
      %292 = vmatpush.msra.mxu0 0.0
      %293 = vmatpush.msra.mxu0 0.0
      %294 = vmatpush.msra.mxu0 0.0
      %295 = vmatpush.msra.mxu0 0.0
      %296 = vmatpush.msra.mxu0 0.0
      %297 = vmatpush.msra.mxu0 0.0
      %298 = vmatpush.msra.mxu0 0.0
      %299 = vmatpush.msra.mxu0 0.0
      %300 = vmatpush.msra.mxu0 0.0
      %301 = vmatpush.msra.mxu0 0.0
      %302 = vmatpush.msra.mxu0 0.0
      %303 = vmatpush.msra.mxu0 0.0
      %304 = vmatpush.msra.mxu0 0.0
      %305 = vmatpush.msra.mxu0 0.0
      %306 = vmatpush.msra.mxu0 0.0
      %307 = vmatpush.msra.mxu0 %v243
      %308 = vmatmul.f32.gmra.mxu0 %v290
      %v309 = vpop.f32.mrf.mxu0
      %v310 = vadd.f32 0.0, %v309
      %311 = vdwg.mxu0
      %312 = vrot.lane.b32.xlu0 %v241, 120
      %v313 = vpop.permute.xlu0 %312
      %314 = vrot.lane.b32.xlu0 %v242, 120
      %v315 = vpop.permute.xlu0 %314
      %v316 = vsel %vm246, %v313, 0
      %v318 = vsel %vm246, %v315, 0
      %320 = vmatpush.xpose.msra.mxu0 0.0
      %321 = vmatpush.xpose.msra.mxu0 0.0
      %322 = vmatpush.xpose.msra.mxu0 0.0
      %323 = vmatpush.xpose.msra.mxu0 0.0
      %324 = vmatpush.xpose.msra.mxu0 0.0
      %325 = vmatpush.xpose.msra.mxu0 0.0
      %326 = vmatpush.xpose.msra.mxu0 0.0
      %327 = vmatpush.xpose.msra.mxu0 0.0
      %328 = vmatpush.xpose.msra.mxu0 0.0
      %329 = vmatpush.xpose.msra.mxu0 0.0
      %330 = vmatpush.xpose.msra.mxu0 0.0
      %331 = vmatpush.xpose.msra.mxu0 0.0
      %332 = vmatpush.xpose.msra.mxu0 0.0
      %333 = vmatpush.xpose.msra.mxu0 0.0
      %334 = vmatpush.xpose.msra.mxu0 0.0
      %335 = vmatpush.xpose.msra.mxu0 %v318
      %336 = vmatmul.f32.gmra.mxu0 %v316
      %v337 = vpop.f32.mrf.mxu0
      %v338 = vadd.f32 0.0, %v337
      %339 = vdwg.mxu0
      %v340 = vmul.f32 %v338, 0.35355338
      %v341 = vsel %vm276, %v340, -1e+10
      %v342 = vsel %vm246, %v341, -inf
      %343 = vmax.xlane.f32.xlu0 %v342
      %v344 = vpop.xlane.xlu0 %343
      %v345 = vsub.f32 %v341, %v344
      %v346 = vmul.f32 %v345, 1.442695
      %v347 = vpow.pop %v346
      %v348 = vsel %vm246, %v347, 0.0
      %349 = vadd.xlane.f32.xlu0 %v348
      %v350 = vpop.xlane.xlu0 %349
      %v351 = vrcp.pop %v350
      %v352 = vmul.f32 %v347, %v351
      %354 = vrot.lane.b32.xlu0 %v243, 120
      %v355 = vpop.permute.xlu0 %354
      %v358 = vsel %vm246, %v352, 0
      %360 = vmatpush.msra.mxu0 0.0
      %361 = vmatpush.msra.mxu0 0.0
      %362 = vmatpush.msra.mxu0 0.0
      %363 = vmatpush.msra.mxu0 0.0
      %364 = vmatpush.msra.mxu0 0.0
      %365 = vmatpush.msra.mxu0 0.0
      %366 = vmatpush.msra.mxu0 0.0
      %367 = vmatpush.msra.mxu0 0.0
      %368 = vmatpush.msra.mxu0 0.0
      %369 = vmatpush.msra.mxu0 0.0
      %370 = vmatpush.msra.mxu0 0.0
      %371 = vmatpush.msra.mxu0 0.0
      %372 = vmatpush.msra.mxu0 0.0
      %373 = vmatpush.msra.mxu0 0.0
      %374 = vmatpush.msra.mxu0 0.0
      %375 = vmatpush.msra.mxu0 %v355
      %376 = vmatmul.f32.gmra.mxu0 %v358
      %v377 = vpop.f32.mrf.mxu0
      %v378 = vadd.f32 0.0, %v377
      %379 = vdwg.mxu0
      %380 = vrot.lane.b32.xlu0 %v241, 112
      %v381 = vpop.permute.xlu0 %380
      %382 = vrot.lane.b32.xlu0 %v242, 112
      %v383 = vpop.permute.xlu0 %382
      %v384 = vsel %vm246, %v381, 0
      %v386 = vsel %vm246, %v383, 0
      %388 = vmatpush.xpose.msra.mxu0 0.0
      %389 = vmatpush.xpose.msra.mxu0 0.0
      %390 = vmatpush.xpose.msra.mxu0 0.0
      %391 = vmatpush.xpose.msra.mxu0 0.0
      %392 = vmatpush.xpose.msra.mxu0 0.0
      %393 = vmatpush.xpose.msra.mxu0 0.0
      %394 = vmatpush.xpose.msra.mxu0 0.0
      %395 = vmatpush.xpose.msra.mxu0 0.0
      %396 = vmatpush.xpose.msra.mxu0 0.0
      %397 = vmatpush.xpose.msra.mxu0 0.0
      %398 = vmatpush.xpose.msra.mxu0 0.0
      %399 = vmatpush.xpose.msra.mxu0 0.0
      %400 = vmatpush.xpose.msra.mxu0 0.0
      %401 = vmatpush.xpose.msra.mxu0 0.0
      %402 = vmatpush.xpose.msra.mxu0 0.0
      %403 = vmatpush.xpose.msra.mxu0 %v386
      %404 = vmatmul.f32.gmra.mxu0 %v384
      %v405 = vpop.f32.mrf.mxu0
      %v406 = vadd.f32 0.0, %v405
      %407 = vdwg.mxu0
      %v408 = vmul.f32 %v406, 0.35355338
      %v409 = vsel %vm276, %v408, -1e+10
      %v410 = vsel %vm246, %v409, -inf
      %411 = vmax.xlane.f32.xlu0 %v410
      %v412 = vpop.xlane.xlu0 %411
      %v413 = vsub.f32 %v409, %v412
      %v414 = vmul.f32 %v413, 1.442695
      %v415 = vpow.pop %v414
      %v416 = vsel %vm246, %v415, 0.0
      %417 = vadd.xlane.f32.xlu0 %v416
      %v418 = vpop.xlane.xlu0 %417
      %v419 = vrcp.pop %v418
      %v420 = vmul.f32 %v415, %v419
      %421 = vrot.lane.b32.xlu0 %v243, 112
      %v422 = vpop.permute.xlu0 %421
      %v425 = vsel %vm246, %v420, 0
      %427 = vmatpush.msra.mxu0 0.0
      %428 = vmatpush.msra.mxu0 0.0
      %429 = vmatpush.msra.mxu0 0.0
      %430 = vmatpush.msra.mxu0 0.0
      %431 = vmatpush.msra.mxu0 0.0
      %432 = vmatpush.msra.mxu0 0.0
      %433 = vmatpush.msra.mxu0 0.0
      %434 = vmatpush.msra.mxu0 0.0
      %435 = vmatpush.msra.mxu0 0.0
      %436 = vmatpush.msra.mxu0 0.0
      %437 = vmatpush.msra.mxu0 0.0
      %438 = vmatpush.msra.mxu0 0.0
      %439 = vmatpush.msra.mxu0 0.0
      %440 = vmatpush.msra.mxu0 0.0
      %441 = vmatpush.msra.mxu0 0.0
      %442 = vmatpush.msra.mxu0 %v422
      %443 = vmatmul.f32.gmra.mxu0 %v425
      %v444 = vpop.f32.mrf.mxu0
      %v445 = vadd.f32 0.0, %v444
      %446 = vdwg.mxu0
      %447 = vrot.lane.b32.xlu0 %v241, 104
      %v448 = vpop.permute.xlu0 %447
      %449 = vrot.lane.b32.xlu0 %v242, 104
      %v450 = vpop.permute.xlu0 %449
      %v451 = vsel %vm246, %v448, 0
      %v453 = vsel %vm246, %v450, 0
      %455 = vmatpush.xpose.msra.mxu0 0.0
      %456 = vmatpush.xpose.msra.mxu0 0.0
      %457 = vmatpush.xpose.msra.mxu0 0.0
      %458 = vmatpush.xpose.msra.mxu0 0.0
      %459 = vmatpush.xpose.msra.mxu0 0.0
      %460 = vmatpush.xpose.msra.mxu0 0.0
      %461 = vmatpush.xpose.msra.mxu0 0.0
      %462 = vmatpush.xpose.msra.mxu0 0.0
      %463 = vmatpush.xpose.msra.mxu0 0.0
      %464 = vmatpush.xpose.msra.mxu0 0.0
      %465 = vmatpush.xpose.msra.mxu0 0.0
      %466 = vmatpush.xpose.msra.mxu0 0.0
      %467 = vmatpush.xpose.msra.mxu0 0.0
      %468 = vmatpush.xpose.msra.mxu0 0.0
      %469 = vmatpush.xpose.msra.mxu0 0.0
      %470 = vmatpush.xpose.msra.mxu0 %v453
      %471 = vmatmul.f32.gmra.mxu0 %v451
      %v472 = vpop.f32.mrf.mxu0
      %v473 = vadd.f32 0.0, %v472
      %474 = vdwg.mxu0
      %v475 = vmul.f32 %v473, 0.35355338
      %v476 = vsel %vm276, %v475, -1e+10
      %v477 = vsel %vm246, %v476, -inf
      %478 = vmax.xlane.f32.xlu0 %v477
      %v479 = vpop.xlane.xlu0 %478
      %v480 = vsub.f32 %v476, %v479
      %v481 = vmul.f32 %v480, 1.442695
      %v482 = vpow.pop %v481
      %v483 = vsel %vm246, %v482, 0.0
      %484 = vadd.xlane.f32.xlu0 %v483
      %v485 = vpop.xlane.xlu0 %484
      %v486 = vrcp.pop %v485
      %v487 = vmul.f32 %v482, %v486
      %488 = vrot.lane.b32.xlu0 %v243, 104
      %v489 = vpop.permute.xlu0 %488
      %v492 = vsel %vm246, %v487, 0
      %494 = vmatpush.msra.mxu0 0.0
      %495 = vmatpush.msra.mxu0 0.0
      %496 = vmatpush.msra.mxu0 0.0
      %497 = vmatpush.msra.mxu0 0.0
      %498 = vmatpush.msra.mxu0 0.0
      %499 = vmatpush.msra.mxu0 0.0
      %500 = vmatpush.msra.mxu0 0.0
      %501 = vmatpush.msra.mxu0 0.0
      %502 = vmatpush.msra.mxu0 0.0
      %503 = vmatpush.msra.mxu0 0.0
      %504 = vmatpush.msra.mxu0 0.0
      %505 = vmatpush.msra.mxu0 0.0
      %506 = vmatpush.msra.mxu0 0.0
      %507 = vmatpush.msra.mxu0 0.0
      %508 = vmatpush.msra.mxu0 0.0
      %509 = vmatpush.msra.mxu0 %v489
      %510 = vmatmul.f32.gmra.mxu0 %v492
      %v511 = vpop.f32.mrf.mxu0
      %v512 = vadd.f32 0.0, %v511
      %513 = vdwg.mxu0
      %515 = vrot.lane.b32.xlu0 %v378, 8
      %v516 = vpop.permute.xlu0 %515
      %519 = vrot.lane.b32.xlu0 %v445, 16
      %v520 = vpop.permute.xlu0 %519
      %523 = vrot.lane.b32.xlu0 %v512, 24
      %v524 = vpop.permute.xlu0 %523
      %v526 = vsel %vm246, %v310, %v516
      %vm527 = vcmask 130048
      %v528 = vsel %vm527, %v526, %v520
      %vm529 = vcmask 195584
      %v530 = vsel %vm529, %v528, %v524
      %vm531 = vcmask 261120
      %532 = vst.msk [vmem:[%s240] sm:$0xff] %vm531, %v530
      %p533 = scmp.lt.s32.totalorder %s15, 1
      %s534 = scalar_select %p533, %s15, 1
      %s535 = smul.addr %s534, 8
      %s536 = scalar_lea.vmem %s4, %s535
      // Predicated region
      $region37: #{decoder_forward.29} parent=35 // pred_check
        %p537 = pneg %p137
      $region38: #{decoder_forward.29} parent=35 // pred_check_branch
        %539 = sbr.rel (%p537) target = $region40
      $region39: #{decoder_forward.29} parent=35 // pred_region
        _
      $region40: #{decoder_forward.29} parent=35 // pred_fallthru
        _
    $region36: #{decoder_forward.29} parent=5 // pred_fallthru
      _
    %p540 = scmp.le.s32.totalorder 2, %s10
    // Predicated region
    $region41: #{decoder_forward.29} parent=5 // pred_check
      %p541 = pneg %p540
    $region42: #{decoder_forward.29} parent=5 // pred_check_branch
      %543 = sbr.rel (%p541) target = $region44
    $region43: #{decoder_forward.29} parent=5 // pred_region
      %s544 = ssub.s32 %s10, 2
      // Predicated region
      $region45: #{decoder_forward.29} parent=43 // pred_check
        %p545 = pneg %p143
      $region46: #{decoder_forward.29} parent=43 // pred_check_branch
        %547 = sbr.rel (%p545) target = $region48
      $region47: #{decoder_forward.29} parent=43 // pred_region
        %p548 = scmp.lt.s32.totalorder %s16, 1
        %s549 = scalar_select %p548, %s16, 1
        %s550 = smul.addr %s549, 8
        %s551 = scalar_lea.vmem %s4, %s550
      $region48: #{decoder_forward.29} parent=43 // pred_fallthru
        _
    $region44: #{decoder_forward.29} parent=5 // pred_fallthru
      _
  $region6: #{decoder_forward.29} parent=0 // loop_footer
    %s14 = sadd.s32 1, %s10
  $region7: #{decoder_forward.29} parent=0 // loop_footer_branch
    %9 = sbr.rel target = $region3
  $region8: #{decoder_forward.29} parent=0 // loop_exit
    _

// kernel: decoder_forward.40
$region0: #{decoder_forward.40}
  #allocation0 [shape = 'u32[]', space=smem, size = 0x4, offset = 0x4, fixed_abs, tag = 'smem constant byte address 0x4 - core index']
  #allocation1 [shape = 'u32[72,128]{1,0:T(1,128)}', space=vmem, size = 0x9000, scoped, tag = 'internal scratch']
  %s0 = inlined_call_operand.vmem [shape: f32[2,8,32], index: 0, kind: input, shape index: {}]
  %s1 = inlined_call_operand.vmem [shape: f32[2,8,32], index: 1, kind: input, shape index: {}]
  %s2 = inlined_call_operand.vmem [shape: f32[2,8,32], index: 2, kind: input, shape index: {}]
  %s3 = inlined_call_operand.vmem [shape: f32[2,1,1,8], index: 3, kind: input, shape index: {}]
  %s4 = inlined_call_operand.vmem [shape: f32[2,8,32], index: 4, kind: output, shape index: {0}]
  %s5 = inlined_call_operand.hbm [shape: f32[2,4,8,8], index: 5, kind: output, shape index: {1}]
  %6 = xla_tuple %s4, %s5
  %s7 = sld [smem:[#allocation0]]
  $region57: #{decoder_forward.40} parent=0
    _
  %s9 = ssub.s32 1, %s7
  %s10 = scalar_select 0, %s9, %s7
  $region1: #{decoder_forward.40} parent=0
    #allocation2 [shape = 'u8[32768]{0}', space=vmem, size = 0x8000, scoped, tag = 'output window, operand 1']
    #allocation3 [shape = 's32[2]{0}', space=sflag, size = 0x8, scoped, tag = 'scoped memory for decoder_forward.40']
    %11 = vsyncpa [#allocation3], 0
    %s12 = scalar_lea.sflag [#allocation3], 1
    %13 = vsyncpa %s12, 0
    loop: start=0, step=1, limit=4
    $region2: #{decoder_forward.40} parent=1 // loop_pre_header
      _
    $region3: #{decoder_forward.40} parent=1 // loop_header
      %s15 = sphi 0, %s19
      %p16 = scmp.ge.s32.totalorder %s15, 4
      %s25 = sphi 0, %s27
      %s28 = sphi 0, %s25
      %s29 = sphi 0, %s28
      %s45 = sphi 0, %s29
      %s51 = sphi 0, %s53
      %s54 = sphi 0, %s51
      %s55 = sphi 0, %s54
      %s71 = sphi 0, %s55
      %s77 = sphi 0, %s79
      %s80 = sphi 0, %s77
      %s81 = sphi 0, %s80
      %s97 = sphi 0, %s81
      %s103 = sphi 0, %s105
      %s106 = sphi 0, %s103
      %s107 = sphi 0, %s106
      %s123 = sphi 0, %s107
      %s129 = sphi 0, %s131
      %s132 = sphi 0, %s129
      %s133 = sphi 0, %s132
      %s149 = sphi 0, %s133
      %s155 = sphi 0, %s157
      %s158 = sphi 0, %s155
      %s159 = sphi 0, %s158
      %s175 = sphi 0, %s159
    $region4: #{decoder_forward.40} parent=1 // loop_header_branch
      %18 = sbr.rel (%p16) target = $region8
    $region5: #{decoder_forward.40} parent=1 // loop_body
      %s20 = ssub.s32 %s15, 1
      %s21 = ssub.s32 %s15, 2
      %s22 = sadd.s32 %s15, 1
      %s23 = ssub.s32 %s15, %s22
      %p24 = scmp.eq.s32.totalorder %s23, 0
      %s26 = sadd.s32 %s25, 1
      %s27 = scalar_select %p24, %s25, %s26
      %p30 = pneg %p24
      %p31 = scmp.eq.s32.totalorder %s15, 1
      %p32 = por %p30, %p31
      %p33 = scmp.ne.s32.totalorder %s25, %s28
      %p34 = scmp.eq.s32.totalorder %s15, 0
      %p35 = por %p33, %p34
      %p36 = scmp.ne.s32.totalorder %s25, %s28
      %p37 = scmp.eq.s32.totalorder %s20, 1
      %p38 = por %p36, %p37
      %p39 = scmp.ne.s32.totalorder %s28, %s29
      %p40 = scmp.eq.s32.totalorder %s20, 0
      %p41 = por %p39, %p40
      %p42 = scmp.ne.s32.totalorder %s28, %s29
      %p43 = scmp.eq.s32.totalorder %s21, 1
      %p44 = por %p42, %p43
      %p46 = scmp.ne.s32.totalorder %s29, %s45
      %p47 = scmp.eq.s32.totalorder %s21, 0
      %p48 = por %p46, %p47
      %s49 = ssub.s32 %s15, %s22
      %p50 = scmp.eq.s32.totalorder %s49, 0
      %s52 = sadd.s32 %s51, 1
      %s53 = scalar_select %p50, %s51, %s52
      %p56 = pneg %p50
      %p57 = scmp.eq.s32.totalorder %s15, 1
      %p58 = por %p56, %p57
      %p59 = scmp.ne.s32.totalorder %s51, %s54
      %p60 = scmp.eq.s32.totalorder %s15, 0
      %p61 = por %p59, %p60
      %p62 = scmp.ne.s32.totalorder %s51, %s54
      %p63 = scmp.eq.s32.totalorder %s20, 1
      %p64 = por %p62, %p63
      %p65 = scmp.ne.s32.totalorder %s54, %s55
      %p66 = scmp.eq.s32.totalorder %s20, 0
      %p67 = por %p65, %p66
      %p68 = scmp.ne.s32.totalorder %s54, %s55
      %p69 = scmp.eq.s32.totalorder %s21, 1
      %p70 = por %p68, %p69
      %p72 = scmp.ne.s32.totalorder %s55, %s71
      %p73 = scmp.eq.s32.totalorder %s21, 0
      %p74 = por %p72, %p73
      %s75 = ssub.s32 %s15, %s22
      %p76 = scmp.eq.s32.totalorder %s75, 0
      %s78 = sadd.s32 %s77, 1
      %s79 = scalar_select %p76, %s77, %s78
      %p82 = pneg %p76
      %p83 = scmp.eq.s32.totalorder %s15, 1
      %p84 = por %p82, %p83
      %p85 = scmp.ne.s32.totalorder %s77, %s80
      %p86 = scmp.eq.s32.totalorder %s15, 0
      %p87 = por %p85, %p86
      %p88 = scmp.ne.s32.totalorder %s77, %s80
      %p89 = scmp.eq.s32.totalorder %s20, 1
      %p90 = por %p88, %p89
      %p91 = scmp.ne.s32.totalorder %s80, %s81
      %p92 = scmp.eq.s32.totalorder %s20, 0
      %p93 = por %p91, %p92
      %p94 = scmp.ne.s32.totalorder %s80, %s81
      %p95 = scmp.eq.s32.totalorder %s21, 1
      %p96 = por %p94, %p95
      %p98 = scmp.ne.s32.totalorder %s81, %s97
      %p99 = scmp.eq.s32.totalorder %s21, 0
      %p100 = por %p98, %p99
      %s101 = ssub.s32 %s15, %s22
      %p102 = scmp.eq.s32.totalorder %s101, 0
      %s104 = sadd.s32 %s103, 1
      %s105 = scalar_select %p102, %s103, %s104
      %p108 = pneg %p102
      %p109 = scmp.eq.s32.totalorder %s15, 1
      %p110 = por %p108, %p109
      %p111 = scmp.ne.s32.totalorder %s103, %s106
      %p112 = scmp.eq.s32.totalorder %s15, 0
      %p113 = por %p111, %p112
      %p114 = scmp.ne.s32.totalorder %s103, %s106
      %p115 = scmp.eq.s32.totalorder %s20, 1
      %p116 = por %p114, %p115
      %p117 = scmp.ne.s32.totalorder %s106, %s107
      %p118 = scmp.eq.s32.totalorder %s20, 0
      %p119 = por %p117, %p118
      %p120 = scmp.ne.s32.totalorder %s106, %s107
      %p121 = scmp.eq.s32.totalorder %s21, 1
      %p122 = por %p120, %p121
      %p124 = scmp.ne.s32.totalorder %s107, %s123
      %p125 = scmp.eq.s32.totalorder %s21, 0
      %p126 = por %p124, %p125
      %s127 = ssub.s32 %s15, %s22
      %p128 = scmp.eq.s32.totalorder %s127, 0
      %s130 = sadd.s32 %s129, 1
      %s131 = scalar_select %p128, %s129, %s130
      %p134 = pneg %p128
      %p135 = scmp.eq.s32.totalorder %s15, 1
      %p136 = por %p134, %p135
      %p137 = scmp.ne.s32.totalorder %s129, %s132
      %p138 = scmp.eq.s32.totalorder %s15, 0
      %p139 = por %p137, %p138
      %p140 = scmp.ne.s32.totalorder %s129, %s132
      %p141 = scmp.eq.s32.totalorder %s20, 1
      %p142 = por %p140, %p141
      %p143 = scmp.ne.s32.totalorder %s132, %s133
      %p144 = scmp.eq.s32.totalorder %s20, 0
      %p145 = por %p143, %p144
      %p146 = scmp.ne.s32.totalorder %s132, %s133
      %p147 = scmp.eq.s32.totalorder %s21, 1
      %p148 = por %p146, %p147
      %p150 = scmp.ne.s32.totalorder %s133, %s149
      %p151 = scmp.eq.s32.totalorder %s21, 0
      %p152 = por %p150, %p151
      %s153 = ssub.s32 %s15, %s22
      %p154 = scmp.eq.s32.totalorder %s153, 0
      %s156 = sadd.s32 %s155, 1
      %s157 = scalar_select %p154, %s155, %s156
      %p160 = pneg %p154
      %p161 = scmp.eq.s32.totalorder %s15, 1
      %p162 = por %p160, %p161
      %p163 = scmp.ne.s32.totalorder %s155, %s158
      %p164 = scmp.eq.s32.totalorder %s15, 0
      %p165 = por %p163, %p164
      %p166 = scmp.ne.s32.totalorder %s155, %s158
      %p167 = scmp.eq.s32.totalorder %s20, 1
      %p168 = por %p166, %p167
      %p169 = scmp.ne.s32.totalorder %s158, %s159
      %p170 = scmp.eq.s32.totalorder %s20, 0
      %p171 = por %p169, %p170
      %p172 = scmp.ne.s32.totalorder %s158, %s159
      %p173 = scmp.eq.s32.totalorder %s21, 1
      %p174 = por %p172, %p173
      %p176 = scmp.ne.s32.totalorder %s159, %s175
      %p177 = scmp.eq.s32.totalorder %s21, 0
      %p178 = por %p176, %p177
      %p179 = scmp.le.s32.totalorder 1, %s15
      %p180 = scmp.lt.s32.totalorder %s15, 3
      %p181 = pnand %p179, %p180
      %p182 = pneg %p181
      // Predicated region
      $region9: #{decoder_forward.40} parent=5 // pred_check
        _
      $region10: #{decoder_forward.40} parent=5 // pred_check_branch
        %184 = sbr.rel (%p181) target = $region12
      $region11: #{decoder_forward.40} parent=5 // pred_region
        %s185 = ssub.s32 %s15, 1
      $region12: #{decoder_forward.40} parent=5 // pred_fallthru
        _
      %p186 = scmp.lt.s32.totalorder %s15, 2
      // Predicated region
      $region13: #{decoder_forward.40} parent=5 // pred_check
        %p187 = pneg %p186
      $region14: #{decoder_forward.40} parent=5 // pred_check_branch
        %189 = sbr.rel (%p187) target = $region16
      $region15: #{decoder_forward.40} parent=5 // pred_region
        // Predicated region
        $region17: #{decoder_forward.40} parent=15 // pred_check
          %p190 = pneg %p35
        $region18: #{decoder_forward.40} parent=15 // pred_check_branch
          %192 = sbr.rel (%p190) target = $region20
        $region19: #{decoder_forward.40} parent=15 // pred_region
          %p193 = scmp.lt.s32.totalorder %s15, 1
          %s194 = scalar_select %p193, %s15, 1
          %s195 = smul.addr %s194, 8
          %s196 = scalar_lea.vmem %s0, %s195
        $region20: #{decoder_forward.40} parent=15 // pred_fallthru
          _
        // Predicated region
        $region21: #{decoder_forward.40} parent=15 // pred_check
          %p197 = pneg %p61
        $region22: #{decoder_forward.40} parent=15 // pred_check_branch
          %199 = sbr.rel (%p197) target = $region24
        $region23: #{decoder_forward.40} parent=15 // pred_region
          %p200 = scmp.lt.s32.totalorder %s15, 1
          %s201 = scalar_select %p200, %s15, 1
          %s202 = smul.addr %s201, 8
          %s203 = scalar_lea.vmem %s1, %s202
        $region24: #{decoder_forward.40} parent=15 // pred_fallthru
          _
        // Predicated region
        $region25: #{decoder_forward.40} parent=15 // pred_check
          %p204 = pneg %p87
        $region26: #{decoder_forward.40} parent=15 // pred_check_branch
          %206 = sbr.rel (%p204) target = $region28
        $region27: #{decoder_forward.40} parent=15 // pred_region
          %p207 = scmp.lt.s32.totalorder %s15, 1
          %s208 = scalar_select %p207, %s15, 1
          %s209 = smul.addr %s208, 8
          %s210 = scalar_lea.vmem %s2, %s209
        $region28: #{decoder_forward.40} parent=15 // pred_fallthru
          _
        // Predicated region
        $region29: #{decoder_forward.40} parent=15 // pred_check
          %p211 = pneg %p113
        $region30: #{decoder_forward.40} parent=15 // pred_check_branch
          %213 = sbr.rel (%p211) target = $region32
        $region31: #{decoder_forward.40} parent=15 // pred_region
          %p214 = scmp.lt.s32.totalorder %s15, 1
          %s215 = scalar_select %p214, %s15, 1
          %s216 = scalar_lea.vmem %s3, %s215
        $region32: #{decoder_forward.40} parent=15 // pred_fallthru
          _
      $region16: #{decoder_forward.40} parent=5 // pred_fallthru
        _
      %p217 = scmp.le.s32.totalorder 1, %s15
      %p218 = scmp.lt.s32.totalorder %s15, 3
      %p219 = pnand %p217, %p218
      %p220 = pneg %p219
      // Predicated region
      $region33: #{decoder_forward.40} parent=5 // pred_check
        _
      $region34: #{decoder_forward.40} parent=5 // pred_check_branch
        %222 = sbr.rel (%p219) target = $region36
      $region35: #{decoder_forward.40} parent=5 // pred_region
        %s223 = ssub.s32 %s15, 1
        %p224 = scmp.lt.s32.totalorder %s20, 1
        %s225 = scalar_select %p224, %s20, 1
        %s226 = smul.addr %s225, 8
        %s227 = scalar_lea.vmem %s0, %s226
        %p228 = pneg %p41
        %p229 = pneg %p38
        %p230 = scmp.lt.s32.totalorder %s20, 1
        %s231 = scalar_select %p230, %s20, 1
        %s232 = smul.addr %s231, 8
        %s233 = scalar_lea.vmem %s1, %s232
        %p234 = pneg %p67
        %p235 = pneg %p64
        %p236 = scmp.lt.s32.totalorder %s20, 1
        %s237 = scalar_select %p236, %s20, 1
        %s238 = smul.addr %s237, 8
        %s239 = scalar_lea.vmem %s2, %s238
        %p240 = pneg %p93
        %p241 = pneg %p90
        %p242 = scmp.lt.s32.totalorder %s20, 1
        %s243 = scalar_select %p242, %s20, 1
        %s244 = scalar_lea.vmem %s3, %s243
        %p245 = pneg %p119
        %p246 = pneg %p116
        %p247 = pneg %p145
        %p248 = pneg %p142
        %p249 = scmp.lt.s32.totalorder %s20, 1
        %s250 = scalar_select %p249, %s20, 1
        %s251 = smul.addr %s250, 8
        %s252 = scalar_lea.vmem %s4, %s251
        %p253 = pneg %p171
        %p254 = pneg %p168
        %s255 = sand.u32 %s158, 1
        %s256 = scalar_lea.sflag [#allocation3], %s255
        %s257 = sand.u32 %s158, 1
        %s258 = smul.addr %s257, 32
        %s259 = scalar_lea.vmem [#allocation2], %s258
        %p260 = scmp.lt.s32.totalorder %s20, 1
        %s261 = scalar_select %p260, %s20, 1
        %s262 = smul.addr %s261, 8
        %s263 = scalar_lea.vmem %s0, %s262
        %p264 = scmp.lt.s32.totalorder %s20, 1
        %s265 = scalar_select %p264, %s20, 1
        %s266 = smul.addr %s265, 8
        %s267 = scalar_lea.vmem %s1, %s266
        %p268 = scmp.lt.s32.totalorder %s20, 1
        %s269 = scalar_select %p268, %s20, 1
        %s270 = smul.addr %s269, 8
        %s271 = scalar_lea.vmem %s2, %s270
        %p272 = scmp.lt.s32.totalorder %s20, 1
        %s273 = scalar_select %p272, %s20, 1
        %s274 = scalar_lea.vmem %s3, %s273
        %p275 = scmp.lt.s32.totalorder %s20, 1
        %s276 = scalar_select %p275, %s20, 1
        %s277 = smul.addr %s276, 8
        %s278 = scalar_lea.vmem %s4, %s277
        %v279 = vld [vmem:[%s263] sm:$0xff]
        %v280 = vld [vmem:[%s267] sm:$0xff]
        %v281 = vld [vmem:[%s271] sm:$0xff]
        %v282 = vld [vmem:[%s274] sm:$0x1]
        %vm283 = vcmp.gt.f32.partialorder %v282, 0.0
        %vm284 = vcmask 64512
        %v286 = vsel %vm284, %v279, 0
        %v289 = vsel %vm284, %v280, 0
        %291 = vmatpush.xpose.msra.mxu0 0.0
        %292 = vmatpush.xpose.msra.mxu0 0.0
        %293 = vmatpush.xpose.msra.mxu0 0.0
        %294 = vmatpush.xpose.msra.mxu0 0.0
        %295 = vmatpush.xpose.msra.mxu0 0.0
        %296 = vmatpush.xpose.msra.mxu0 0.0
        %297 = vmatpush.xpose.msra.mxu0 0.0
        %298 = vmatpush.xpose.msra.mxu0 0.0
        %299 = vmatpush.xpose.msra.mxu0 0.0
        %300 = vmatpush.xpose.msra.mxu0 0.0
        %301 = vmatpush.xpose.msra.mxu0 0.0
        %302 = vmatpush.xpose.msra.mxu0 0.0
        %303 = vmatpush.xpose.msra.mxu0 0.0
        %304 = vmatpush.xpose.msra.mxu0 0.0
        %305 = vmatpush.xpose.msra.mxu0 0.0
        %306 = vmatpush.xpose.msra.mxu0 %v289
        %307 = vmatmul.f32.gmra.mxu0 %v286
        %v308 = vpop.f32.mrf.mxu0
        %v309 = vadd.f32 0.0, %v308
        %310 = vdwg.mxu0
        %v311 = vmul.f32 %v309, 0.35355338
        %v312 = vsel %vm283, 1, 0
        %v313 = vperm.slane %v312, 0
        %vm314 = vcmp.eq.s32.totalorder %v313, 1
        %v315 = vsel %vm314, %v311, -1e+10
        %v316 = vsel %vm284, %v315, -inf
        %317 = vmax.xlane.f32.xlu0 %v316
        %v318 = vpop.xlane.xlu0 %317
        %v319 = vsub.f32 %v315, %v318
        %v320 = vmul.f32 %v319, 1.442695
        %v321 = vpow.pop %v320
        %v322 = vsel %vm284, %v321, 0.0
        %323 = vadd.xlane.f32.xlu0 %v322
        %v324 = vpop.xlane.xlu0 %323
        %v325 = vrcp.pop %v324
        %v326 = vmul.f32 %v321, %v325
        %v328 = vsel %vm284, %v326, 0
        %330 = vmatpush.msra.mxu0 0.0
        %331 = vmatpush.msra.mxu0 0.0
        %332 = vmatpush.msra.mxu0 0.0
        %333 = vmatpush.msra.mxu0 0.0
        %334 = vmatpush.msra.mxu0 0.0
        %335 = vmatpush.msra.mxu0 0.0
        %336 = vmatpush.msra.mxu0 0.0
        %337 = vmatpush.msra.mxu0 0.0
        %338 = vmatpush.msra.mxu0 0.0
        %339 = vmatpush.msra.mxu0 0.0
        %340 = vmatpush.msra.mxu0 0.0
        %341 = vmatpush.msra.mxu0 0.0
        %342 = vmatpush.msra.mxu0 0.0
        %343 = vmatpush.msra.mxu0 0.0
        %344 = vmatpush.msra.mxu0 0.0
        %345 = vmatpush.msra.mxu0 %v281
        %346 = vmatmul.f32.gmra.mxu0 %v328
        %v347 = vpop.f32.mrf.mxu0
        %v348 = vadd.f32 0.0, %v347
        %349 = vdwg.mxu0
        %350 = vst.msk [vmem:[%s259] sm:$0xff] %vm284, %v326
        %351 = vrot.lane.b32.xlu0 %v279, 120
        %v352 = vpop.permute.xlu0 %351
        %353 = vrot.lane.b32.xlu0 %v280, 120
        %v354 = vpop.permute.xlu0 %353
        %v355 = vsel %vm284, %v352, 0
        %v357 = vsel %vm284, %v354, 0
        %359 = vmatpush.xpose.msra.mxu0 0.0
        %360 = vmatpush.xpose.msra.mxu0 0.0
        %361 = vmatpush.xpose.msra.mxu0 0.0
        %362 = vmatpush.xpose.msra.mxu0 0.0
        %363 = vmatpush.xpose.msra.mxu0 0.0
        %364 = vmatpush.xpose.msra.mxu0 0.0
        %365 = vmatpush.xpose.msra.mxu0 0.0
        %366 = vmatpush.xpose.msra.mxu0 0.0
        %367 = vmatpush.xpose.msra.mxu0 0.0
        %368 = vmatpush.xpose.msra.mxu0 0.0
        %369 = vmatpush.xpose.msra.mxu0 0.0
        %370 = vmatpush.xpose.msra.mxu0 0.0
        %371 = vmatpush.xpose.msra.mxu0 0.0
        %372 = vmatpush.xpose.msra.mxu0 0.0
        %373 = vmatpush.xpose.msra.mxu0 0.0
        %374 = vmatpush.xpose.msra.mxu0 %v357
        %375 = vmatmul.f32.gmra.mxu0 %v355
        %v376 = vpop.f32.mrf.mxu0
        %v377 = vadd.f32 0.0, %v376
        %378 = vdwg.mxu0
        %v379 = vmul.f32 %v377, 0.35355338
        %v380 = vsel %vm314, %v379, -1e+10
        %v381 = vsel %vm284, %v380, -inf
        %382 = vmax.xlane.f32.xlu0 %v381
        %v383 = vpop.xlane.xlu0 %382
        %v384 = vsub.f32 %v380, %v383
        %v385 = vmul.f32 %v384, 1.442695
        %v386 = vpow.pop %v385
        %v387 = vsel %vm284, %v386, 0.0
        %388 = vadd.xlane.f32.xlu0 %v387
        %v389 = vpop.xlane.xlu0 %388
        %v390 = vrcp.pop %v389
        %v391 = vmul.f32 %v386, %v390
        %393 = vrot.lane.b32.xlu0 %v281, 120
        %v394 = vpop.permute.xlu0 %393
        %v397 = vsel %vm284, %v391, 0
        %399 = vmatpush.msra.mxu0 0.0
        %400 = vmatpush.msra.mxu0 0.0
        %401 = vmatpush.msra.mxu0 0.0
        %402 = vmatpush.msra.mxu0 0.0
        %403 = vmatpush.msra.mxu0 0.0
        %404 = vmatpush.msra.mxu0 0.0
        %405 = vmatpush.msra.mxu0 0.0
        %406 = vmatpush.msra.mxu0 0.0
        %407 = vmatpush.msra.mxu0 0.0
        %408 = vmatpush.msra.mxu0 0.0
        %409 = vmatpush.msra.mxu0 0.0
        %410 = vmatpush.msra.mxu0 0.0
        %411 = vmatpush.msra.mxu0 0.0
        %412 = vmatpush.msra.mxu0 0.0
        %413 = vmatpush.msra.mxu0 0.0
        %414 = vmatpush.msra.mxu0 %v394
        %415 = vmatmul.f32.gmra.mxu0 %v397
        %v416 = vpop.f32.mrf.mxu0
        %v417 = vadd.f32 0.0, %v416
        %418 = vdwg.mxu0
        %s419 = scalar_lea.vmem %s259, 8 [#allocation2]
        %420 = vst.msk [vmem:[%s419] sm:$0xff] %vm284, %v391
        %421 = vrot.lane.b32.xlu0 %v279, 112
        %v422 = vpop.permute.xlu0 %421
        %423 = vrot.lane.b32.xlu0 %v280, 112
        %v424 = vpop.permute.xlu0 %423
        %v425 = vsel %vm284, %v422, 0
        %v427 = vsel %vm284, %v424, 0
        %429 = vmatpush.xpose.msra.mxu0 0.0
        %430 = vmatpush.xpose.msra.mxu0 0.0
        %431 = vmatpush.xpose.msra.mxu0 0.0
        %432 = vmatpush.xpose.msra.mxu0 0.0
        %433 = vmatpush.xpose.msra.mxu0 0.0
        %434 = vmatpush.xpose.msra.mxu0 0.0
        %435 = vmatpush.xpose.msra.mxu0 0.0
        %436 = vmatpush.xpose.msra.mxu0 0.0
        %437 = vmatpush.xpose.msra.mxu0 0.0
        %438 = vmatpush.xpose.msra.mxu0 0.0
        %439 = vmatpush.xpose.msra.mxu0 0.0
        %440 = vmatpush.xpose.msra.mxu0 0.0
        %441 = vmatpush.xpose.msra.mxu0 0.0
        %442 = vmatpush.xpose.msra.mxu0 0.0
        %443 = vmatpush.xpose.msra.mxu0 0.0
        %444 = vmatpush.xpose.msra.mxu0 %v427
        %445 = vmatmul.f32.gmra.mxu0 %v425
        %v446 = vpop.f32.mrf.mxu0
        %v447 = vadd.f32 0.0, %v446
        %448 = vdwg.mxu0
        %v449 = vmul.f32 %v447, 0.35355338
        %v450 = vsel %vm314, %v449, -1e+10
        %v451 = vsel %vm284, %v450, -inf
        %452 = vmax.xlane.f32.xlu0 %v451
        %v453 = vpop.xlane.xlu0 %452
        %v454 = vsub.f32 %v450, %v453
        %v455 = vmul.f32 %v454, 1.442695
        %v456 = vpow.pop %v455
        %v457 = vsel %vm284, %v456, 0.0
        %458 = vadd.xlane.f32.xlu0 %v457
        %v459 = vpop.xlane.xlu0 %458
        %v460 = vrcp.pop %v459
        %v461 = vmul.f32 %v456, %v460
        %462 = vrot.lane.b32.xlu0 %v281, 112
        %v463 = vpop.permute.xlu0 %462
        %v466 = vsel %vm284, %v461, 0
        %468 = vmatpush.msra.mxu0 0.0
        %469 = vmatpush.msra.mxu0 0.0
        %470 = vmatpush.msra.mxu0 0.0
        %471 = vmatpush.msra.mxu0 0.0
        %472 = vmatpush.msra.mxu0 0.0
        %473 = vmatpush.msra.mxu0 0.0
        %474 = vmatpush.msra.mxu0 0.0
        %475 = vmatpush.msra.mxu0 0.0
        %476 = vmatpush.msra.mxu0 0.0
        %477 = vmatpush.msra.mxu0 0.0
        %478 = vmatpush.msra.mxu0 0.0
        %479 = vmatpush.msra.mxu0 0.0
        %480 = vmatpush.msra.mxu0 0.0
        %481 = vmatpush.msra.mxu0 0.0
        %482 = vmatpush.msra.mxu0 0.0
        %483 = vmatpush.msra.mxu0 %v463
        %484 = vmatmul.f32.gmra.mxu0 %v466
        %v485 = vpop.f32.mrf.mxu0
        %v486 = vadd.f32 0.0, %v485
        %487 = vdwg.mxu0
        %s488 = scalar_lea.vmem %s259, 16 [#allocation2]
        %489 = vst.msk [vmem:[%s488] sm:$0xff] %vm284, %v461
        %490 = vrot.lane.b32.xlu0 %v279, 104
        %v491 = vpop.permute.xlu0 %490
        %492 = vrot.lane.b32.xlu0 %v280, 104
        %v493 = vpop.permute.xlu0 %492
        %v494 = vsel %vm284, %v491, 0
        %v496 = vsel %vm284, %v493, 0
        %498 = vmatpush.xpose.msra.mxu0 0.0
        %499 = vmatpush.xpose.msra.mxu0 0.0
        %500 = vmatpush.xpose.msra.mxu0 0.0
        %501 = vmatpush.xpose.msra.mxu0 0.0
        %502 = vmatpush.xpose.msra.mxu0 0.0
        %503 = vmatpush.xpose.msra.mxu0 0.0
        %504 = vmatpush.xpose.msra.mxu0 0.0
        %505 = vmatpush.xpose.msra.mxu0 0.0
        %506 = vmatpush.xpose.msra.mxu0 0.0
        %507 = vmatpush.xpose.msra.mxu0 0.0
        %508 = vmatpush.xpose.msra.mxu0 0.0
        %509 = vmatpush.xpose.msra.mxu0 0.0
        %510 = vmatpush.xpose.msra.mxu0 0.0
        %511 = vmatpush.xpose.msra.mxu0 0.0
        %512 = vmatpush.xpose.msra.mxu0 0.0
        %513 = vmatpush.xpose.msra.mxu0 %v496
        %514 = vmatmul.f32.gmra.mxu0 %v494
        %v515 = vpop.f32.mrf.mxu0
        %v516 = vadd.f32 0.0, %v515
        %517 = vdwg.mxu0
        %v518 = vmul.f32 %v516, 0.35355338
        %v519 = vsel %vm314, %v518, -1e+10
        %v520 = vsel %vm284, %v519, -inf
        %521 = vmax.xlane.f32.xlu0 %v520
        %v522 = vpop.xlane.xlu0 %521
        %v523 = vsub.f32 %v519, %v522
        %v524 = vmul.f32 %v523, 1.442695
        %v525 = vpow.pop %v524
        %v526 = vsel %vm284, %v525, 0.0
        %527 = vadd.xlane.f32.xlu0 %v526
        %v528 = vpop.xlane.xlu0 %527
        %v529 = vrcp.pop %v528
        %v530 = vmul.f32 %v525, %v529
        %531 = vrot.lane.b32.xlu0 %v281, 104
        %v532 = vpop.permute.xlu0 %531
        %v535 = vsel %vm284, %v530, 0
        %537 = vmatpush.msra.mxu0 0.0
        %538 = vmatpush.msra.mxu0 0.0
        %539 = vmatpush.msra.mxu0 0.0
        %540 = vmatpush.msra.mxu0 0.0
        %541 = vmatpush.msra.mxu0 0.0
        %542 = vmatpush.msra.mxu0 0.0
        %543 = vmatpush.msra.mxu0 0.0
        %544 = vmatpush.msra.mxu0 0.0
        %545 = vmatpush.msra.mxu0 0.0
        %546 = vmatpush.msra.mxu0 0.0
        %547 = vmatpush.msra.mxu0 0.0
        %548 = vmatpush.msra.mxu0 0.0
        %549 = vmatpush.msra.mxu0 0.0
        %550 = vmatpush.msra.mxu0 0.0
        %551 = vmatpush.msra.mxu0 0.0
        %552 = vmatpush.msra.mxu0 %v532
        %553 = vmatmul.f32.gmra.mxu0 %v535
        %v554 = vpop.f32.mrf.mxu0
        %v555 = vadd.f32 0.0, %v554
        %556 = vdwg.mxu0
        %s557 = scalar_lea.vmem %s259, 24 [#allocation2]
        %558 = vst.msk [vmem:[%s557] sm:$0xff] %vm284, %v530
        %560 = vrot.lane.b32.xlu0 %v417, 8
        %v561 = vpop.permute.xlu0 %560
        %564 = vrot.lane.b32.xlu0 %v486, 16
        %v565 = vpop.permute.xlu0 %564
        %568 = vrot.lane.b32.xlu0 %v555, 24
        %v569 = vpop.permute.xlu0 %568
        %v571 = vsel %vm284, %v348, %v561
        %vm572 = vcmask 130048
        %v573 = vsel %vm572, %v571, %v565
        %vm574 = vcmask 195584
        %v575 = vsel %vm574, %v573, %v569
        %vm576 = vcmask 261120
        %577 = vst.msk [vmem:[%s278] sm:$0xff] %vm576, %v575
        %p578 = scmp.lt.s32.totalorder %s20, 1
        %s579 = scalar_select %p578, %s20, 1
        %s580 = smul.addr %s579, 8
        %s581 = scalar_lea.vmem %s4, %s580
        %s582 = sand.u32 %s158, 1
        %s583 = scalar_lea.sflag [#allocation3], %s582
        %s584 = sand.u32 %s158, 1
        %s585 = smul.addr %s584, 32
        %s586 = scalar_lea.vmem [#allocation2], %s585
        // Predicated region
        $region37: #{decoder_forward.40} parent=35 // pred_check
          %p587 = pneg %p142
        $region38: #{decoder_forward.40} parent=35 // pred_check_branch
          %589 = sbr.rel (%p587) target = $region40
        $region39: #{decoder_forward.40} parent=35 // pred_region
          _
        $region40: #{decoder_forward.40} parent=35 // pred_fallthru
          _
        // Predicated region
        $region41: #{decoder_forward.40} parent=35 // pred_check
          %p590 = pneg %p168
        $region42: #{decoder_forward.40} parent=35 // pred_check_branch
          %592 = sbr.rel (%p590) target = $region44
        $region43: #{decoder_forward.40} parent=35 // pred_region
          %594 = vsyncadd %s583, 0
          %s595 = smul.addr %s20, 4
          %s596 = smul.addr %s595, 8
          %s597 = scalar_lea.hbm %s5, %s596
          %s598 = sshll.u32 %s586, 4
          %s599 = int_to_ptr.vmem [resolvable:$true] %s598
          %s600 = sshll.u32 %s597, 4
          %s601 = int_to_ptr.hbm [resolvable:$true] %s600
          %606 = dma.vmem_to_hbm [thread:$0]  %s599, 512, %s601, %s583, 128, 128, 8
        $region44: #{decoder_forward.40} parent=35 // pred_fallthru
          _
      $region36: #{decoder_forward.40} parent=5 // pred_fallthru
        _
      %p607 = scmp.le.s32.totalorder 2, %s15
      // Predicated region
      $region45: #{decoder_forward.40} parent=5 // pred_check
        %p608 = pneg %p607
      $region46: #{decoder_forward.40} parent=5 // pred_check_branch
        %610 = sbr.rel (%p608) target = $region48
      $region47: #{decoder_forward.40} parent=5 // pred_region
        %s611 = ssub.s32 %s15, 2
        // Predicated region
        $region49: #{decoder_forward.40} parent=47 // pred_check
          %p612 = pneg %p148
        $region50: #{decoder_forward.40} parent=47 // pred_check_branch
          %614 = sbr.rel (%p612) target = $region52
        $region51: #{decoder_forward.40} parent=47 // pred_region
          %p615 = scmp.lt.s32.totalorder %s21, 1
          %s616 = scalar_select %p615, %s21, 1
          %s617 = smul.addr %s616, 8
          %s618 = scalar_lea.vmem %s4, %s617
        $region52: #{decoder_forward.40} parent=47 // pred_fallthru
          _
        // Predicated region
        $region53: #{decoder_forward.40} parent=47 // pred_check
          %p619 = pneg %p174
        $region54: #{decoder_forward.40} parent=47 // pred_check_branch
          %621 = sbr.rel (%p619) target = $region56
        $region55: #{decoder_forward.40} parent=47 // pred_region
          %s622 = sand.u32 %s159, 1
          %s623 = scalar_lea.sflag [#allocation3], %s622
          %s624 = sand.u32 %s159, 1
          %s625 = smul.addr %s624, 32
          %s626 = scalar_lea.vmem [#allocation2], %s625
          %628 = dma.done %s623, 512
        $region56: #{decoder_forward.40} parent=47 // pred_fallthru
          _
      $region48: #{decoder_forward.40} parent=5 // pred_fallthru
        _
    $region6: #{decoder_forward.40} parent=1 // loop_footer
      %s19 = sadd.s32 1, %s15
    $region7: #{decoder_forward.40} parent=1 // loop_footer_branch
      %14 = sbr.rel target = $region3
    $region8: #{decoder_forward.40} parent=1 // loop_exit
      _
    %629 = vsyncpa [#allocation3], 1
    %s630 = scalar_lea.sflag [#allocation3], 1
    %631 = vsyncpa %s630, 1

// kernel: decoder_forward.45
$region0: #{decoder_forward.45}
  #allocation0 [shape = 'u32[]', space=smem, size = 0x4, offset = 0x4, fixed_abs, tag = 'smem constant byte address 0x4 - core index']
  #allocation1 [shape = 'u32[72,128]{1,0:T(1,128)}', space=vmem, size = 0x9000, scoped, tag = 'internal scratch']
  #allocation2 [shape = 'f32[16,50]{1,0:T(8,128)}', space=vmem, size = 0x2000, scoped, tag = 'scratch operand']
  %s0 = inlined_call_operand.vmem [shape: f32[16,32], index: 0, kind: input, shape index: {}]
  %s1 = inlined_call_operand.vmem [shape: f32[32,50], index: 1, kind: input, shape index: {}]
  %s2 = inlined_call_operand.vmem [shape: f32[1,50], index: 2, kind: input, shape index: {}]
  %s3 = inlined_call_operand.hbm [shape: f32[16,50], index: 3, kind: output, shape index: {}]
  %s4 = sld [smem:[#allocation0]]
  $region30: #{decoder_forward.45} parent=0
    _
  %s6 = ssub.s32 1, %s4
  %s7 = scalar_select 0, %s6, %s4
  $region1: #{decoder_forward.45} parent=0
    #allocation3 [shape = 'u8[8192]{0}', space=vmem, size = 0x2000, scoped, tag = 'output window, operand 0, single buffered']
    #allocation4 [shape = 's32[1]{0}', space=sflag, size = 0x4, scoped, tag = 'scoped memory for decoder_forward.45']
    %8 = vsyncpa [#allocation4], 0
    // Predicated region
    $region2: #{decoder_forward.45} parent=1 // pred_check
      _
    $region3: #{decoder_forward.45} parent=1 // pred_check_branch
      %10 = sbr.rel (0) target = $region5
    $region4: #{decoder_forward.45} parent=1 // pred_region
      _
    $region5: #{decoder_forward.45} parent=1 // pred_fallthru
      _
    // Predicated region
    $region6: #{decoder_forward.45} parent=1 // pred_check
      _
    $region7: #{decoder_forward.45} parent=1 // pred_check_branch
      %12 = sbr.rel (0) target = $region9
    $region8: #{decoder_forward.45} parent=1 // pred_region
      _
    $region9: #{decoder_forward.45} parent=1 // pred_fallthru
      _
    // Predicated region
    $region10: #{decoder_forward.45} parent=1 // pred_check
      _
    $region11: #{decoder_forward.45} parent=1 // pred_check_branch
      %14 = sbr.rel (0) target = $region13
    $region12: #{decoder_forward.45} parent=1 // pred_region
      _
    $region13: #{decoder_forward.45} parent=1 // pred_fallthru
      _
    %p15 = scmp.eq.s32.totalorder 0, 0
    // Predicated region
    $region14: #{decoder_forward.45} parent=1 // pred_check
      %p16 = pneg %p15
    $region15: #{decoder_forward.45} parent=1 // pred_check_branch
      %18 = sbr.rel (%p16) target = $region17
    $region16: #{decoder_forward.45} parent=1 // pred_region
      %vm19 = vcmask 408576
      %20 = vst.msk [vmem:[#allocation2] sm:$0xff] %vm19, 0.0
      %21 = vst.msk [vmem:[#allocation2 + $0x8] sm:$0xff] %vm19, 0.0
    $region17: #{decoder_forward.45} parent=1 // pred_fallthru
      _
    %v22 = vld [vmem:[#allocation2] sm:$0xff]
    %v23 = vld [vmem:[#allocation2 + $0x8] sm:$0xff]
    %v24 = vld [vmem:[%s0] sm:$0xff]
    %v25 = vld [vmem:[%s0 + $0x8] sm:$0xff]
    %v26 = vld [vmem:[%s1] sm:$0xff]
    %v27 = vld [vmem:[%s1 + $0x8] sm:$0xff]
    %v28 = vld [vmem:[%s1 + $0x10] sm:$0xff]
    %v29 = vld [vmem:[%s1 + $0x18] sm:$0xff]
    %vm30 = vcmask 261120
    %v32 = vsel %vm30, %v24, 0
    %v35 = vsel %vm30, %v25, 0
    %37 = vmatpush.msra.mxu0 0.0
    %38 = vmatpush.msra.mxu0 0.0
    %39 = vmatpush.msra.mxu0 0.0
    %40 = vmatpush.msra.mxu0 0.0
    %41 = vmatpush.msra.mxu0 0.0
    %42 = vmatpush.msra.mxu0 0.0
    %43 = vmatpush.msra.mxu0 0.0
    %44 = vmatpush.msra.mxu0 0.0
    %45 = vmatpush.msra.mxu0 0.0
    %46 = vmatpush.msra.mxu0 0.0
    %47 = vmatpush.msra.mxu0 0.0
    %48 = vmatpush.msra.mxu0 0.0
    %49 = vmatpush.msra.mxu0 %v29
    %50 = vmatpush.msra.mxu0 %v28
    %51 = vmatpush.msra.mxu0 %v27
    %52 = vmatpush.msra.mxu0 %v26
    %53 = vmatmul.f32.gmra.mxu0 %v32
    %v54 = vpop.f32.mrf.mxu0
    %v55 = vadd.f32 0.0, %v54
    %56 = vmatmul.f32.gmra.mxu0 %v35
    %v57 = vpop.f32.mrf.mxu0
    %v58 = vadd.f32 0.0, %v57
    %59 = vdwg.mxu0
    %v60 = vadd.f32 %v22, %v55
    %v61 = vadd.f32 %v23, %v58
    %vm62 = vcmask 408576
    %63 = vst.msk [vmem:[#allocation2] sm:$0xff] %vm62, %v60
    %64 = vst.msk [vmem:[#allocation2 + $0x8] sm:$0xff] %vm62, %v61
    // Predicated region
    $region18: #{decoder_forward.45} parent=1 // pred_check
      %p65 = pneg %p15
    $region19: #{decoder_forward.45} parent=1 // pred_check_branch
      %67 = sbr.rel (%p65) target = $region21
    $region20: #{decoder_forward.45} parent=1 // pred_region
      %v68 = vld [vmem:[#allocation2] sm:$0xff]
      %v69 = vld [vmem:[#allocation2 + $0x8] sm:$0xff]
      %v70 = vld [vmem:[%s2] sm:$0x1]
      %v72 = vperm.slane %v70, 0
      %v74 = vadd.f32 %v68, %v72
      %v75 = vadd.f32 %v69, %v72
      %76 = vst.msk [vmem:[#allocation3] sm:$0xff] %vm62, %v74
      %77 = vst.msk [vmem:[#allocation3 + $0x8] sm:$0xff] %vm62, %v75
    $region21: #{decoder_forward.45} parent=1 // pred_fallthru
      _
    // Predicated region
    $region22: #{decoder_forward.45} parent=1 // pred_check
      _
    $region23: #{decoder_forward.45} parent=1 // pred_check_branch
      %79 = sbr.rel (0) target = $region25
    $region24: #{decoder_forward.45} parent=1 // pred_region
      %81 = vsyncadd [#allocation4], 0
      %s82 = sshll.u32 [#allocation3], 4
      %s83 = int_to_ptr.vmem [resolvable:$true] %s82
      %s84 = sshll.u32 %s3, 4
      %s85 = int_to_ptr.hbm [resolvable:$true] %s84
      %90 = dma.vmem_to_hbm [thread:$0]  %s83, 256, %s85, [#allocation4], 128, 128, 8
    $region25: #{decoder_forward.45} parent=1 // pred_fallthru
      _
    // Predicated region
    $region26: #{decoder_forward.45} parent=1 // pred_check
      _
    $region27: #{decoder_forward.45} parent=1 // pred_check_branch
      %92 = sbr.rel (0) target = $region29
    $region28: #{decoder_forward.45} parent=1 // pred_region
      %94 = dma.done [#allocation4], 256
    $region29: #{decoder_forward.45} parent=1 // pred_fallthru
      _
    %95 = vsyncpa [#allocation4], 1

</llo_original>
